<compile_context>
chip_gen: v7x
topology: tpu7x:2x2x1
jax: 0.10.0
libtpu: 0.0.40
codegen_flags: <defaults>
</compile_context>

<pallas_src>
import jax
import jax.numpy as jnp
import numpy as np
from jax import lax
from jax.experimental import pallas as pl
from jax.experimental.pallas import tpu as pltpu


def _lstm_cell(gates, c_prev, H):
    """PyTorch-ordered LSTM cell: gates = [i, f, g, o] along the lane axis."""
    i = jax.nn.sigmoid(gates[:, 0 * H:1 * H])
    f = jax.nn.sigmoid(gates[:, 1 * H:2 * H])
    g = jnp.tanh(gates[:, 2 * H:3 * H])
    o = jax.nn.sigmoid(gates[:, 3 * H:4 * H])
    c = f * c_prev + i * g
    h = o * jnp.tanh(c)
    return h, c


def lstm_model_kernel(tok_ref, idx_ref, emb_ref, wih1_ref, whh1_ref, b1_ref,
                      w2cat_ref, b2_ref, wf1_ref, bf1_ref, wf2_ref, bf2_ref,
                      out_ref):
    NB = idx_ref.shape[0]              # sublane-padded batch
    T = tok_ref.shape[0] // NB         # sequence length (tokens are t-major)
    V, D = emb_ref.shape
    H = whh1_ref.shape[0]

    tok = tok_ref[...]                 # (T*NB, 1) int32, row r = (t=r//NB, n=r%NB)
    idx = idx_ref[...]                 # (NB, 1)  int32  answer positions

    # --- Embedding: one-hot encode every token, ONE fat MXU GEMM. ---
    oh = (lax.broadcasted_iota(jnp.int32, (T * NB, V), 1) == tok)
    oh = oh.astype(jnp.float32)
    x_emb = jnp.dot(oh, emb_ref[...],
                    preferred_element_type=jnp.float32)                    # (T*NB, D)

    # --- Layer-1 input projections for ALL timesteps in a single GEMM. ---
    xg1 = jnp.dot(x_emb, wih1_ref[...],
                  preferred_element_type=jnp.float32) + b1_ref[...]        # (T*NB, 4H)
    xg1 = xg1.reshape(T, NB, 4 * H)    # leading-dim split only (layout-trivial)

    h1 = jnp.zeros((NB, H), jnp.float32)
    c1 = jnp.zeros((NB, H), jnp.float32)
    h2 = jnp.zeros((NB, H), jnp.float32)
    c2 = jnp.zeros((NB, H), jnp.float32)
    q_feats = jnp.zeros((NB, H), jnp.float32)

    # Statically unrolled recurrence (T is small; the loop is inherently
    # sequential).  All per-step state stays in vregs, no VMEM scratch.
    for t in range(T):
        # layer 1: precomputed input projection + recurrent matmul
        g1 = xg1[t] + jnp.dot(h1, whh1_ref[...],
                              preferred_element_type=jnp.float32)
        h1, c1 = _lstm_cell(g1, c1, H)

        # layer 2: input + recurrent matmuls fused into one (NB,2H)x(2H,4H)
        inp2 = jnp.concatenate([h1, h2], axis=1)
        g2 = jnp.dot(inp2, w2cat_ref[...],
                     preferred_element_type=jnp.float32) + b2_ref[...]
        h2, c2 = _lstm_cell(g2, c2, H)

        # hs.gather(1, idx): keep this step's h2 for rows whose idx == t
        q_feats = jnp.where(idx == t, h2, q_feats)

    # --- classifier: Linear -> ReLU -> Linear, whole batch at once ---
    f1 = jnp.maximum(
        jnp.dot(q_feats, wf1_ref[...], preferred_element_type=jnp.float32)
        + bf1_ref[...], 0.0)
    out_ref[...] = jnp.dot(f1, wf2_ref[...],
                           preferred_element_type=jnp.float32) + bf2_ref[...]


def lstm_model_forward(questions, feats, params, null_token):
    """LstmModel.forward(questions, feats); feats is accepted but unused."""
    del feats  # exactly like the PyTorch module
    (emb, wih1, whh1, bih1, bhh1, wih2, whh2, bih2, bhh2,
     wf1, bf1, wf2, bf2) = params
    N, T = questions.shape
    A = wf2.shape[0]

    q = questions.astype(jnp.int32)

    # Pad the batch to a sublane multiple (8) so every in-kernel tensor is
    # (8k, 128k)-aligned; padded rows are all-NULL and are sliced off below.
    NB = max(8, ((N + 7) // 8) * 8)
    q_pad = jnp.pad(q, ((0, NB - N), (0, 0)), constant_values=null_token)

    # idx[i] = first t with q[i,t] != NULL and q[i,t+1] == NULL, else T-1.
    # The PyTorch module computes this on the host CPU; we mirror that
    # outside the kernel, vectorized.
    valid = jnp.logical_and(q_pad[:, :-1] != null_token,
                            q_pad[:, 1:] == null_token)
    t_iota = jnp.arange(T - 1, dtype=jnp.int32)[None, :]
    idx = jnp.min(jnp.where(valid, t_iota, T - 1), axis=1)
    idx = idx.reshape(NB, 1).astype(jnp.int32)

    # t-major flattened tokens: row r of `tok` is (t = r // NB, n = r % NB),
    # so the per-step slice inside the kernel is a leading-dim index.
    tok = q_pad.T.reshape(T * NB, 1)

    # Repack weights for x @ W layout, fold each layer's two biases, fuse
    # layer-2's input + recurrent weights into one (2H, 4H) contraction.
    wih1_t = wih1.T                                    # (D, 4H)
    whh1_t = whh1.T                                    # (H, 4H)
    b1 = (bih1 + bhh1).reshape(1, -1)                  # (1, 4H)
    w2cat = jnp.concatenate([wih2.T, whh2.T], axis=0)  # (2H, 4H)
    b2 = (bih2 + bhh2).reshape(1, -1)                  # (1, 4H)
    wf1_t = wf1.T                                      # (H, Fc)
    bf1_r = bf1.reshape(1, -1)
    wf2_t = wf2.T                                      # (Fc, A)
    bf2_r = bf2.reshape(1, -1)

    out = pl.pallas_call(
        lstm_model_kernel,
        out_shape=jax.ShapeDtypeStruct((NB, A), jnp.float32),
        in_specs=[pl.BlockSpec(memory_space=pltpu.MemorySpace.VMEM)
                  for _ in range(12)],
        out_specs=pl.BlockSpec(memory_space=pltpu.MemorySpace.VMEM),
    )(tok, idx, emb, wih1_t, whh1_t, b1, w2cat, b2,
      wf1_t, bf1_r, wf2_t, bf2_r)
    return out[:N]


def init_params(key, V, D, H, Fc, A):
    """Deterministic PyTorch-default-style init (Embedding ~ N(0,.), LSTM /
    Linear ~ U(-1/sqrt(fan), 1/sqrt(fan)))."""
    ks = jax.random.split(key, 13)

    def u(k, shape, fan):
        b = 1.0 / np.sqrt(fan)
        return jax.random.uniform(k, shape, jnp.float32, -b, b)

    emb = jax.random.normal(ks[0], (V, D), jnp.float32) * 0.1
    wih1 = u(ks[1], (4 * H, D), H)
    whh1 = u(ks[2], (4 * H, H), H)
    bih1 = u(ks[3], (4 * H,), H)
    bhh1 = u(ks[4], (4 * H,), H)
    wih2 = u(ks[5], (4 * H, H), H)
    whh2 = u(ks[6], (4 * H, H), H)
    bih2 = u(ks[7], (4 * H,), H)
    bhh2 = u(ks[8], (4 * H,), H)
    wf1 = u(ks[9], (Fc, H), H)
    bf1 = u(ks[10], (Fc,), H)
    wf2 = u(ks[11], (A, Fc), Fc)
    bf2 = u(ks[12], (A,), Fc)
    return (emb, wih1, whh1, bih1, bhh1, wih2, whh2, bih2, bhh2,
            wf1, bf1, wf2, bf2)


def reference_forward(questions, feats, params, null_token):
    """Pure-JAX reference of the same math (for validation)."""
    del feats
    (emb, wih1, whh1, bih1, bhh1, wih2, whh2, bih2, bhh2,
     wf1, bf1, wf2, bf2) = params
    N, T = questions.shape
    H = whh1.shape[1]
    q = questions.astype(jnp.int32)

    valid = jnp.logical_and(q[:, :-1] != null_token, q[:, 1:] == null_token)
    t_iota = jnp.arange(T - 1, dtype=jnp.int32)[None, :]
    idx = jnp.min(jnp.where(valid, t_iota, T - 1), axis=1)

    x = emb[q]                                        # (N, T, D)

    def cell(h, c, x_t, wih, whh, bih, bhh):
        gates = x_t @ wih.T + bih + h @ whh.T + bhh
        i, f, g, o = jnp.split(gates, 4, axis=1)
        c = jax.nn.sigmoid(f) * c + jax.nn.sigmoid(i) * jnp.tanh(g)
        h = jax.nn.sigmoid(o) * jnp.tanh(c)
        return h, c

    h1 = c1 = h2 = c2 = jnp.zeros((N, H), jnp.float32)
    hs = []
    for t in range(T):
        h1, c1 = cell(h1, c1, x[:, t, :], wih1, whh1, bih1, bhh1)
        h2, c2 = cell(h2, c2, h1, wih2, whh2, bih2, bhh2)
        hs.append(h2)
    hs = jnp.stack(hs, axis=1)                        # (N, T, H)
    q_feats = jnp.take_along_axis(hs, idx[:, None, None], axis=1)[:, 0, :]
    f1 = jax.nn.relu(q_feats @ wf1.T + bf1)
    return f1 @ wf2.T + bf2


if __name__ == "__main__":
    # Small shapes consistent with the module:
    #   vocab V, wordvec_dim D, rnn_dim H, rnn_num_layers=2, fc_dims=(Fc,), |A|
    N, T = 2, 8
    V, D, H, Fc, A = 32, 32, 32, 64, 16
    NULL, START, END = 0, 1, 2

    key = jax.random.PRNGKey(0)
    k_tok, k_par = jax.random.split(key)

    # questions: <START> body ... <END> <NULL>*  (row 0 length 5, row 1 full)
    body = jax.random.randint(k_tok, (N, T), 3, V)
    lengths = jnp.array([5, T])
    pos = jnp.arange(T)[None, :]
    questions = jnp.where(pos < lengths[:, None], body, NULL)
    questions = questions.at[:, 0].set(START)
    questions = jnp.where(pos == (lengths - 1)[:, None], END, questions)
    questions = questions.astype(jnp.int32)

    feats = jnp.zeros((N, 4, 8, 8), jnp.float32)      # accepted but unused

    params = init_params(k_par, V, D, H, Fc, A)

    out = jax.block_until_ready(lstm_model_forward(questions, feats, params, NULL))
    ref = jax.block_until_ready(reference_forward(questions, feats, params, NULL))

    assert out.shape == (N, A), out.shape
    err = float(np.max(np.abs(np.asarray(out) - np.asarray(ref))))
    assert np.allclose(np.asarray(out), np.asarray(ref), rtol=2e-2, atol=2e-2), (
        "max abs err", err)
    print("KERNEL_OK")
</pallas_src>

<mosaic_0001>
module attributes {stable_mosaic.version = 11 : i64} {
  func.func @lstm_model_kernel(%arg0: memref<64x1xi32, #tpu.memory_space<vmem>>, %arg1: memref<8x1xi32, #tpu.memory_space<vmem>>, %arg2: memref<32x32xf32, #tpu.memory_space<vmem>>, %arg3: memref<32x128xf32, #tpu.memory_space<vmem>>, %arg4: memref<32x128xf32, #tpu.memory_space<vmem>>, %arg5: memref<1x128xf32, #tpu.memory_space<vmem>>, %arg6: memref<64x128xf32, #tpu.memory_space<vmem>>, %arg7: memref<1x128xf32, #tpu.memory_space<vmem>>, %arg8: memref<32x64xf32, #tpu.memory_space<vmem>>, %arg9: memref<1x64xf32, #tpu.memory_space<vmem>>, %arg10: memref<64x16xf32, #tpu.memory_space<vmem>>, %arg11: memref<1x16xf32, #tpu.memory_space<vmem>>, %arg12: memref<8x16xf32, #tpu.memory_space<vmem>>) attributes {dimension_semantics = [], scalar_prefetch = 0 : i64, scratch_operands = 0 : i64, tpu.core_type = #tpu.core_type<tc>} {
    %c0 = arith.constant 0 : index
    %c0_0 = arith.constant 0 : index
    %0 = vector.load %arg0[%c0, %c0_0] : memref<64x1xi32, #tpu.memory_space<vmem>>, vector<64x1xi32>
    %c0_1 = arith.constant 0 : index
    %c0_2 = arith.constant 0 : index
    %1 = vector.load %arg1[%c0_1, %c0_2] : memref<8x1xi32, #tpu.memory_space<vmem>>, vector<8x1xi32>
    %2 = tpu.iota {dimensions = array<i32: 1>} : vector<64x32xi32>
    %3 = vector.broadcast %0 : vector<64x1xi32> to vector<64x32xi32>
    %4 = arith.cmpi eq, %2, %3 : vector<64x32xi32>
    %5 = arith.extui %4 : vector<64x32xi1> to vector<64x32xi32>
    %6 = arith.sitofp %5 : vector<64x32xi32> to vector<64x32xf32>
    %c0_3 = arith.constant 0 : index
    %c0_4 = arith.constant 0 : index
    %7 = vector.load %arg2[%c0_3, %c0_4] : memref<32x32xf32, #tpu.memory_space<vmem>>, vector<32x32xf32>
    %cst = arith.constant dense<0.000000e+00> : vector<64x32xf32>
    %8 = tpu.matmul %6, %7, %cst {dimension_numbers = #tpu.dot_dimension_numbers<[1], [0], [0], [1], [0, 0, 1, 1], [], []>} : vector<64x32xf32>, vector<32x32xf32>, vector<64x32xf32> -> vector<64x32xf32>
    %c0_5 = arith.constant 0 : index
    %c0_6 = arith.constant 0 : index
    %9 = vector.load %arg3[%c0_5, %c0_6] : memref<32x128xf32, #tpu.memory_space<vmem>>, vector<32x128xf32>
    %cst_7 = arith.constant dense<0.000000e+00> : vector<64x128xf32>
    %10 = tpu.matmul %8, %9, %cst_7 {dimension_numbers = #tpu.dot_dimension_numbers<[1], [0], [0], [1], [0, 0, 1, 1], [], []>} : vector<64x32xf32>, vector<32x128xf32>, vector<64x128xf32> -> vector<64x128xf32>
    %c0_8 = arith.constant 0 : index
    %c0_9 = arith.constant 0 : index
    %11 = vector.load %arg5[%c0_8, %c0_9] : memref<1x128xf32, #tpu.memory_space<vmem>>, vector<1x128xf32>
    %12 = vector.broadcast %11 : vector<1x128xf32> to vector<64x128xf32>
    %13 = arith.addf %10, %12 : vector<64x128xf32>
    %14 = vector.shape_cast %13 : vector<64x128xf32> to vector<8x8x128xf32>
    %cst_10 = arith.constant 0.000000e+00 : f32
    %15 = vector.broadcast %cst_10 : f32 to vector<8x32xf32>
    %cst_11 = arith.constant 0.000000e+00 : f32
    %16 = vector.broadcast %cst_11 : f32 to vector<8x32xf32>
    %cst_12 = arith.constant 0.000000e+00 : f32
    %17 = vector.broadcast %cst_12 : f32 to vector<8x32xf32>
    %cst_13 = arith.constant 0.000000e+00 : f32
    %18 = vector.broadcast %cst_13 : f32 to vector<8x32xf32>
    %cst_14 = arith.constant 0.000000e+00 : f32
    %19 = vector.broadcast %cst_14 : f32 to vector<8x32xf32>
    %20 = vector.extract_strided_slice %14 {offsets = [0, 0, 0], sizes = [1, 8, 128], strides = [1, 1, 1]} : vector<8x8x128xf32> to vector<1x8x128xf32>
    %21 = vector.shape_cast %20 : vector<1x8x128xf32> to vector<8x128xf32>
    %c0_15 = arith.constant 0 : index
    %c0_16 = arith.constant 0 : index
    %22 = vector.load %arg4[%c0_15, %c0_16] : memref<32x128xf32, #tpu.memory_space<vmem>>, vector<32x128xf32>
    %cst_17 = arith.constant dense<0.000000e+00> : vector<8x128xf32>
    %23 = tpu.matmul %15, %22, %cst_17 {dimension_numbers = #tpu.dot_dimension_numbers<[1], [0], [0], [1], [0, 0, 1, 1], [], []>} : vector<8x32xf32>, vector<32x128xf32>, vector<8x128xf32> -> vector<8x128xf32>
    %24 = arith.addf %21, %23 : vector<8x128xf32>
    %25 = vector.extract_strided_slice %24 {offsets = [0, 0], sizes = [8, 32], strides = [1, 1]} : vector<8x128xf32> to vector<8x32xf32>
    %26 = arith.negf %25 : vector<8x32xf32>
    %27 = math.exp %26 : vector<8x32xf32>
    %cst_18 = arith.constant 1.000000e+00 : f32
    %28 = vector.broadcast %cst_18 : f32 to vector<8x32xf32>
    %29 = arith.addf %28, %27 : vector<8x32xf32>
    %30 = arith.divf %28, %29 : vector<8x32xf32>
    %31 = vector.extract_strided_slice %24 {offsets = [0, 32], sizes = [8, 32], strides = [1, 1]} : vector<8x128xf32> to vector<8x32xf32>
    %32 = arith.negf %31 : vector<8x32xf32>
    %33 = math.exp %32 : vector<8x32xf32>
    %cst_19 = arith.constant 1.000000e+00 : f32
    %34 = vector.broadcast %cst_19 : f32 to vector<8x32xf32>
    %35 = arith.addf %34, %33 : vector<8x32xf32>
    %36 = arith.divf %34, %35 : vector<8x32xf32>
    %37 = vector.extract_strided_slice %24 {offsets = [0, 64], sizes = [8, 32], strides = [1, 1]} : vector<8x128xf32> to vector<8x32xf32>
    %38 = math.tanh %37 : vector<8x32xf32>
    %39 = vector.extract_strided_slice %24 {offsets = [0, 96], sizes = [8, 32], strides = [1, 1]} : vector<8x128xf32> to vector<8x32xf32>
    %40 = arith.negf %39 : vector<8x32xf32>
    %41 = math.exp %40 : vector<8x32xf32>
    %cst_20 = arith.constant 1.000000e+00 : f32
    %42 = vector.broadcast %cst_20 : f32 to vector<8x32xf32>
    %43 = arith.addf %42, %41 : vector<8x32xf32>
    %44 = arith.divf %42, %43 : vector<8x32xf32>
    %45 = arith.mulf %36, %16 : vector<8x32xf32>
    %46 = arith.mulf %30, %38 : vector<8x32xf32>
    %47 = arith.addf %45, %46 : vector<8x32xf32>
    %48 = math.tanh %47 : vector<8x32xf32>
    %49 = arith.mulf %44, %48 : vector<8x32xf32>
    %50 = tpu.concatenate %49, %17 in 1 : vector<8x32xf32>, vector<8x32xf32> -> vector<8x64xf32>
    %c0_21 = arith.constant 0 : index
    %c0_22 = arith.constant 0 : index
    %51 = vector.load %arg6[%c0_21, %c0_22] : memref<64x128xf32, #tpu.memory_space<vmem>>, vector<64x128xf32>
    %cst_23 = arith.constant dense<0.000000e+00> : vector<8x128xf32>
    %52 = tpu.matmul %50, %51, %cst_23 {dimension_numbers = #tpu.dot_dimension_numbers<[1], [0], [0], [1], [0, 0, 1, 1], [], []>} : vector<8x64xf32>, vector<64x128xf32>, vector<8x128xf32> -> vector<8x128xf32>
    %c0_24 = arith.constant 0 : index
    %c0_25 = arith.constant 0 : index
    %53 = vector.load %arg7[%c0_24, %c0_25] : memref<1x128xf32, #tpu.memory_space<vmem>>, vector<1x128xf32>
    %54 = vector.broadcast %53 : vector<1x128xf32> to vector<8x128xf32>
    %55 = arith.addf %52, %54 : vector<8x128xf32>
    %56 = vector.extract_strided_slice %55 {offsets = [0, 0], sizes = [8, 32], strides = [1, 1]} : vector<8x128xf32> to vector<8x32xf32>
    %57 = arith.negf %56 : vector<8x32xf32>
    %58 = math.exp %57 : vector<8x32xf32>
    %cst_26 = arith.constant 1.000000e+00 : f32
    %59 = vector.broadcast %cst_26 : f32 to vector<8x32xf32>
    %60 = arith.addf %59, %58 : vector<8x32xf32>
    %61 = arith.divf %59, %60 : vector<8x32xf32>
    %62 = vector.extract_strided_slice %55 {offsets = [0, 32], sizes = [8, 32], strides = [1, 1]} : vector<8x128xf32> to vector<8x32xf32>
    %63 = arith.negf %62 : vector<8x32xf32>
    %64 = math.exp %63 : vector<8x32xf32>
    %cst_27 = arith.constant 1.000000e+00 : f32
    %65 = vector.broadcast %cst_27 : f32 to vector<8x32xf32>
    %66 = arith.addf %65, %64 : vector<8x32xf32>
    %67 = arith.divf %65, %66 : vector<8x32xf32>
    %68 = vector.extract_strided_slice %55 {offsets = [0, 64], sizes = [8, 32], strides = [1, 1]} : vector<8x128xf32> to vector<8x32xf32>
    %69 = math.tanh %68 : vector<8x32xf32>
    %70 = vector.extract_strided_slice %55 {offsets = [0, 96], sizes = [8, 32], strides = [1, 1]} : vector<8x128xf32> to vector<8x32xf32>
    %71 = arith.negf %70 : vector<8x32xf32>
    %72 = math.exp %71 : vector<8x32xf32>
    %cst_28 = arith.constant 1.000000e+00 : f32
    %73 = vector.broadcast %cst_28 : f32 to vector<8x32xf32>
    %74 = arith.addf %73, %72 : vector<8x32xf32>
    %75 = arith.divf %73, %74 : vector<8x32xf32>
    %76 = arith.mulf %67, %18 : vector<8x32xf32>
    %77 = arith.mulf %61, %69 : vector<8x32xf32>
    %78 = arith.addf %76, %77 : vector<8x32xf32>
    %79 = math.tanh %78 : vector<8x32xf32>
    %80 = arith.mulf %75, %79 : vector<8x32xf32>
    %c0_i32 = arith.constant 0 : i32
    %81 = vector.broadcast %c0_i32 : i32 to vector<8x1xi32>
    %82 = arith.cmpi eq, %1, %81 : vector<8x1xi32>
    %83 = vector.shape_cast %82 : vector<8x1xi1> to vector<8x1xi1>
    %84 = vector.broadcast %83 : vector<8x1xi1> to vector<8x32xi1>
    %85 = arith.select %84, %80, %19 : vector<8x32xi1>, vector<8x32xf32>
    %86 = vector.extract_strided_slice %14 {offsets = [1, 0, 0], sizes = [1, 8, 128], strides = [1, 1, 1]} : vector<8x8x128xf32> to vector<1x8x128xf32>
    %87 = vector.shape_cast %86 : vector<1x8x128xf32> to vector<8x128xf32>
    %c0_29 = arith.constant 0 : index
    %c0_30 = arith.constant 0 : index
    %88 = vector.load %arg4[%c0_29, %c0_30] : memref<32x128xf32, #tpu.memory_space<vmem>>, vector<32x128xf32>
    %cst_31 = arith.constant dense<0.000000e+00> : vector<8x128xf32>
    %89 = tpu.matmul %49, %88, %cst_31 {dimension_numbers = #tpu.dot_dimension_numbers<[1], [0], [0], [1], [0, 0, 1, 1], [], []>} : vector<8x32xf32>, vector<32x128xf32>, vector<8x128xf32> -> vector<8x128xf32>
    %90 = arith.addf %87, %89 : vector<8x128xf32>
    %91 = vector.extract_strided_slice %90 {offsets = [0, 0], sizes = [8, 32], strides = [1, 1]} : vector<8x128xf32> to vector<8x32xf32>
    %92 = arith.negf %91 : vector<8x32xf32>
    %93 = math.exp %92 : vector<8x32xf32>
    %cst_32 = arith.constant 1.000000e+00 : f32
    %94 = vector.broadcast %cst_32 : f32 to vector<8x32xf32>
    %95 = arith.addf %94, %93 : vector<8x32xf32>
    %96 = arith.divf %94, %95 : vector<8x32xf32>
    %97 = vector.extract_strided_slice %90 {offsets = [0, 32], sizes = [8, 32], strides = [1, 1]} : vector<8x128xf32> to vector<8x32xf32>
    %98 = arith.negf %97 : vector<8x32xf32>
    %99 = math.exp %98 : vector<8x32xf32>
    %cst_33 = arith.constant 1.000000e+00 : f32
    %100 = vector.broadcast %cst_33 : f32 to vector<8x32xf32>
    %101 = arith.addf %100, %99 : vector<8x32xf32>
    %102 = arith.divf %100, %101 : vector<8x32xf32>
    %103 = vector.extract_strided_slice %90 {offsets = [0, 64], sizes = [8, 32], strides = [1, 1]} : vector<8x128xf32> to vector<8x32xf32>
    %104 = math.tanh %103 : vector<8x32xf32>
    %105 = vector.extract_strided_slice %90 {offsets = [0, 96], sizes = [8, 32], strides = [1, 1]} : vector<8x128xf32> to vector<8x32xf32>
    %106 = arith.negf %105 : vector<8x32xf32>
    %107 = math.exp %106 : vector<8x32xf32>
    %cst_34 = arith.constant 1.000000e+00 : f32
    %108 = vector.broadcast %cst_34 : f32 to vector<8x32xf32>
    %109 = arith.addf %108, %107 : vector<8x32xf32>
    %110 = arith.divf %108, %109 : vector<8x32xf32>
    %111 = arith.mulf %102, %47 : vector<8x32xf32>
    %112 = arith.mulf %96, %104 : vector<8x32xf32>
    %113 = arith.addf %111, %112 : vector<8x32xf32>
    %114 = math.tanh %113 : vector<8x32xf32>
    %115 = arith.mulf %110, %114 : vector<8x32xf32>
    %116 = tpu.concatenate %115, %80 in 1 : vector<8x32xf32>, vector<8x32xf32> -> vector<8x64xf32>
    %c0_35 = arith.constant 0 : index
    %c0_36 = arith.constant 0 : index
    %117 = vector.load %arg6[%c0_35, %c0_36] : memref<64x128xf32, #tpu.memory_space<vmem>>, vector<64x128xf32>
    %cst_37 = arith.constant dense<0.000000e+00> : vector<8x128xf32>
    %118 = tpu.matmul %116, %117, %cst_37 {dimension_numbers = #tpu.dot_dimension_numbers<[1], [0], [0], [1], [0, 0, 1, 1], [], []>} : vector<8x64xf32>, vector<64x128xf32>, vector<8x128xf32> -> vector<8x128xf32>
    %c0_38 = arith.constant 0 : index
    %c0_39 = arith.constant 0 : index
    %119 = vector.load %arg7[%c0_38, %c0_39] : memref<1x128xf32, #tpu.memory_space<vmem>>, vector<1x128xf32>
    %120 = vector.broadcast %119 : vector<1x128xf32> to vector<8x128xf32>
    %121 = arith.addf %118, %120 : vector<8x128xf32>
    %122 = vector.extract_strided_slice %121 {offsets = [0, 0], sizes = [8, 32], strides = [1, 1]} : vector<8x128xf32> to vector<8x32xf32>
    %123 = arith.negf %122 : vector<8x32xf32>
    %124 = math.exp %123 : vector<8x32xf32>
    %cst_40 = arith.constant 1.000000e+00 : f32
    %125 = vector.broadcast %cst_40 : f32 to vector<8x32xf32>
    %126 = arith.addf %125, %124 : vector<8x32xf32>
    %127 = arith.divf %125, %126 : vector<8x32xf32>
    %128 = vector.extract_strided_slice %121 {offsets = [0, 32], sizes = [8, 32], strides = [1, 1]} : vector<8x128xf32> to vector<8x32xf32>
    %129 = arith.negf %128 : vector<8x32xf32>
    %130 = math.exp %129 : vector<8x32xf32>
    %cst_41 = arith.constant 1.000000e+00 : f32
    %131 = vector.broadcast %cst_41 : f32 to vector<8x32xf32>
    %132 = arith.addf %131, %130 : vector<8x32xf32>
    %133 = arith.divf %131, %132 : vector<8x32xf32>
    %134 = vector.extract_strided_slice %121 {offsets = [0, 64], sizes = [8, 32], strides = [1, 1]} : vector<8x128xf32> to vector<8x32xf32>
    %135 = math.tanh %134 : vector<8x32xf32>
    %136 = vector.extract_strided_slice %121 {offsets = [0, 96], sizes = [8, 32], strides = [1, 1]} : vector<8x128xf32> to vector<8x32xf32>
    %137 = arith.negf %136 : vector<8x32xf32>
    %138 = math.exp %137 : vector<8x32xf32>
    %cst_42 = arith.constant 1.000000e+00 : f32
    %139 = vector.broadcast %cst_42 : f32 to vector<8x32xf32>
    %140 = arith.addf %139, %138 : vector<8x32xf32>
    %141 = arith.divf %139, %140 : vector<8x32xf32>
    %142 = arith.mulf %133, %78 : vector<8x32xf32>
    %143 = arith.mulf %127, %135 : vector<8x32xf32>
    %144 = arith.addf %142, %143 : vector<8x32xf32>
    %145 = math.tanh %144 : vector<8x32xf32>
    %146 = arith.mulf %141, %145 : vector<8x32xf32>
    %c1_i32 = arith.constant 1 : i32
    %147 = vector.broadcast %c1_i32 : i32 to vector<8x1xi32>
    %148 = arith.cmpi eq, %1, %147 : vector<8x1xi32>
    %149 = vector.shape_cast %148 : vector<8x1xi1> to vector<8x1xi1>
    %150 = vector.broadcast %149 : vector<8x1xi1> to vector<8x32xi1>
    %151 = arith.select %150, %146, %85 : vector<8x32xi1>, vector<8x32xf32>
    %152 = vector.extract_strided_slice %14 {offsets = [2, 0, 0], sizes = [1, 8, 128], strides = [1, 1, 1]} : vector<8x8x128xf32> to vector<1x8x128xf32>
    %153 = vector.shape_cast %152 : vector<1x8x128xf32> to vector<8x128xf32>
    %c0_43 = arith.constant 0 : index
    %c0_44 = arith.constant 0 : index
    %154 = vector.load %arg4[%c0_43, %c0_44] : memref<32x128xf32, #tpu.memory_space<vmem>>, vector<32x128xf32>
    %cst_45 = arith.constant dense<0.000000e+00> : vector<8x128xf32>
    %155 = tpu.matmul %115, %154, %cst_45 {dimension_numbers = #tpu.dot_dimension_numbers<[1], [0], [0], [1], [0, 0, 1, 1], [], []>} : vector<8x32xf32>, vector<32x128xf32>, vector<8x128xf32> -> vector<8x128xf32>
    %156 = arith.addf %153, %155 : vector<8x128xf32>
    %157 = vector.extract_strided_slice %156 {offsets = [0, 0], sizes = [8, 32], strides = [1, 1]} : vector<8x128xf32> to vector<8x32xf32>
    %158 = arith.negf %157 : vector<8x32xf32>
    %159 = math.exp %158 : vector<8x32xf32>
    %cst_46 = arith.constant 1.000000e+00 : f32
    %160 = vector.broadcast %cst_46 : f32 to vector<8x32xf32>
    %161 = arith.addf %160, %159 : vector<8x32xf32>
    %162 = arith.divf %160, %161 : vector<8x32xf32>
    %163 = vector.extract_strided_slice %156 {offsets = [0, 32], sizes = [8, 32], strides = [1, 1]} : vector<8x128xf32> to vector<8x32xf32>
    %164 = arith.negf %163 : vector<8x32xf32>
    %165 = math.exp %164 : vector<8x32xf32>
    %cst_47 = arith.constant 1.000000e+00 : f32
    %166 = vector.broadcast %cst_47 : f32 to vector<8x32xf32>
    %167 = arith.addf %166, %165 : vector<8x32xf32>
    %168 = arith.divf %166, %167 : vector<8x32xf32>
    %169 = vector.extract_strided_slice %156 {offsets = [0, 64], sizes = [8, 32], strides = [1, 1]} : vector<8x128xf32> to vector<8x32xf32>
    %170 = math.tanh %169 : vector<8x32xf32>
    %171 = vector.extract_strided_slice %156 {offsets = [0, 96], sizes = [8, 32], strides = [1, 1]} : vector<8x128xf32> to vector<8x32xf32>
    %172 = arith.negf %171 : vector<8x32xf32>
    %173 = math.exp %172 : vector<8x32xf32>
    %cst_48 = arith.constant 1.000000e+00 : f32
    %174 = vector.broadcast %cst_48 : f32 to vector<8x32xf32>
    %175 = arith.addf %174, %173 : vector<8x32xf32>
    %176 = arith.divf %174, %175 : vector<8x32xf32>
    %177 = arith.mulf %168, %113 : vector<8x32xf32>
    %178 = arith.mulf %162, %170 : vector<8x32xf32>
    %179 = arith.addf %177, %178 : vector<8x32xf32>
    %180 = math.tanh %179 : vector<8x32xf32>
    %181 = arith.mulf %176, %180 : vector<8x32xf32>
    %182 = tpu.concatenate %181, %146 in 1 : vector<8x32xf32>, vector<8x32xf32> -> vector<8x64xf32>
    %c0_49 = arith.constant 0 : index
    %c0_50 = arith.constant 0 : index
    %183 = vector.load %arg6[%c0_49, %c0_50] : memref<64x128xf32, #tpu.memory_space<vmem>>, vector<64x128xf32>
    %cst_51 = arith.constant dense<0.000000e+00> : vector<8x128xf32>
    %184 = tpu.matmul %182, %183, %cst_51 {dimension_numbers = #tpu.dot_dimension_numbers<[1], [0], [0], [1], [0, 0, 1, 1], [], []>} : vector<8x64xf32>, vector<64x128xf32>, vector<8x128xf32> -> vector<8x128xf32>
    %c0_52 = arith.constant 0 : index
    %c0_53 = arith.constant 0 : index
    %185 = vector.load %arg7[%c0_52, %c0_53] : memref<1x128xf32, #tpu.memory_space<vmem>>, vector<1x128xf32>
    %186 = vector.broadcast %185 : vector<1x128xf32> to vector<8x128xf32>
    %187 = arith.addf %184, %186 : vector<8x128xf32>
    %188 = vector.extract_strided_slice %187 {offsets = [0, 0], sizes = [8, 32], strides = [1, 1]} : vector<8x128xf32> to vector<8x32xf32>
    %189 = arith.negf %188 : vector<8x32xf32>
    %190 = math.exp %189 : vector<8x32xf32>
    %cst_54 = arith.constant 1.000000e+00 : f32
    %191 = vector.broadcast %cst_54 : f32 to vector<8x32xf32>
    %192 = arith.addf %191, %190 : vector<8x32xf32>
    %193 = arith.divf %191, %192 : vector<8x32xf32>
    %194 = vector.extract_strided_slice %187 {offsets = [0, 32], sizes = [8, 32], strides = [1, 1]} : vector<8x128xf32> to vector<8x32xf32>
    %195 = arith.negf %194 : vector<8x32xf32>
    %196 = math.exp %195 : vector<8x32xf32>
    %cst_55 = arith.constant 1.000000e+00 : f32
    %197 = vector.broadcast %cst_55 : f32 to vector<8x32xf32>
    %198 = arith.addf %197, %196 : vector<8x32xf32>
    %199 = arith.divf %197, %198 : vector<8x32xf32>
    %200 = vector.extract_strided_slice %187 {offsets = [0, 64], sizes = [8, 32], strides = [1, 1]} : vector<8x128xf32> to vector<8x32xf32>
    %201 = math.tanh %200 : vector<8x32xf32>
    %202 = vector.extract_strided_slice %187 {offsets = [0, 96], sizes = [8, 32], strides = [1, 1]} : vector<8x128xf32> to vector<8x32xf32>
    %203 = arith.negf %202 : vector<8x32xf32>
    %204 = math.exp %203 : vector<8x32xf32>
    %cst_56 = arith.constant 1.000000e+00 : f32
    %205 = vector.broadcast %cst_56 : f32 to vector<8x32xf32>
    %206 = arith.addf %205, %204 : vector<8x32xf32>
    %207 = arith.divf %205, %206 : vector<8x32xf32>
    %208 = arith.mulf %199, %144 : vector<8x32xf32>
    %209 = arith.mulf %193, %201 : vector<8x32xf32>
    %210 = arith.addf %208, %209 : vector<8x32xf32>
    %211 = math.tanh %210 : vector<8x32xf32>
    %212 = arith.mulf %207, %211 : vector<8x32xf32>
    %c2_i32 = arith.constant 2 : i32
    %213 = vector.broadcast %c2_i32 : i32 to vector<8x1xi32>
    %214 = arith.cmpi eq, %1, %213 : vector<8x1xi32>
    %215 = vector.shape_cast %214 : vector<8x1xi1> to vector<8x1xi1>
    %216 = vector.broadcast %215 : vector<8x1xi1> to vector<8x32xi1>
    %217 = arith.select %216, %212, %151 : vector<8x32xi1>, vector<8x32xf32>
    %218 = vector.extract_strided_slice %14 {offsets = [3, 0, 0], sizes = [1, 8, 128], strides = [1, 1, 1]} : vector<8x8x128xf32> to vector<1x8x128xf32>
    %219 = vector.shape_cast %218 : vector<1x8x128xf32> to vector<8x128xf32>
    %c0_57 = arith.constant 0 : index
    %c0_58 = arith.constant 0 : index
    %220 = vector.load %arg4[%c0_57, %c0_58] : memref<32x128xf32, #tpu.memory_space<vmem>>, vector<32x128xf32>
    %cst_59 = arith.constant dense<0.000000e+00> : vector<8x128xf32>
    %221 = tpu.matmul %181, %220, %cst_59 {dimension_numbers = #tpu.dot_dimension_numbers<[1], [0], [0], [1], [0, 0, 1, 1], [], []>} : vector<8x32xf32>, vector<32x128xf32>, vector<8x128xf32> -> vector<8x128xf32>
    %222 = arith.addf %219, %221 : vector<8x128xf32>
    %223 = vector.extract_strided_slice %222 {offsets = [0, 0], sizes = [8, 32], strides = [1, 1]} : vector<8x128xf32> to vector<8x32xf32>
    %224 = arith.negf %223 : vector<8x32xf32>
    %225 = math.exp %224 : vector<8x32xf32>
    %cst_60 = arith.constant 1.000000e+00 : f32
    %226 = vector.broadcast %cst_60 : f32 to vector<8x32xf32>
    %227 = arith.addf %226, %225 : vector<8x32xf32>
    %228 = arith.divf %226, %227 : vector<8x32xf32>
    %229 = vector.extract_strided_slice %222 {offsets = [0, 32], sizes = [8, 32], strides = [1, 1]} : vector<8x128xf32> to vector<8x32xf32>
    %230 = arith.negf %229 : vector<8x32xf32>
    %231 = math.exp %230 : vector<8x32xf32>
    %cst_61 = arith.constant 1.000000e+00 : f32
    %232 = vector.broadcast %cst_61 : f32 to vector<8x32xf32>
    %233 = arith.addf %232, %231 : vector<8x32xf32>
    %234 = arith.divf %232, %233 : vector<8x32xf32>
    %235 = vector.extract_strided_slice %222 {offsets = [0, 64], sizes = [8, 32], strides = [1, 1]} : vector<8x128xf32> to vector<8x32xf32>
    %236 = math.tanh %235 : vector<8x32xf32>
    %237 = vector.extract_strided_slice %222 {offsets = [0, 96], sizes = [8, 32], strides = [1, 1]} : vector<8x128xf32> to vector<8x32xf32>
    %238 = arith.negf %237 : vector<8x32xf32>
    %239 = math.exp %238 : vector<8x32xf32>
    %cst_62 = arith.constant 1.000000e+00 : f32
    %240 = vector.broadcast %cst_62 : f32 to vector<8x32xf32>
    %241 = arith.addf %240, %239 : vector<8x32xf32>
    %242 = arith.divf %240, %241 : vector<8x32xf32>
    %243 = arith.mulf %234, %179 : vector<8x32xf32>
    %244 = arith.mulf %228, %236 : vector<8x32xf32>
    %245 = arith.addf %243, %244 : vector<8x32xf32>
    %246 = math.tanh %245 : vector<8x32xf32>
    %247 = arith.mulf %242, %246 : vector<8x32xf32>
    %248 = tpu.concatenate %247, %212 in 1 : vector<8x32xf32>, vector<8x32xf32> -> vector<8x64xf32>
    %c0_63 = arith.constant 0 : index
    %c0_64 = arith.constant 0 : index
    %249 = vector.load %arg6[%c0_63, %c0_64] : memref<64x128xf32, #tpu.memory_space<vmem>>, vector<64x128xf32>
    %cst_65 = arith.constant dense<0.000000e+00> : vector<8x128xf32>
    %250 = tpu.matmul %248, %249, %cst_65 {dimension_numbers = #tpu.dot_dimension_numbers<[1], [0], [0], [1], [0, 0, 1, 1], [], []>} : vector<8x64xf32>, vector<64x128xf32>, vector<8x128xf32> -> vector<8x128xf32>
    %c0_66 = arith.constant 0 : index
    %c0_67 = arith.constant 0 : index
    %251 = vector.load %arg7[%c0_66, %c0_67] : memref<1x128xf32, #tpu.memory_space<vmem>>, vector<1x128xf32>
    %252 = vector.broadcast %251 : vector<1x128xf32> to vector<8x128xf32>
    %253 = arith.addf %250, %252 : vector<8x128xf32>
    %254 = vector.extract_strided_slice %253 {offsets = [0, 0], sizes = [8, 32], strides = [1, 1]} : vector<8x128xf32> to vector<8x32xf32>
    %255 = arith.negf %254 : vector<8x32xf32>
    %256 = math.exp %255 : vector<8x32xf32>
    %cst_68 = arith.constant 1.000000e+00 : f32
    %257 = vector.broadcast %cst_68 : f32 to vector<8x32xf32>
    %258 = arith.addf %257, %256 : vector<8x32xf32>
    %259 = arith.divf %257, %258 : vector<8x32xf32>
    %260 = vector.extract_strided_slice %253 {offsets = [0, 32], sizes = [8, 32], strides = [1, 1]} : vector<8x128xf32> to vector<8x32xf32>
    %261 = arith.negf %260 : vector<8x32xf32>
    %262 = math.exp %261 : vector<8x32xf32>
    %cst_69 = arith.constant 1.000000e+00 : f32
    %263 = vector.broadcast %cst_69 : f32 to vector<8x32xf32>
    %264 = arith.addf %263, %262 : vector<8x32xf32>
    %265 = arith.divf %263, %264 : vector<8x32xf32>
    %266 = vector.extract_strided_slice %253 {offsets = [0, 64], sizes = [8, 32], strides = [1, 1]} : vector<8x128xf32> to vector<8x32xf32>
    %267 = math.tanh %266 : vector<8x32xf32>
    %268 = vector.extract_strided_slice %253 {offsets = [0, 96], sizes = [8, 32], strides = [1, 1]} : vector<8x128xf32> to vector<8x32xf32>
    %269 = arith.negf %268 : vector<8x32xf32>
    %270 = math.exp %269 : vector<8x32xf32>
    %cst_70 = arith.constant 1.000000e+00 : f32
    %271 = vector.broadcast %cst_70 : f32 to vector<8x32xf32>
    %272 = arith.addf %271, %270 : vector<8x32xf32>
    %273 = arith.divf %271, %272 : vector<8x32xf32>
    %274 = arith.mulf %265, %210 : vector<8x32xf32>
    %275 = arith.mulf %259, %267 : vector<8x32xf32>
    %276 = arith.addf %274, %275 : vector<8x32xf32>
    %277 = math.tanh %276 : vector<8x32xf32>
    %278 = arith.mulf %273, %277 : vector<8x32xf32>
    %c3_i32 = arith.constant 3 : i32
    %279 = vector.broadcast %c3_i32 : i32 to vector<8x1xi32>
    %280 = arith.cmpi eq, %1, %279 : vector<8x1xi32>
    %281 = vector.shape_cast %280 : vector<8x1xi1> to vector<8x1xi1>
    %282 = vector.broadcast %281 : vector<8x1xi1> to vector<8x32xi1>
    %283 = arith.select %282, %278, %217 : vector<8x32xi1>, vector<8x32xf32>
    %284 = vector.extract_strided_slice %14 {offsets = [4, 0, 0], sizes = [1, 8, 128], strides = [1, 1, 1]} : vector<8x8x128xf32> to vector<1x8x128xf32>
    %285 = vector.shape_cast %284 : vector<1x8x128xf32> to vector<8x128xf32>
    %c0_71 = arith.constant 0 : index
    %c0_72 = arith.constant 0 : index
    %286 = vector.load %arg4[%c0_71, %c0_72] : memref<32x128xf32, #tpu.memory_space<vmem>>, vector<32x128xf32>
    %cst_73 = arith.constant dense<0.000000e+00> : vector<8x128xf32>
    %287 = tpu.matmul %247, %286, %cst_73 {dimension_numbers = #tpu.dot_dimension_numbers<[1], [0], [0], [1], [0, 0, 1, 1], [], []>} : vector<8x32xf32>, vector<32x128xf32>, vector<8x128xf32> -> vector<8x128xf32>
    %288 = arith.addf %285, %287 : vector<8x128xf32>
    %289 = vector.extract_strided_slice %288 {offsets = [0, 0], sizes = [8, 32], strides = [1, 1]} : vector<8x128xf32> to vector<8x32xf32>
    %290 = arith.negf %289 : vector<8x32xf32>
    %291 = math.exp %290 : vector<8x32xf32>
    %cst_74 = arith.constant 1.000000e+00 : f32
    %292 = vector.broadcast %cst_74 : f32 to vector<8x32xf32>
    %293 = arith.addf %292, %291 : vector<8x32xf32>
    %294 = arith.divf %292, %293 : vector<8x32xf32>
    %295 = vector.extract_strided_slice %288 {offsets = [0, 32], sizes = [8, 32], strides = [1, 1]} : vector<8x128xf32> to vector<8x32xf32>
    %296 = arith.negf %295 : vector<8x32xf32>
    %297 = math.exp %296 : vector<8x32xf32>
    %cst_75 = arith.constant 1.000000e+00 : f32
    %298 = vector.broadcast %cst_75 : f32 to vector<8x32xf32>
    %299 = arith.addf %298, %297 : vector<8x32xf32>
    %300 = arith.divf %298, %299 : vector<8x32xf32>
    %301 = vector.extract_strided_slice %288 {offsets = [0, 64], sizes = [8, 32], strides = [1, 1]} : vector<8x128xf32> to vector<8x32xf32>
    %302 = math.tanh %301 : vector<8x32xf32>
    %303 = vector.extract_strided_slice %288 {offsets = [0, 96], sizes = [8, 32], strides = [1, 1]} : vector<8x128xf32> to vector<8x32xf32>
    %304 = arith.negf %303 : vector<8x32xf32>
    %305 = math.exp %304 : vector<8x32xf32>
    %cst_76 = arith.constant 1.000000e+00 : f32
    %306 = vector.broadcast %cst_76 : f32 to vector<8x32xf32>
    %307 = arith.addf %306, %305 : vector<8x32xf32>
    %308 = arith.divf %306, %307 : vector<8x32xf32>
    %309 = arith.mulf %300, %245 : vector<8x32xf32>
    %310 = arith.mulf %294, %302 : vector<8x32xf32>
    %311 = arith.addf %309, %310 : vector<8x32xf32>
    %312 = math.tanh %311 : vector<8x32xf32>
    %313 = arith.mulf %308, %312 : vector<8x32xf32>
    %314 = tpu.concatenate %313, %278 in 1 : vector<8x32xf32>, vector<8x32xf32> -> vector<8x64xf32>
    %c0_77 = arith.constant 0 : index
    %c0_78 = arith.constant 0 : index
    %315 = vector.load %arg6[%c0_77, %c0_78] : memref<64x128xf32, #tpu.memory_space<vmem>>, vector<64x128xf32>
    %cst_79 = arith.constant dense<0.000000e+00> : vector<8x128xf32>
    %316 = tpu.matmul %314, %315, %cst_79 {dimension_numbers = #tpu.dot_dimension_numbers<[1], [0], [0], [1], [0, 0, 1, 1], [], []>} : vector<8x64xf32>, vector<64x128xf32>, vector<8x128xf32> -> vector<8x128xf32>
    %c0_80 = arith.constant 0 : index
    %c0_81 = arith.constant 0 : index
    %317 = vector.load %arg7[%c0_80, %c0_81] : memref<1x128xf32, #tpu.memory_space<vmem>>, vector<1x128xf32>
    %318 = vector.broadcast %317 : vector<1x128xf32> to vector<8x128xf32>
    %319 = arith.addf %316, %318 : vector<8x128xf32>
    %320 = vector.extract_strided_slice %319 {offsets = [0, 0], sizes = [8, 32], strides = [1, 1]} : vector<8x128xf32> to vector<8x32xf32>
    %321 = arith.negf %320 : vector<8x32xf32>
    %322 = math.exp %321 : vector<8x32xf32>
    %cst_82 = arith.constant 1.000000e+00 : f32
    %323 = vector.broadcast %cst_82 : f32 to vector<8x32xf32>
    %324 = arith.addf %323, %322 : vector<8x32xf32>
    %325 = arith.divf %323, %324 : vector<8x32xf32>
    %326 = vector.extract_strided_slice %319 {offsets = [0, 32], sizes = [8, 32], strides = [1, 1]} : vector<8x128xf32> to vector<8x32xf32>
    %327 = arith.negf %326 : vector<8x32xf32>
    %328 = math.exp %327 : vector<8x32xf32>
    %cst_83 = arith.constant 1.000000e+00 : f32
    %329 = vector.broadcast %cst_83 : f32 to vector<8x32xf32>
    %330 = arith.addf %329, %328 : vector<8x32xf32>
    %331 = arith.divf %329, %330 : vector<8x32xf32>
    %332 = vector.extract_strided_slice %319 {offsets = [0, 64], sizes = [8, 32], strides = [1, 1]} : vector<8x128xf32> to vector<8x32xf32>
    %333 = math.tanh %332 : vector<8x32xf32>
    %334 = vector.extract_strided_slice %319 {offsets = [0, 96], sizes = [8, 32], strides = [1, 1]} : vector<8x128xf32> to vector<8x32xf32>
    %335 = arith.negf %334 : vector<8x32xf32>
    %336 = math.exp %335 : vector<8x32xf32>
    %cst_84 = arith.constant 1.000000e+00 : f32
    %337 = vector.broadcast %cst_84 : f32 to vector<8x32xf32>
    %338 = arith.addf %337, %336 : vector<8x32xf32>
    %339 = arith.divf %337, %338 : vector<8x32xf32>
    %340 = arith.mulf %331, %276 : vector<8x32xf32>
    %341 = arith.mulf %325, %333 : vector<8x32xf32>
    %342 = arith.addf %340, %341 : vector<8x32xf32>
    %343 = math.tanh %342 : vector<8x32xf32>
    %344 = arith.mulf %339, %343 : vector<8x32xf32>
    %c4_i32 = arith.constant 4 : i32
    %345 = vector.broadcast %c4_i32 : i32 to vector<8x1xi32>
    %346 = arith.cmpi eq, %1, %345 : vector<8x1xi32>
    %347 = vector.shape_cast %346 : vector<8x1xi1> to vector<8x1xi1>
    %348 = vector.broadcast %347 : vector<8x1xi1> to vector<8x32xi1>
    %349 = arith.select %348, %344, %283 : vector<8x32xi1>, vector<8x32xf32>
    %350 = vector.extract_strided_slice %14 {offsets = [5, 0, 0], sizes = [1, 8, 128], strides = [1, 1, 1]} : vector<8x8x128xf32> to vector<1x8x128xf32>
    %351 = vector.shape_cast %350 : vector<1x8x128xf32> to vector<8x128xf32>
    %c0_85 = arith.constant 0 : index
    %c0_86 = arith.constant 0 : index
    %352 = vector.load %arg4[%c0_85, %c0_86] : memref<32x128xf32, #tpu.memory_space<vmem>>, vector<32x128xf32>
    %cst_87 = arith.constant dense<0.000000e+00> : vector<8x128xf32>
    %353 = tpu.matmul %313, %352, %cst_87 {dimension_numbers = #tpu.dot_dimension_numbers<[1], [0], [0], [1], [0, 0, 1, 1], [], []>} : vector<8x32xf32>, vector<32x128xf32>, vector<8x128xf32> -> vector<8x128xf32>
    %354 = arith.addf %351, %353 : vector<8x128xf32>
    %355 = vector.extract_strided_slice %354 {offsets = [0, 0], sizes = [8, 32], strides = [1, 1]} : vector<8x128xf32> to vector<8x32xf32>
    %356 = arith.negf %355 : vector<8x32xf32>
    %357 = math.exp %356 : vector<8x32xf32>
    %cst_88 = arith.constant 1.000000e+00 : f32
    %358 = vector.broadcast %cst_88 : f32 to vector<8x32xf32>
    %359 = arith.addf %358, %357 : vector<8x32xf32>
    %360 = arith.divf %358, %359 : vector<8x32xf32>
    %361 = vector.extract_strided_slice %354 {offsets = [0, 32], sizes = [8, 32], strides = [1, 1]} : vector<8x128xf32> to vector<8x32xf32>
    %362 = arith.negf %361 : vector<8x32xf32>
    %363 = math.exp %362 : vector<8x32xf32>
    %cst_89 = arith.constant 1.000000e+00 : f32
    %364 = vector.broadcast %cst_89 : f32 to vector<8x32xf32>
    %365 = arith.addf %364, %363 : vector<8x32xf32>
    %366 = arith.divf %364, %365 : vector<8x32xf32>
    %367 = vector.extract_strided_slice %354 {offsets = [0, 64], sizes = [8, 32], strides = [1, 1]} : vector<8x128xf32> to vector<8x32xf32>
    %368 = math.tanh %367 : vector<8x32xf32>
    %369 = vector.extract_strided_slice %354 {offsets = [0, 96], sizes = [8, 32], strides = [1, 1]} : vector<8x128xf32> to vector<8x32xf32>
    %370 = arith.negf %369 : vector<8x32xf32>
    %371 = math.exp %370 : vector<8x32xf32>
    %cst_90 = arith.constant 1.000000e+00 : f32
    %372 = vector.broadcast %cst_90 : f32 to vector<8x32xf32>
    %373 = arith.addf %372, %371 : vector<8x32xf32>
    %374 = arith.divf %372, %373 : vector<8x32xf32>
    %375 = arith.mulf %366, %311 : vector<8x32xf32>
    %376 = arith.mulf %360, %368 : vector<8x32xf32>
    %377 = arith.addf %375, %376 : vector<8x32xf32>
    %378 = math.tanh %377 : vector<8x32xf32>
    %379 = arith.mulf %374, %378 : vector<8x32xf32>
    %380 = tpu.concatenate %379, %344 in 1 : vector<8x32xf32>, vector<8x32xf32> -> vector<8x64xf32>
    %c0_91 = arith.constant 0 : index
    %c0_92 = arith.constant 0 : index
    %381 = vector.load %arg6[%c0_91, %c0_92] : memref<64x128xf32, #tpu.memory_space<vmem>>, vector<64x128xf32>
    %cst_93 = arith.constant dense<0.000000e+00> : vector<8x128xf32>
    %382 = tpu.matmul %380, %381, %cst_93 {dimension_numbers = #tpu.dot_dimension_numbers<[1], [0], [0], [1], [0, 0, 1, 1], [], []>} : vector<8x64xf32>, vector<64x128xf32>, vector<8x128xf32> -> vector<8x128xf32>
    %c0_94 = arith.constant 0 : index
    %c0_95 = arith.constant 0 : index
    %383 = vector.load %arg7[%c0_94, %c0_95] : memref<1x128xf32, #tpu.memory_space<vmem>>, vector<1x128xf32>
    %384 = vector.broadcast %383 : vector<1x128xf32> to vector<8x128xf32>
    %385 = arith.addf %382, %384 : vector<8x128xf32>
    %386 = vector.extract_strided_slice %385 {offsets = [0, 0], sizes = [8, 32], strides = [1, 1]} : vector<8x128xf32> to vector<8x32xf32>
    %387 = arith.negf %386 : vector<8x32xf32>
    %388 = math.exp %387 : vector<8x32xf32>
    %cst_96 = arith.constant 1.000000e+00 : f32
    %389 = vector.broadcast %cst_96 : f32 to vector<8x32xf32>
    %390 = arith.addf %389, %388 : vector<8x32xf32>
    %391 = arith.divf %389, %390 : vector<8x32xf32>
    %392 = vector.extract_strided_slice %385 {offsets = [0, 32], sizes = [8, 32], strides = [1, 1]} : vector<8x128xf32> to vector<8x32xf32>
    %393 = arith.negf %392 : vector<8x32xf32>
    %394 = math.exp %393 : vector<8x32xf32>
    %cst_97 = arith.constant 1.000000e+00 : f32
    %395 = vector.broadcast %cst_97 : f32 to vector<8x32xf32>
    %396 = arith.addf %395, %394 : vector<8x32xf32>
    %397 = arith.divf %395, %396 : vector<8x32xf32>
    %398 = vector.extract_strided_slice %385 {offsets = [0, 64], sizes = [8, 32], strides = [1, 1]} : vector<8x128xf32> to vector<8x32xf32>
    %399 = math.tanh %398 : vector<8x32xf32>
    %400 = vector.extract_strided_slice %385 {offsets = [0, 96], sizes = [8, 32], strides = [1, 1]} : vector<8x128xf32> to vector<8x32xf32>
    %401 = arith.negf %400 : vector<8x32xf32>
    %402 = math.exp %401 : vector<8x32xf32>
    %cst_98 = arith.constant 1.000000e+00 : f32
    %403 = vector.broadcast %cst_98 : f32 to vector<8x32xf32>
    %404 = arith.addf %403, %402 : vector<8x32xf32>
    %405 = arith.divf %403, %404 : vector<8x32xf32>
    %406 = arith.mulf %397, %342 : vector<8x32xf32>
    %407 = arith.mulf %391, %399 : vector<8x32xf32>
    %408 = arith.addf %406, %407 : vector<8x32xf32>
    %409 = math.tanh %408 : vector<8x32xf32>
    %410 = arith.mulf %405, %409 : vector<8x32xf32>
    %c5_i32 = arith.constant 5 : i32
    %411 = vector.broadcast %c5_i32 : i32 to vector<8x1xi32>
    %412 = arith.cmpi eq, %1, %411 : vector<8x1xi32>
    %413 = vector.shape_cast %412 : vector<8x1xi1> to vector<8x1xi1>
    %414 = vector.broadcast %413 : vector<8x1xi1> to vector<8x32xi1>
    %415 = arith.select %414, %410, %349 : vector<8x32xi1>, vector<8x32xf32>
    %416 = vector.extract_strided_slice %14 {offsets = [6, 0, 0], sizes = [1, 8, 128], strides = [1, 1, 1]} : vector<8x8x128xf32> to vector<1x8x128xf32>
    %417 = vector.shape_cast %416 : vector<1x8x128xf32> to vector<8x128xf32>
    %c0_99 = arith.constant 0 : index
    %c0_100 = arith.constant 0 : index
    %418 = vector.load %arg4[%c0_99, %c0_100] : memref<32x128xf32, #tpu.memory_space<vmem>>, vector<32x128xf32>
    %cst_101 = arith.constant dense<0.000000e+00> : vector<8x128xf32>
    %419 = tpu.matmul %379, %418, %cst_101 {dimension_numbers = #tpu.dot_dimension_numbers<[1], [0], [0], [1], [0, 0, 1, 1], [], []>} : vector<8x32xf32>, vector<32x128xf32>, vector<8x128xf32> -> vector<8x128xf32>
    %420 = arith.addf %417, %419 : vector<8x128xf32>
    %421 = vector.extract_strided_slice %420 {offsets = [0, 0], sizes = [8, 32], strides = [1, 1]} : vector<8x128xf32> to vector<8x32xf32>
    %422 = arith.negf %421 : vector<8x32xf32>
    %423 = math.exp %422 : vector<8x32xf32>
    %cst_102 = arith.constant 1.000000e+00 : f32
    %424 = vector.broadcast %cst_102 : f32 to vector<8x32xf32>
    %425 = arith.addf %424, %423 : vector<8x32xf32>
    %426 = arith.divf %424, %425 : vector<8x32xf32>
    %427 = vector.extract_strided_slice %420 {offsets = [0, 32], sizes = [8, 32], strides = [1, 1]} : vector<8x128xf32> to vector<8x32xf32>
    %428 = arith.negf %427 : vector<8x32xf32>
    %429 = math.exp %428 : vector<8x32xf32>
    %cst_103 = arith.constant 1.000000e+00 : f32
    %430 = vector.broadcast %cst_103 : f32 to vector<8x32xf32>
    %431 = arith.addf %430, %429 : vector<8x32xf32>
    %432 = arith.divf %430, %431 : vector<8x32xf32>
    %433 = vector.extract_strided_slice %420 {offsets = [0, 64], sizes = [8, 32], strides = [1, 1]} : vector<8x128xf32> to vector<8x32xf32>
    %434 = math.tanh %433 : vector<8x32xf32>
    %435 = vector.extract_strided_slice %420 {offsets = [0, 96], sizes = [8, 32], strides = [1, 1]} : vector<8x128xf32> to vector<8x32xf32>
    %436 = arith.negf %435 : vector<8x32xf32>
    %437 = math.exp %436 : vector<8x32xf32>
    %cst_104 = arith.constant 1.000000e+00 : f32
    %438 = vector.broadcast %cst_104 : f32 to vector<8x32xf32>
    %439 = arith.addf %438, %437 : vector<8x32xf32>
    %440 = arith.divf %438, %439 : vector<8x32xf32>
    %441 = arith.mulf %432, %377 : vector<8x32xf32>
    %442 = arith.mulf %426, %434 : vector<8x32xf32>
    %443 = arith.addf %441, %442 : vector<8x32xf32>
    %444 = math.tanh %443 : vector<8x32xf32>
    %445 = arith.mulf %440, %444 : vector<8x32xf32>
    %446 = tpu.concatenate %445, %410 in 1 : vector<8x32xf32>, vector<8x32xf32> -> vector<8x64xf32>
    %c0_105 = arith.constant 0 : index
    %c0_106 = arith.constant 0 : index
    %447 = vector.load %arg6[%c0_105, %c0_106] : memref<64x128xf32, #tpu.memory_space<vmem>>, vector<64x128xf32>
    %cst_107 = arith.constant dense<0.000000e+00> : vector<8x128xf32>
    %448 = tpu.matmul %446, %447, %cst_107 {dimension_numbers = #tpu.dot_dimension_numbers<[1], [0], [0], [1], [0, 0, 1, 1], [], []>} : vector<8x64xf32>, vector<64x128xf32>, vector<8x128xf32> -> vector<8x128xf32>
    %c0_108 = arith.constant 0 : index
    %c0_109 = arith.constant 0 : index
    %449 = vector.load %arg7[%c0_108, %c0_109] : memref<1x128xf32, #tpu.memory_space<vmem>>, vector<1x128xf32>
    %450 = vector.broadcast %449 : vector<1x128xf32> to vector<8x128xf32>
    %451 = arith.addf %448, %450 : vector<8x128xf32>
    %452 = vector.extract_strided_slice %451 {offsets = [0, 0], sizes = [8, 32], strides = [1, 1]} : vector<8x128xf32> to vector<8x32xf32>
    %453 = arith.negf %452 : vector<8x32xf32>
    %454 = math.exp %453 : vector<8x32xf32>
    %cst_110 = arith.constant 1.000000e+00 : f32
    %455 = vector.broadcast %cst_110 : f32 to vector<8x32xf32>
    %456 = arith.addf %455, %454 : vector<8x32xf32>
    %457 = arith.divf %455, %456 : vector<8x32xf32>
    %458 = vector.extract_strided_slice %451 {offsets = [0, 32], sizes = [8, 32], strides = [1, 1]} : vector<8x128xf32> to vector<8x32xf32>
    %459 = arith.negf %458 : vector<8x32xf32>
    %460 = math.exp %459 : vector<8x32xf32>
    %cst_111 = arith.constant 1.000000e+00 : f32
    %461 = vector.broadcast %cst_111 : f32 to vector<8x32xf32>
    %462 = arith.addf %461, %460 : vector<8x32xf32>
    %463 = arith.divf %461, %462 : vector<8x32xf32>
    %464 = vector.extract_strided_slice %451 {offsets = [0, 64], sizes = [8, 32], strides = [1, 1]} : vector<8x128xf32> to vector<8x32xf32>
    %465 = math.tanh %464 : vector<8x32xf32>
    %466 = vector.extract_strided_slice %451 {offsets = [0, 96], sizes = [8, 32], strides = [1, 1]} : vector<8x128xf32> to vector<8x32xf32>
    %467 = arith.negf %466 : vector<8x32xf32>
    %468 = math.exp %467 : vector<8x32xf32>
    %cst_112 = arith.constant 1.000000e+00 : f32
    %469 = vector.broadcast %cst_112 : f32 to vector<8x32xf32>
    %470 = arith.addf %469, %468 : vector<8x32xf32>
    %471 = arith.divf %469, %470 : vector<8x32xf32>
    %472 = arith.mulf %463, %408 : vector<8x32xf32>
    %473 = arith.mulf %457, %465 : vector<8x32xf32>
    %474 = arith.addf %472, %473 : vector<8x32xf32>
    %475 = math.tanh %474 : vector<8x32xf32>
    %476 = arith.mulf %471, %475 : vector<8x32xf32>
    %c6_i32 = arith.constant 6 : i32
    %477 = vector.broadcast %c6_i32 : i32 to vector<8x1xi32>
    %478 = arith.cmpi eq, %1, %477 : vector<8x1xi32>
    %479 = vector.shape_cast %478 : vector<8x1xi1> to vector<8x1xi1>
    %480 = vector.broadcast %479 : vector<8x1xi1> to vector<8x32xi1>
    %481 = arith.select %480, %476, %415 : vector<8x32xi1>, vector<8x32xf32>
    %482 = vector.extract_strided_slice %14 {offsets = [7, 0, 0], sizes = [1, 8, 128], strides = [1, 1, 1]} : vector<8x8x128xf32> to vector<1x8x128xf32>
    %483 = vector.shape_cast %482 : vector<1x8x128xf32> to vector<8x128xf32>
    %c0_113 = arith.constant 0 : index
    %c0_114 = arith.constant 0 : index
    %484 = vector.load %arg4[%c0_113, %c0_114] : memref<32x128xf32, #tpu.memory_space<vmem>>, vector<32x128xf32>
    %cst_115 = arith.constant dense<0.000000e+00> : vector<8x128xf32>
    %485 = tpu.matmul %445, %484, %cst_115 {dimension_numbers = #tpu.dot_dimension_numbers<[1], [0], [0], [1], [0, 0, 1, 1], [], []>} : vector<8x32xf32>, vector<32x128xf32>, vector<8x128xf32> -> vector<8x128xf32>
    %486 = arith.addf %483, %485 : vector<8x128xf32>
    %487 = vector.extract_strided_slice %486 {offsets = [0, 0], sizes = [8, 32], strides = [1, 1]} : vector<8x128xf32> to vector<8x32xf32>
    %488 = arith.negf %487 : vector<8x32xf32>
    %489 = math.exp %488 : vector<8x32xf32>
    %cst_116 = arith.constant 1.000000e+00 : f32
    %490 = vector.broadcast %cst_116 : f32 to vector<8x32xf32>
    %491 = arith.addf %490, %489 : vector<8x32xf32>
    %492 = arith.divf %490, %491 : vector<8x32xf32>
    %493 = vector.extract_strided_slice %486 {offsets = [0, 32], sizes = [8, 32], strides = [1, 1]} : vector<8x128xf32> to vector<8x32xf32>
    %494 = arith.negf %493 : vector<8x32xf32>
    %495 = math.exp %494 : vector<8x32xf32>
    %cst_117 = arith.constant 1.000000e+00 : f32
    %496 = vector.broadcast %cst_117 : f32 to vector<8x32xf32>
    %497 = arith.addf %496, %495 : vector<8x32xf32>
    %498 = arith.divf %496, %497 : vector<8x32xf32>
    %499 = vector.extract_strided_slice %486 {offsets = [0, 64], sizes = [8, 32], strides = [1, 1]} : vector<8x128xf32> to vector<8x32xf32>
    %500 = math.tanh %499 : vector<8x32xf32>
    %501 = vector.extract_strided_slice %486 {offsets = [0, 96], sizes = [8, 32], strides = [1, 1]} : vector<8x128xf32> to vector<8x32xf32>
    %502 = arith.negf %501 : vector<8x32xf32>
    %503 = math.exp %502 : vector<8x32xf32>
    %cst_118 = arith.constant 1.000000e+00 : f32
    %504 = vector.broadcast %cst_118 : f32 to vector<8x32xf32>
    %505 = arith.addf %504, %503 : vector<8x32xf32>
    %506 = arith.divf %504, %505 : vector<8x32xf32>
    %507 = arith.mulf %498, %443 : vector<8x32xf32>
    %508 = arith.mulf %492, %500 : vector<8x32xf32>
    %509 = arith.addf %507, %508 : vector<8x32xf32>
    %510 = math.tanh %509 : vector<8x32xf32>
    %511 = arith.mulf %506, %510 : vector<8x32xf32>
    %512 = tpu.concatenate %511, %476 in 1 : vector<8x32xf32>, vector<8x32xf32> -> vector<8x64xf32>
    %c0_119 = arith.constant 0 : index
    %c0_120 = arith.constant 0 : index
    %513 = vector.load %arg6[%c0_119, %c0_120] : memref<64x128xf32, #tpu.memory_space<vmem>>, vector<64x128xf32>
    %cst_121 = arith.constant dense<0.000000e+00> : vector<8x128xf32>
    %514 = tpu.matmul %512, %513, %cst_121 {dimension_numbers = #tpu.dot_dimension_numbers<[1], [0], [0], [1], [0, 0, 1, 1], [], []>} : vector<8x64xf32>, vector<64x128xf32>, vector<8x128xf32> -> vector<8x128xf32>
    %c0_122 = arith.constant 0 : index
    %c0_123 = arith.constant 0 : index
    %515 = vector.load %arg7[%c0_122, %c0_123] : memref<1x128xf32, #tpu.memory_space<vmem>>, vector<1x128xf32>
    %516 = vector.broadcast %515 : vector<1x128xf32> to vector<8x128xf32>
    %517 = arith.addf %514, %516 : vector<8x128xf32>
    %518 = vector.extract_strided_slice %517 {offsets = [0, 0], sizes = [8, 32], strides = [1, 1]} : vector<8x128xf32> to vector<8x32xf32>
    %519 = arith.negf %518 : vector<8x32xf32>
    %520 = math.exp %519 : vector<8x32xf32>
    %cst_124 = arith.constant 1.000000e+00 : f32
    %521 = vector.broadcast %cst_124 : f32 to vector<8x32xf32>
    %522 = arith.addf %521, %520 : vector<8x32xf32>
    %523 = arith.divf %521, %522 : vector<8x32xf32>
    %524 = vector.extract_strided_slice %517 {offsets = [0, 32], sizes = [8, 32], strides = [1, 1]} : vector<8x128xf32> to vector<8x32xf32>
    %525 = arith.negf %524 : vector<8x32xf32>
    %526 = math.exp %525 : vector<8x32xf32>
    %cst_125 = arith.constant 1.000000e+00 : f32
    %527 = vector.broadcast %cst_125 : f32 to vector<8x32xf32>
    %528 = arith.addf %527, %526 : vector<8x32xf32>
    %529 = arith.divf %527, %528 : vector<8x32xf32>
    %530 = vector.extract_strided_slice %517 {offsets = [0, 64], sizes = [8, 32], strides = [1, 1]} : vector<8x128xf32> to vector<8x32xf32>
    %531 = math.tanh %530 : vector<8x32xf32>
    %532 = vector.extract_strided_slice %517 {offsets = [0, 96], sizes = [8, 32], strides = [1, 1]} : vector<8x128xf32> to vector<8x32xf32>
    %533 = arith.negf %532 : vector<8x32xf32>
    %534 = math.exp %533 : vector<8x32xf32>
    %cst_126 = arith.constant 1.000000e+00 : f32
    %535 = vector.broadcast %cst_126 : f32 to vector<8x32xf32>
    %536 = arith.addf %535, %534 : vector<8x32xf32>
    %537 = arith.divf %535, %536 : vector<8x32xf32>
    %538 = arith.mulf %529, %474 : vector<8x32xf32>
    %539 = arith.mulf %523, %531 : vector<8x32xf32>
    %540 = arith.addf %538, %539 : vector<8x32xf32>
    %541 = math.tanh %540 : vector<8x32xf32>
    %542 = arith.mulf %537, %541 : vector<8x32xf32>
    %c7_i32 = arith.constant 7 : i32
    %543 = vector.broadcast %c7_i32 : i32 to vector<8x1xi32>
    %544 = arith.cmpi eq, %1, %543 : vector<8x1xi32>
    %545 = vector.shape_cast %544 : vector<8x1xi1> to vector<8x1xi1>
    %546 = vector.broadcast %545 : vector<8x1xi1> to vector<8x32xi1>
    %547 = arith.select %546, %542, %481 : vector<8x32xi1>, vector<8x32xf32>
    %c0_127 = arith.constant 0 : index
    %c0_128 = arith.constant 0 : index
    %548 = vector.load %arg8[%c0_127, %c0_128] : memref<32x64xf32, #tpu.memory_space<vmem>>, vector<32x64xf32>
    %cst_129 = arith.constant dense<0.000000e+00> : vector<8x64xf32>
    %549 = tpu.matmul %547, %548, %cst_129 {dimension_numbers = #tpu.dot_dimension_numbers<[1], [0], [0], [1], [0, 0, 1, 1], [], []>} : vector<8x32xf32>, vector<32x64xf32>, vector<8x64xf32> -> vector<8x64xf32>
    %c0_130 = arith.constant 0 : index
    %c0_131 = arith.constant 0 : index
    %550 = vector.load %arg9[%c0_130, %c0_131] : memref<1x64xf32, #tpu.memory_space<vmem>>, vector<1x64xf32>
    %551 = vector.broadcast %550 : vector<1x64xf32> to vector<8x64xf32>
    %552 = arith.addf %549, %551 : vector<8x64xf32>
    %cst_132 = arith.constant 0.000000e+00 : f32
    %553 = vector.broadcast %cst_132 : f32 to vector<8x64xf32>
    %554 = arith.maximumf %552, %553 : vector<8x64xf32>
    %c0_133 = arith.constant 0 : index
    %c0_134 = arith.constant 0 : index
    %555 = vector.load %arg10[%c0_133, %c0_134] : memref<64x16xf32, #tpu.memory_space<vmem>>, vector<64x16xf32>
    %cst_135 = arith.constant dense<0.000000e+00> : vector<8x16xf32>
    %556 = tpu.matmul %554, %555, %cst_135 {dimension_numbers = #tpu.dot_dimension_numbers<[1], [0], [0], [1], [0, 0, 1, 1], [], []>} : vector<8x64xf32>, vector<64x16xf32>, vector<8x16xf32> -> vector<8x16xf32>
    %c0_136 = arith.constant 0 : index
    %c0_137 = arith.constant 0 : index
    %557 = vector.load %arg11[%c0_136, %c0_137] : memref<1x16xf32, #tpu.memory_space<vmem>>, vector<1x16xf32>
    %558 = vector.broadcast %557 : vector<1x16xf32> to vector<8x16xf32>
    %559 = arith.addf %556, %558 : vector<8x16xf32>
    %c0_138 = arith.constant 0 : index
    %c0_139 = arith.constant 0 : index
    %560 = vector.load %arg12[%c0_138, %c0_139] : memref<8x16xf32, #tpu.memory_space<vmem>>, vector<8x16xf32>
    tpu.vector_store %arg12[%c0_138, %c0_139], %559 {strides = array<i32>} : memref<8x16xf32, #tpu.memory_space<vmem>>, vector<8x16xf32>,
    return
  }
}

</mosaic_0001>

<llo_original>
// kernel: tpu_custom_call.1
$region0: #{tpu_custom_call.1}
  #allocation0 [shape = 'u32[]', space=smem, size = 0x4, offset = 0x4, fixed_abs, tag = 'smem constant byte address 0x4 - core index']
  #allocation1 [shape = 'u32[144,128]{1,0:T(1,128)}', space=vmem, size = 0x12000, scoped, tag = 'internal scratch']
  %s0 = inlined_call_operand.vmem [shape: s32[64,1], index: 0, kind: input, shape index: {}]
  %s1 = inlined_call_operand.vmem [shape: s32[8,1], index: 1, kind: input, shape index: {}]
  %s2 = inlined_call_operand.vmem [shape: f32[32,32], index: 2, kind: input, shape index: {}]
  %s3 = inlined_call_operand.vmem [shape: f32[32,128], index: 3, kind: input, shape index: {}]
  %s4 = inlined_call_operand.vmem [shape: f32[32,128], index: 4, kind: input, shape index: {}]
  %s5 = inlined_call_operand.hbm [shape: f32[1,128], index: 5, kind: input, shape index: {}]
  %s6 = inlined_call_operand.vmem [shape: f32[64,128], index: 6, kind: input, shape index: {}]
  %s7 = inlined_call_operand.vmem [shape: f32[1,128], index: 7, kind: input, shape index: {}]
  %s8 = inlined_call_operand.hbm [shape: f32[32,64], index: 8, kind: input, shape index: {}]
  %s9 = inlined_call_operand.vmem [shape: f32[1,64], index: 9, kind: input, shape index: {}]
  %s10 = inlined_call_operand.vmem [shape: f32[64,16], index: 10, kind: input, shape index: {}]
  %s11 = inlined_call_operand.vmem [shape: f32[1,16], index: 11, kind: input, shape index: {}]
  %s12 = inlined_call_operand.hbm [shape: f32[8,16], index: 12, kind: output, shape index: {}]
  %s13 = sld [smem:[#allocation0]]
  $region66: #{tpu_custom_call.1} parent=0
    _
  %s15 = ssub.s32 1, %s13
  %s16 = scalar_select 0, %s15, %s13
  $region1: #{tpu_custom_call.1} parent=0
    #allocation2 [shape = 'u8[512]{0}', space=vmem, size = 0x400, scoped, tag = 'input window, operand 5, single buffered']
    #allocation3 [shape = 's32[1]{0}', space=sflag, size = 0x4, scoped, tag = 'scoped memory for tpu_custom_call.1']
    #allocation4 [shape = 's32[1]{0}', space=sflag, size = 0x4, scoped, tag = 'scoped memory for tpu_custom_call.1']
    #allocation5 [shape = 'u8[16384]{0}', space=vmem, size = 0x4000, scoped, tag = 'input window, operand 8, single buffered']
    #allocation6 [shape = 's32[1]{0}', space=sflag, size = 0x4, scoped, tag = 'scoped memory for tpu_custom_call.1']
    #allocation7 [shape = 'u8[4096]{0}', space=vmem, size = 0x1000, scoped, tag = 'output window, operand 0, single buffered']
    %17 = vsyncpa [#allocation3], 0
    %18 = vsyncpa [#allocation6], 0
    %19 = vsyncpa [#allocation4], 0
    // Predicated region
    $region2: #{tpu_custom_call.1} parent=1 // pred_check
      _
    $region3: #{tpu_custom_call.1} parent=1 // pred_check_branch
      %21 = sbr.rel (0) target = $region5
    $region4: #{tpu_custom_call.1} parent=1 // pred_region
      _
    $region5: #{tpu_custom_call.1} parent=1 // pred_fallthru
      _
    // Predicated region
    $region6: #{tpu_custom_call.1} parent=1 // pred_check
      _
    $region7: #{tpu_custom_call.1} parent=1 // pred_check_branch
      %23 = sbr.rel (0) target = $region9
    $region8: #{tpu_custom_call.1} parent=1 // pred_region
      _
    $region9: #{tpu_custom_call.1} parent=1 // pred_fallthru
      _
    // Predicated region
    $region10: #{tpu_custom_call.1} parent=1 // pred_check
      _
    $region11: #{tpu_custom_call.1} parent=1 // pred_check_branch
      %25 = sbr.rel (0) target = $region13
    $region12: #{tpu_custom_call.1} parent=1 // pred_region
      _
    $region13: #{tpu_custom_call.1} parent=1 // pred_fallthru
      _
    // Predicated region
    $region14: #{tpu_custom_call.1} parent=1 // pred_check
      _
    $region15: #{tpu_custom_call.1} parent=1 // pred_check_branch
      %27 = sbr.rel (0) target = $region17
    $region16: #{tpu_custom_call.1} parent=1 // pred_region
      _
    $region17: #{tpu_custom_call.1} parent=1 // pred_fallthru
      _
    // Predicated region
    $region18: #{tpu_custom_call.1} parent=1 // pred_check
      _
    $region19: #{tpu_custom_call.1} parent=1 // pred_check_branch
      %29 = sbr.rel (0) target = $region21
    $region20: #{tpu_custom_call.1} parent=1 // pred_region
      _
    $region21: #{tpu_custom_call.1} parent=1 // pred_fallthru
      _
    // Predicated region
    $region22: #{tpu_custom_call.1} parent=1 // pred_check
      _
    $region23: #{tpu_custom_call.1} parent=1 // pred_check_branch
      %31 = sbr.rel (0) target = $region25
    $region24: #{tpu_custom_call.1} parent=1 // pred_region
      %s33 = ssub.s32 16, 16
      %34 = vsyncadd [#allocation3], %s33
      %s36 = sshll.u32 [#allocation2], 4
      %s37 = int_to_ptr.vmem [resolvable:$true] %s36
      %39 = dma.hbm_to_vmem [thread:$0]  %s5, 16, %s37, [#allocation3]
    $region25: #{tpu_custom_call.1} parent=1 // pred_fallthru
      _
    // Predicated region
    $region26: #{tpu_custom_call.1} parent=1 // pred_check
      _
    $region27: #{tpu_custom_call.1} parent=1 // pred_check_branch
      %41 = sbr.rel (0) target = $region29
    $region28: #{tpu_custom_call.1} parent=1 // pred_region
      _
    $region29: #{tpu_custom_call.1} parent=1 // pred_fallthru
      _
    // Predicated region
    $region30: #{tpu_custom_call.1} parent=1 // pred_check
      _
    $region31: #{tpu_custom_call.1} parent=1 // pred_check_branch
      %43 = sbr.rel (0) target = $region33
    $region32: #{tpu_custom_call.1} parent=1 // pred_region
      _
    $region33: #{tpu_custom_call.1} parent=1 // pred_fallthru
      _
    // Predicated region
    $region34: #{tpu_custom_call.1} parent=1 // pred_check
      _
    $region35: #{tpu_custom_call.1} parent=1 // pred_check_branch
      %45 = sbr.rel (0) target = $region37
    $region36: #{tpu_custom_call.1} parent=1 // pred_region
      %s47 = ssub.s32 512, 512
      %48 = vsyncadd [#allocation6], %s47
      %s49 = sshll.u32 [#allocation5], 4
      %s50 = int_to_ptr.vmem [resolvable:$true] %s49
      %55 = dma.hbm_to_vmem [thread:$0]  %s8, 512, %s50, [#allocation6], 128, 128, 8
    $region37: #{tpu_custom_call.1} parent=1 // pred_fallthru
      _
    // Predicated region
    $region38: #{tpu_custom_call.1} parent=1 // pred_check
      _
    $region39: #{tpu_custom_call.1} parent=1 // pred_check_branch
      %57 = sbr.rel (0) target = $region41
    $region40: #{tpu_custom_call.1} parent=1 // pred_region
      _
    $region41: #{tpu_custom_call.1} parent=1 // pred_fallthru
      _
    // Predicated region
    $region42: #{tpu_custom_call.1} parent=1 // pred_check
      _
    $region43: #{tpu_custom_call.1} parent=1 // pred_check_branch
      %59 = sbr.rel (0) target = $region45
    $region44: #{tpu_custom_call.1} parent=1 // pred_region
      _
    $region45: #{tpu_custom_call.1} parent=1 // pred_fallthru
      _
    // Predicated region
    $region46: #{tpu_custom_call.1} parent=1 // pred_check
      _
    $region47: #{tpu_custom_call.1} parent=1 // pred_check_branch
      %61 = sbr.rel (0) target = $region49
    $region48: #{tpu_custom_call.1} parent=1 // pred_region
      _
    $region49: #{tpu_custom_call.1} parent=1 // pred_fallthru
      _
    // Predicated region
    $region50: #{tpu_custom_call.1} parent=1 // pred_check
      _
    $region51: #{tpu_custom_call.1} parent=1 // pred_check_branch
      %63 = sbr.rel (0) target = $region53
    $region52: #{tpu_custom_call.1} parent=1 // pred_region
      %64 = dma.done [#allocation3], 16
    $region53: #{tpu_custom_call.1} parent=1 // pred_fallthru
      _
    // Predicated region
    $region54: #{tpu_custom_call.1} parent=1 // pred_check
      _
    $region55: #{tpu_custom_call.1} parent=1 // pred_check_branch
      %66 = sbr.rel (0) target = $region57
    $region56: #{tpu_custom_call.1} parent=1 // pred_region
      %67 = dma.done [#allocation6], 512
    $region57: #{tpu_custom_call.1} parent=1 // pred_fallthru
      _
    %v68 = vld [vmem:[%s0] sm:$0xff]
    %v69 = vld [vmem:[%s0 + $0x8] sm:$0xff]
    %v70 = vld [vmem:[%s0 + $0x10] sm:$0xff]
    %v71 = vld [vmem:[%s0 + $0x18] sm:$0xff]
    %v72 = vld [vmem:[%s0 + $0x20] sm:$0xff]
    %v73 = vld [vmem:[%s0 + $0x28] sm:$0xff]
    %v74 = vld [vmem:[%s0 + $0x30] sm:$0xff]
    %v75 = vld [vmem:[%s0 + $0x38] sm:$0xff]
    %v76 = vld [vmem:[%s1] sm:$0xff]
    %v77 = vlaneseq
    %v78 = vand.u32 %v77, 127
    %79 = vset.pattern.permute.xlu0 0
    %80 = vperm.xlu0 %79, %v68
    %v81 = vpop.permute.xlu0 %80
    %82 = vset.pattern.permute.xlu0 0
    %83 = vperm.xlu0 %82, %v69
    %v84 = vpop.permute.xlu0 %83
    %85 = vset.pattern.permute.xlu0 0
    %86 = vperm.xlu0 %85, %v70
    %v87 = vpop.permute.xlu0 %86
    %88 = vset.pattern.permute.xlu0 0
    %89 = vperm.xlu0 %88, %v71
    %v90 = vpop.permute.xlu0 %89
    %91 = vset.pattern.permute.xlu0 0
    %92 = vperm.xlu0 %91, %v72
    %v93 = vpop.permute.xlu0 %92
    %94 = vset.pattern.permute.xlu0 0
    %95 = vperm.xlu0 %94, %v73
    %v96 = vpop.permute.xlu0 %95
    %97 = vset.pattern.permute.xlu0 0
    %98 = vperm.xlu0 %97, %v74
    %v99 = vpop.permute.xlu0 %98
    %100 = vset.pattern.permute.xlu0 0
    %101 = vperm.xlu0 %100, %v75
    %v102 = vpop.permute.xlu0 %101
    %vm103 = vcmp.eq.s32.totalorder %v78, %v81
    %vm104 = vcmp.eq.s32.totalorder %v78, %v84
    %vm105 = vcmp.eq.s32.totalorder %v78, %v87
    %vm106 = vcmp.eq.s32.totalorder %v78, %v90
    %vm107 = vcmp.eq.s32.totalorder %v78, %v93
    %vm108 = vcmp.eq.s32.totalorder %v78, %v96
    %vm109 = vcmp.eq.s32.totalorder %v78, %v99
    %vm110 = vcmp.eq.s32.totalorder %v78, %v102
    %v111 = vsel %vm103, 1, 0
    %v112 = vsel %vm104, 1, 0
    %v113 = vsel %vm105, 1, 0
    %v114 = vsel %vm106, 1, 0
    %v115 = vsel %vm107, 1, 0
    %v116 = vsel %vm108, 1, 0
    %v117 = vsel %vm109, 1, 0
    %v118 = vsel %vm110, 1, 0
    %v119 = vcvt.s32.f32 %v111
    %v120 = vcvt.s32.f32 %v112
    %v121 = vcvt.s32.f32 %v113
    %v122 = vcvt.s32.f32 %v114
    %v123 = vcvt.s32.f32 %v115
    %v124 = vcvt.s32.f32 %v116
    %v125 = vcvt.s32.f32 %v117
    %v126 = vcvt.s32.f32 %v118
    %v127 = vld [vmem:[%s2] sm:$0xff]
    %v128 = vld [vmem:[%s2 + $0x8] sm:$0xff]
    %v129 = vld [vmem:[%s2 + $0x10] sm:$0xff]
    %v130 = vld [vmem:[%s2 + $0x18] sm:$0xff]
    %vm131 = vcmask 261120
    %v133 = vsel %vm131, %v119, 0
    %v136 = vsel %vm131, %v120, 0
    %v139 = vsel %vm131, %v121, 0
    %v142 = vsel %vm131, %v122, 0
    %v145 = vsel %vm131, %v123, 0
    %v148 = vsel %vm131, %v124, 0
    %v151 = vsel %vm131, %v125, 0
    %v154 = vsel %vm131, %v126, 0
    %156 = vmatprep.subr.mxu0 0.0
    %157 = vmatpush1.msra.mxu0 %v127
    %158 = vmatprep.subr.mxu0 0.0
    %159 = vmatpush1.msra.mxu0 %v128
    %160 = vmatprep.subr.mxu0 0.0
    %161 = vmatpush1.msra.mxu0 %v129
    %162 = vmatprep.subr.mxu0 0.0
    %163 = vmatpush1.msra.mxu0 %v130
    %164 = vmatprep.subr.mxu0 0.0
    %165 = vmatpush1.msra.mxu0 0.0
    %166 = vmatprep.subr.mxu0 0.0
    %167 = vmatpush1.msra.mxu0 0.0
    %168 = vmatprep.subr.mxu0 0.0
    %169 = vmatpush1.msra.mxu0 0.0
    %170 = vmatprep.subr.mxu0 0.0
    %171 = vmatpush1.msra.mxu0 0.0
    %172 = vmatprep.subr.mxu0 0.0
    %173 = vmatpush1.msra.mxu0 0.0
    %174 = vmatprep.subr.mxu0 0.0
    %175 = vmatpush1.msra.mxu0 0.0
    %176 = vmatprep.subr.mxu0 0.0
    %177 = vmatpush1.msra.mxu0 0.0
    %178 = vmatprep.subr.mxu0 0.0
    %179 = vmatpush1.msra.mxu0 0.0
    %180 = vmatprep.subr.mxu0 0.0
    %181 = vmatpush1.msra.mxu0 0.0
    %182 = vmatprep.subr.mxu0 0.0
    %183 = vmatpush1.msra.mxu0 0.0
    %184 = vmatprep.subr.mxu0 0.0
    %185 = vmatpush1.msra.mxu0 0.0
    %186 = vmatprep.subr.mxu0 0.0
    %187 = vmatpush1.msra.mxu0 0.0
    %188 = vmatprep.subr.mxu0 0.0
    %189 = vmatpush1.msra.mxu0 0.0
    %190 = vmatprep.subr.mxu0 0.0
    %191 = vmatpush1.msra.mxu0 0.0
    %192 = vmatprep.subr.mxu0 0.0
    %193 = vmatpush1.msra.mxu0 0.0
    %194 = vmatprep.subr.mxu0 0.0
    %195 = vmatpush1.msra.mxu0 0.0
    %196 = vmatprep.subr.mxu0 0.0
    %197 = vmatpush1.msra.mxu0 0.0
    %198 = vmatprep.subr.mxu0 0.0
    %199 = vmatpush1.msra.mxu0 0.0
    %200 = vmatprep.subr.mxu0 0.0
    %201 = vmatpush1.msra.mxu0 0.0
    %202 = vmatprep.subr.mxu0 0.0
    %203 = vmatpush1.msra.mxu0 0.0
    %204 = vmatprep.subr.mxu0 0.0
    %205 = vmatpush1.msra.mxu0 0.0
    %206 = vmatprep.subr.mxu0 0.0
    %207 = vmatpush1.msra.mxu0 0.0
    %208 = vmatprep.subr.mxu0 0.0
    %209 = vmatpush1.msra.mxu0 0.0
    %210 = vmatprep.subr.mxu0 0.0
    %211 = vmatpush1.msra.mxu0 0.0
    %212 = vmatprep.subr.mxu0 0.0
    %213 = vmatpush1.msra.mxu0 0.0
    %214 = vmatprep.subr.mxu0 0.0
    %215 = vmatpush1.msra.mxu0 0.0
    %216 = vmatprep.subr.mxu0 0.0
    %217 = vmatpush1.msra.mxu0 0.0
    %218 = vmatprep.subr.mxu0 0.0
    %219 = vmatpush1.msra.mxu0 0.0
    %220 = vmatprep.mubr.f32.mxu0 0.0
    %221 = vmatmul.mubr.f32.gmra.mrb[0].mxu0 %v133
    %v222 = vpop.f32.mrb[0].mxu0
    %v223 = vadd.f32 0.0, %v222
    %v224 = vpop.f32.mrb[0].mxu0
    %225 = vmatprep.mubr.f32.mxu0 0.0
    %226 = vmatmul.mubr.f32.gmra.mrb[0].mxu0 %v136
    %v227 = vpop.f32.mrb[0].mxu0
    %v228 = vadd.f32 0.0, %v227
    %v229 = vpop.f32.mrb[0].mxu0
    %230 = vmatprep.mubr.f32.mxu0 0.0
    %231 = vmatmul.mubr.f32.gmra.mrb[0].mxu0 %v139
    %v232 = vpop.f32.mrb[0].mxu0
    %v233 = vadd.f32 0.0, %v232
    %v234 = vpop.f32.mrb[0].mxu0
    %235 = vmatprep.mubr.f32.mxu0 0.0
    %236 = vmatmul.mubr.f32.gmra.mrb[0].mxu0 %v142
    %v237 = vpop.f32.mrb[0].mxu0
    %v238 = vadd.f32 0.0, %v237
    %v239 = vpop.f32.mrb[0].mxu0
    %240 = vmatprep.mubr.f32.mxu0 0.0
    %241 = vmatmul.mubr.f32.gmra.mrb[0].mxu0 %v145
    %v242 = vpop.f32.mrb[0].mxu0
    %v243 = vadd.f32 0.0, %v242
    %v244 = vpop.f32.mrb[0].mxu0
    %245 = vmatprep.mubr.f32.mxu0 0.0
    %246 = vmatmul.mubr.f32.gmra.mrb[0].mxu0 %v148
    %v247 = vpop.f32.mrb[0].mxu0
    %v248 = vadd.f32 0.0, %v247
    %v249 = vpop.f32.mrb[0].mxu0
    %250 = vmatprep.mubr.f32.mxu0 0.0
    %251 = vmatmul.mubr.f32.gmra.mrb[0].mxu0 %v151
    %v252 = vpop.f32.mrb[0].mxu0
    %v253 = vadd.f32 0.0, %v252
    %v254 = vpop.f32.mrb[0].mxu0
    %255 = vmatprep.mubr.f32.mxu0 0.0
    %256 = vmatmul.mubr.f32.gmra.mrb[0].mxu0 %v154
    %v257 = vpop.f32.mrb[0].mxu0
    %v258 = vadd.f32 0.0, %v257
    %v259 = vpop.f32.mrb[0].mxu0
    %260 = vdwg.mxu0
    %v261 = vld [vmem:[%s3] sm:$0xff]
    %v262 = vld [vmem:[%s3 + $0x8] sm:$0xff]
    %v263 = vld [vmem:[%s3 + $0x10] sm:$0xff]
    %v264 = vld [vmem:[%s3 + $0x18] sm:$0xff]
    %v265 = vld [vmem:[#allocation2] sm:$0x1]
    %v267 = vlaneseq
    %v268 = vshrl.u32 %v267, 7
    %v269 = vsub.s32 0, %v268
    %v270 = vrot.slane %v265, %v269
    %v273 = vsel %vm131, %v223, 0
    %v276 = vsel %vm131, %v228, 0
    %v279 = vsel %vm131, %v233, 0
    %v282 = vsel %vm131, %v238, 0
    %v285 = vsel %vm131, %v243, 0
    %v288 = vsel %vm131, %v248, 0
    %v291 = vsel %vm131, %v253, 0
    %v294 = vsel %vm131, %v258, 0
    %296 = vmatprep.subr.mxu0 0.0
    %297 = vmatpush1.msra.mxu0 %v261
    %298 = vmatprep.subr.mxu0 0.0
    %299 = vmatpush1.msra.mxu0 %v262
    %300 = vmatprep.subr.mxu0 0.0
    %301 = vmatpush1.msra.mxu0 %v263
    %302 = vmatprep.subr.mxu0 0.0
    %303 = vmatpush1.msra.mxu0 %v264
    %304 = vmatprep.subr.mxu0 0.0
    %305 = vmatpush1.msra.mxu0 0.0
    %306 = vmatprep.subr.mxu0 0.0
    %307 = vmatpush1.msra.mxu0 0.0
    %308 = vmatprep.subr.mxu0 0.0
    %309 = vmatpush1.msra.mxu0 0.0
    %310 = vmatprep.subr.mxu0 0.0
    %311 = vmatpush1.msra.mxu0 0.0
    %312 = vmatprep.subr.mxu0 0.0
    %313 = vmatpush1.msra.mxu0 0.0
    %314 = vmatprep.subr.mxu0 0.0
    %315 = vmatpush1.msra.mxu0 0.0
    %316 = vmatprep.subr.mxu0 0.0
    %317 = vmatpush1.msra.mxu0 0.0
    %318 = vmatprep.subr.mxu0 0.0
    %319 = vmatpush1.msra.mxu0 0.0
    %320 = vmatprep.subr.mxu0 0.0
    %321 = vmatpush1.msra.mxu0 0.0
    %322 = vmatprep.subr.mxu0 0.0
    %323 = vmatpush1.msra.mxu0 0.0
    %324 = vmatprep.subr.mxu0 0.0
    %325 = vmatpush1.msra.mxu0 0.0
    %326 = vmatprep.subr.mxu0 0.0
    %327 = vmatpush1.msra.mxu0 0.0
    %328 = vmatprep.subr.mxu0 0.0
    %329 = vmatpush1.msra.mxu0 0.0
    %330 = vmatprep.subr.mxu0 0.0
    %331 = vmatpush1.msra.mxu0 0.0
    %332 = vmatprep.subr.mxu0 0.0
    %333 = vmatpush1.msra.mxu0 0.0
    %334 = vmatprep.subr.mxu0 0.0
    %335 = vmatpush1.msra.mxu0 0.0
    %336 = vmatprep.subr.mxu0 0.0
    %337 = vmatpush1.msra.mxu0 0.0
    %338 = vmatprep.subr.mxu0 0.0
    %339 = vmatpush1.msra.mxu0 0.0
    %340 = vmatprep.subr.mxu0 0.0
    %341 = vmatpush1.msra.mxu0 0.0
    %342 = vmatprep.subr.mxu0 0.0
    %343 = vmatpush1.msra.mxu0 0.0
    %344 = vmatprep.subr.mxu0 0.0
    %345 = vmatpush1.msra.mxu0 0.0
    %346 = vmatprep.subr.mxu0 0.0
    %347 = vmatpush1.msra.mxu0 0.0
    %348 = vmatprep.subr.mxu0 0.0
    %349 = vmatpush1.msra.mxu0 0.0
    %350 = vmatprep.subr.mxu0 0.0
    %351 = vmatpush1.msra.mxu0 0.0
    %352 = vmatprep.subr.mxu0 0.0
    %353 = vmatpush1.msra.mxu0 0.0
    %354 = vmatprep.subr.mxu0 0.0
    %355 = vmatpush1.msra.mxu0 0.0
    %356 = vmatprep.subr.mxu0 0.0
    %357 = vmatpush1.msra.mxu0 0.0
    %358 = vmatprep.subr.mxu0 0.0
    %359 = vmatpush1.msra.mxu0 0.0
    %360 = vmatprep.mubr.f32.mxu0 0.0
    %361 = vmatmul.mubr.f32.gmra.mrb[0].mxu0 %v273
    %v362 = vpop.f32.mrb[0].mxu0
    %v363 = vadd.f32 %v270, %v362
    %v364 = vpop.f32.mrb[0].mxu0
    %365 = vmatprep.mubr.f32.mxu0 0.0
    %366 = vmatmul.mubr.f32.gmra.mrb[0].mxu0 %v276
    %v367 = vpop.f32.mrb[0].mxu0
    %v368 = vadd.f32 %v270, %v367
    %v369 = vpop.f32.mrb[0].mxu0
    %370 = vmatprep.mubr.f32.mxu0 0.0
    %371 = vmatmul.mubr.f32.gmra.mrb[0].mxu0 %v279
    %v372 = vpop.f32.mrb[0].mxu0
    %v373 = vadd.f32 %v270, %v372
    %v374 = vpop.f32.mrb[0].mxu0
    %375 = vmatprep.mubr.f32.mxu0 0.0
    %376 = vmatmul.mubr.f32.gmra.mrb[0].mxu0 %v282
    %v377 = vpop.f32.mrb[0].mxu0
    %v378 = vadd.f32 %v270, %v377
    %v379 = vpop.f32.mrb[0].mxu0
    %380 = vmatprep.mubr.f32.mxu0 0.0
    %381 = vmatmul.mubr.f32.gmra.mrb[0].mxu0 %v285
    %v382 = vpop.f32.mrb[0].mxu0
    %v383 = vadd.f32 %v270, %v382
    %v384 = vpop.f32.mrb[0].mxu0
    %385 = vmatprep.mubr.f32.mxu0 0.0
    %386 = vmatmul.mubr.f32.gmra.mrb[0].mxu0 %v288
    %v387 = vpop.f32.mrb[0].mxu0
    %v388 = vadd.f32 %v270, %v387
    %v389 = vpop.f32.mrb[0].mxu0
    %390 = vmatprep.mubr.f32.mxu0 0.0
    %391 = vmatmul.mubr.f32.gmra.mrb[0].mxu0 %v291
    %v392 = vpop.f32.mrb[0].mxu0
    %v393 = vadd.f32 %v270, %v392
    %v394 = vpop.f32.mrb[0].mxu0
    %395 = vmatprep.mubr.f32.mxu0 0.0
    %396 = vmatmul.mubr.f32.gmra.mrb[0].mxu0 %v294
    %v397 = vpop.f32.mrb[0].mxu0
    %v398 = vadd.f32 %v270, %v397
    %v399 = vpop.f32.mrb[0].mxu0
    %400 = vdwg.mxu0
    %v401 = vld [vmem:[%s4] sm:$0xff]
    %v402 = vld [vmem:[%s4 + $0x8] sm:$0xff]
    %v403 = vld [vmem:[%s4 + $0x10] sm:$0xff]
    %v404 = vld [vmem:[%s4 + $0x18] sm:$0xff]
    %v406 = vsel %vm131, 0.0, 0
    %408 = vmatprep.subr.mxu0 0.0
    %409 = vmatpush1.msra.mxu0 %v401
    %410 = vmatprep.subr.mxu0 0.0
    %411 = vmatpush1.msra.mxu0 %v402
    %412 = vmatprep.subr.mxu0 0.0
    %413 = vmatpush1.msra.mxu0 %v403
    %414 = vmatprep.subr.mxu0 0.0
    %415 = vmatpush1.msra.mxu0 %v404
    %416 = vmatprep.subr.mxu0 0.0
    %417 = vmatpush1.msra.mxu0 0.0
    %418 = vmatprep.subr.mxu0 0.0
    %419 = vmatpush1.msra.mxu0 0.0
    %420 = vmatprep.subr.mxu0 0.0
    %421 = vmatpush1.msra.mxu0 0.0
    %422 = vmatprep.subr.mxu0 0.0
    %423 = vmatpush1.msra.mxu0 0.0
    %424 = vmatprep.subr.mxu0 0.0
    %425 = vmatpush1.msra.mxu0 0.0
    %426 = vmatprep.subr.mxu0 0.0
    %427 = vmatpush1.msra.mxu0 0.0
    %428 = vmatprep.subr.mxu0 0.0
    %429 = vmatpush1.msra.mxu0 0.0
    %430 = vmatprep.subr.mxu0 0.0
    %431 = vmatpush1.msra.mxu0 0.0
    %432 = vmatprep.subr.mxu0 0.0
    %433 = vmatpush1.msra.mxu0 0.0
    %434 = vmatprep.subr.mxu0 0.0
    %435 = vmatpush1.msra.mxu0 0.0
    %436 = vmatprep.subr.mxu0 0.0
    %437 = vmatpush1.msra.mxu0 0.0
    %438 = vmatprep.subr.mxu0 0.0
    %439 = vmatpush1.msra.mxu0 0.0
    %440 = vmatprep.subr.mxu0 0.0
    %441 = vmatpush1.msra.mxu0 0.0
    %442 = vmatprep.subr.mxu0 0.0
    %443 = vmatpush1.msra.mxu0 0.0
    %444 = vmatprep.subr.mxu0 0.0
    %445 = vmatpush1.msra.mxu0 0.0
    %446 = vmatprep.subr.mxu0 0.0
    %447 = vmatpush1.msra.mxu0 0.0
    %448 = vmatprep.subr.mxu0 0.0
    %449 = vmatpush1.msra.mxu0 0.0
    %450 = vmatprep.subr.mxu0 0.0
    %451 = vmatpush1.msra.mxu0 0.0
    %452 = vmatprep.subr.mxu0 0.0
    %453 = vmatpush1.msra.mxu0 0.0
    %454 = vmatprep.subr.mxu0 0.0
    %455 = vmatpush1.msra.mxu0 0.0
    %456 = vmatprep.subr.mxu0 0.0
    %457 = vmatpush1.msra.mxu0 0.0
    %458 = vmatprep.subr.mxu0 0.0
    %459 = vmatpush1.msra.mxu0 0.0
    %460 = vmatprep.subr.mxu0 0.0
    %461 = vmatpush1.msra.mxu0 0.0
    %462 = vmatprep.subr.mxu0 0.0
    %463 = vmatpush1.msra.mxu0 0.0
    %464 = vmatprep.subr.mxu0 0.0
    %465 = vmatpush1.msra.mxu0 0.0
    %466 = vmatprep.subr.mxu0 0.0
    %467 = vmatpush1.msra.mxu0 0.0
    %468 = vmatprep.subr.mxu0 0.0
    %469 = vmatpush1.msra.mxu0 0.0
    %470 = vmatprep.subr.mxu0 0.0
    %471 = vmatpush1.msra.mxu0 0.0
    %472 = vmatprep.mubr.f32.mxu0 0.0
    %473 = vmatmul.mubr.f32.gmra.mrb[0].mxu0 %v406
    %v474 = vpop.f32.mrb[0].mxu0
    %v475 = vadd.f32 0.0, %v474
    %v476 = vpop.f32.mrb[0].mxu0
    %477 = vdwg.mxu0
    %v478 = vadd.f32 %v363, %v475
    %v479 = vxor.u32 %v478, 2147483648
    %v480 = vmul.f32 %v479, 1.442695
    %v481 = vpow.pop %v480
    %v482 = vadd.f32 %v481, 1.0
    %v483 = vrcp.pop %v482
    %v484 = vmul.f32 1.0, %v483
    %v485 = vtanh.pop %v478
    %v486 = vmul.f32 %v484, 0.0
    %488 = vrot.lane.b32.xlu0 %v485, 64
    %v489 = vpop.permute.xlu0 %488
    %v491 = vmul.f32 %v484, %v489
    %493 = vrot.lane.b32.xlu0 %v491, 32
    %v494 = vpop.permute.xlu0 %493
    %v496 = vadd.f32 %v486, %v494
    %v497 = vtanh.pop %v496
    %499 = vrot.lane.b32.xlu0 %v497, 64
    %v500 = vpop.permute.xlu0 %499
    %v502 = vmul.f32 %v484, %v500
    %504 = vrot.lane.b32.xlu0 %v502, 32
    %v505 = vpop.permute.xlu0 %504
    %v507 = vsel %vm131, %v505, 0.0
    %v508 = vld [vmem:[%s6] sm:$0xff]
    %v509 = vld [vmem:[%s6 + $0x8] sm:$0xff]
    %v510 = vld [vmem:[%s6 + $0x10] sm:$0xff]
    %v511 = vld [vmem:[%s6 + $0x18] sm:$0xff]
    %v512 = vld [vmem:[%s6 + $0x20] sm:$0xff]
    %v513 = vld [vmem:[%s6 + $0x28] sm:$0xff]
    %v514 = vld [vmem:[%s6 + $0x30] sm:$0xff]
    %v515 = vld [vmem:[%s6 + $0x38] sm:$0xff]
    %v516 = vld [vmem:[%s7] sm:$0x1]
    %v518 = vlaneseq
    %v519 = vshrl.u32 %v518, 7
    %v520 = vsub.s32 0, %v519
    %v521 = vrot.slane %v516, %v520
    %vm523 = vcmask 523264
    %v525 = vsel %vm523, %v507, 0
    %527 = vmatprep.subr.mxu0 0.0
    %528 = vmatpush1.msra.mxu0 %v508
    %529 = vmatprep.subr.mxu0 0.0
    %530 = vmatpush1.msra.mxu0 %v509
    %531 = vmatprep.subr.mxu0 0.0
    %532 = vmatpush1.msra.mxu0 %v510
    %533 = vmatprep.subr.mxu0 0.0
    %534 = vmatpush1.msra.mxu0 %v511
    %535 = vmatprep.subr.mxu0 0.0
    %536 = vmatpush1.msra.mxu0 %v512
    %537 = vmatprep.subr.mxu0 0.0
    %538 = vmatpush1.msra.mxu0 %v513
    %539 = vmatprep.subr.mxu0 0.0
    %540 = vmatpush1.msra.mxu0 %v514
    %541 = vmatprep.subr.mxu0 0.0
    %542 = vmatpush1.msra.mxu0 %v515
    %543 = vmatprep.subr.mxu0 0.0
    %544 = vmatpush1.msra.mxu0 0.0
    %545 = vmatprep.subr.mxu0 0.0
    %546 = vmatpush1.msra.mxu0 0.0
    %547 = vmatprep.subr.mxu0 0.0
    %548 = vmatpush1.msra.mxu0 0.0
    %549 = vmatprep.subr.mxu0 0.0
    %550 = vmatpush1.msra.mxu0 0.0
    %551 = vmatprep.subr.mxu0 0.0
    %552 = vmatpush1.msra.mxu0 0.0
    %553 = vmatprep.subr.mxu0 0.0
    %554 = vmatpush1.msra.mxu0 0.0
    %555 = vmatprep.subr.mxu0 0.0
    %556 = vmatpush1.msra.mxu0 0.0
    %557 = vmatprep.subr.mxu0 0.0
    %558 = vmatpush1.msra.mxu0 0.0
    %559 = vmatprep.subr.mxu0 0.0
    %560 = vmatpush1.msra.mxu0 0.0
    %561 = vmatprep.subr.mxu0 0.0
    %562 = vmatpush1.msra.mxu0 0.0
    %563 = vmatprep.subr.mxu0 0.0
    %564 = vmatpush1.msra.mxu0 0.0
    %565 = vmatprep.subr.mxu0 0.0
    %566 = vmatpush1.msra.mxu0 0.0
    %567 = vmatprep.subr.mxu0 0.0
    %568 = vmatpush1.msra.mxu0 0.0
    %569 = vmatprep.subr.mxu0 0.0
    %570 = vmatpush1.msra.mxu0 0.0
    %571 = vmatprep.subr.mxu0 0.0
    %572 = vmatpush1.msra.mxu0 0.0
    %573 = vmatprep.subr.mxu0 0.0
    %574 = vmatpush1.msra.mxu0 0.0
    %575 = vmatprep.subr.mxu0 0.0
    %576 = vmatpush1.msra.mxu0 0.0
    %577 = vmatprep.subr.mxu0 0.0
    %578 = vmatpush1.msra.mxu0 0.0
    %579 = vmatprep.subr.mxu0 0.0
    %580 = vmatpush1.msra.mxu0 0.0
    %581 = vmatprep.subr.mxu0 0.0
    %582 = vmatpush1.msra.mxu0 0.0
    %583 = vmatprep.subr.mxu0 0.0
    %584 = vmatpush1.msra.mxu0 0.0
    %585 = vmatprep.subr.mxu0 0.0
    %586 = vmatpush1.msra.mxu0 0.0
    %587 = vmatprep.subr.mxu0 0.0
    %588 = vmatpush1.msra.mxu0 0.0
    %589 = vmatprep.subr.mxu0 0.0
    %590 = vmatpush1.msra.mxu0 0.0
    %591 = vmatprep.mubr.f32.mxu0 0.0
    %592 = vmatmul.mubr.f32.gmra.mrb[0].mxu0 %v525
    %v593 = vpop.f32.mrb[0].mxu0
    %v594 = vadd.f32 %v521, %v593
    %v595 = vpop.f32.mrb[0].mxu0
    %596 = vdwg.mxu0
    %v597 = vxor.u32 %v594, 2147483648
    %v598 = vmul.f32 %v597, 1.442695
    %v599 = vpow.pop %v598
    %v600 = vadd.f32 %v599, 1.0
    %v601 = vrcp.pop %v600
    %v602 = vmul.f32 1.0, %v601
    %v603 = vtanh.pop %v594
    %v604 = vmul.f32 %v602, 0.0
    %606 = vrot.lane.b32.xlu0 %v603, 64
    %v607 = vpop.permute.xlu0 %606
    %v609 = vmul.f32 %v602, %v607
    %611 = vrot.lane.b32.xlu0 %v609, 32
    %v612 = vpop.permute.xlu0 %611
    %v614 = vadd.f32 %v604, %v612
    %v615 = vtanh.pop %v614
    %617 = vrot.lane.b32.xlu0 %v615, 64
    %v618 = vpop.permute.xlu0 %617
    %v620 = vmul.f32 %v602, %v618
    %vm621 = vcmp.eq.s32.totalorder %v76, 0
    %v622 = vsel %vm621, 1, 0
    %623 = vset.pattern.permute.xlu0 0
    %624 = vperm.xlu0 %623, %v622
    %v625 = vpop.permute.xlu0 %624
    %vm626 = vcmp.eq.s32.totalorder %v625, 1
    %v627 = vsel %vm626, %v620, 0.0
    %v628 = vsel %vm131, %v505, 0
    %630 = vmatprep.subr.mxu0 0.0
    %631 = vmatpush1.msra.mxu0 %v401
    %632 = vmatprep.subr.mxu0 0.0
    %633 = vmatpush1.msra.mxu0 %v402
    %634 = vmatprep.subr.mxu0 0.0
    %635 = vmatpush1.msra.mxu0 %v403
    %636 = vmatprep.subr.mxu0 0.0
    %637 = vmatpush1.msra.mxu0 %v404
    %638 = vmatprep.subr.mxu0 0.0
    %639 = vmatpush1.msra.mxu0 0.0
    %640 = vmatprep.subr.mxu0 0.0
    %641 = vmatpush1.msra.mxu0 0.0
    %642 = vmatprep.subr.mxu0 0.0
    %643 = vmatpush1.msra.mxu0 0.0
    %644 = vmatprep.subr.mxu0 0.0
    %645 = vmatpush1.msra.mxu0 0.0
    %646 = vmatprep.subr.mxu0 0.0
    %647 = vmatpush1.msra.mxu0 0.0
    %648 = vmatprep.subr.mxu0 0.0
    %649 = vmatpush1.msra.mxu0 0.0
    %650 = vmatprep.subr.mxu0 0.0
    %651 = vmatpush1.msra.mxu0 0.0
    %652 = vmatprep.subr.mxu0 0.0
    %653 = vmatpush1.msra.mxu0 0.0
    %654 = vmatprep.subr.mxu0 0.0
    %655 = vmatpush1.msra.mxu0 0.0
    %656 = vmatprep.subr.mxu0 0.0
    %657 = vmatpush1.msra.mxu0 0.0
    %658 = vmatprep.subr.mxu0 0.0
    %659 = vmatpush1.msra.mxu0 0.0
    %660 = vmatprep.subr.mxu0 0.0
    %661 = vmatpush1.msra.mxu0 0.0
    %662 = vmatprep.subr.mxu0 0.0
    %663 = vmatpush1.msra.mxu0 0.0
    %664 = vmatprep.subr.mxu0 0.0
    %665 = vmatpush1.msra.mxu0 0.0
    %666 = vmatprep.subr.mxu0 0.0
    %667 = vmatpush1.msra.mxu0 0.0
    %668 = vmatprep.subr.mxu0 0.0
    %669 = vmatpush1.msra.mxu0 0.0
    %670 = vmatprep.subr.mxu0 0.0
    %671 = vmatpush1.msra.mxu0 0.0
    %672 = vmatprep.subr.mxu0 0.0
    %673 = vmatpush1.msra.mxu0 0.0
    %674 = vmatprep.subr.mxu0 0.0
    %675 = vmatpush1.msra.mxu0 0.0
    %676 = vmatprep.subr.mxu0 0.0
    %677 = vmatpush1.msra.mxu0 0.0
    %678 = vmatprep.subr.mxu0 0.0
    %679 = vmatpush1.msra.mxu0 0.0
    %680 = vmatprep.subr.mxu0 0.0
    %681 = vmatpush1.msra.mxu0 0.0
    %682 = vmatprep.subr.mxu0 0.0
    %683 = vmatpush1.msra.mxu0 0.0
    %684 = vmatprep.subr.mxu0 0.0
    %685 = vmatpush1.msra.mxu0 0.0
    %686 = vmatprep.subr.mxu0 0.0
    %687 = vmatpush1.msra.mxu0 0.0
    %688 = vmatprep.subr.mxu0 0.0
    %689 = vmatpush1.msra.mxu0 0.0
    %690 = vmatprep.subr.mxu0 0.0
    %691 = vmatpush1.msra.mxu0 0.0
    %692 = vmatprep.subr.mxu0 0.0
    %693 = vmatpush1.msra.mxu0 0.0
    %694 = vmatprep.mubr.f32.mxu0 0.0
    %695 = vmatmul.mubr.f32.gmra.mrb[0].mxu0 %v628
    %v696 = vpop.f32.mrb[0].mxu0
    %v697 = vadd.f32 0.0, %v696
    %v698 = vpop.f32.mrb[0].mxu0
    %699 = vdwg.mxu0
    %v700 = vadd.f32 %v368, %v697
    %v701 = vxor.u32 %v700, 2147483648
    %v702 = vmul.f32 %v701, 1.442695
    %v703 = vpow.pop %v702
    %v704 = vadd.f32 %v703, 1.0
    %v705 = vrcp.pop %v704
    %v706 = vmul.f32 1.0, %v705
    %v707 = vtanh.pop %v700
    %v708 = vmul.f32 %v706, %v496
    %710 = vrot.lane.b32.xlu0 %v707, 64
    %v711 = vpop.permute.xlu0 %710
    %v713 = vmul.f32 %v706, %v711
    %715 = vrot.lane.b32.xlu0 %v713, 32
    %v716 = vpop.permute.xlu0 %715
    %v718 = vadd.f32 %v708, %v716
    %v719 = vtanh.pop %v718
    %721 = vrot.lane.b32.xlu0 %v719, 64
    %v722 = vpop.permute.xlu0 %721
    %v724 = vmul.f32 %v706, %v722
    %726 = vrot.lane.b32.xlu0 %v724, 32
    %v727 = vpop.permute.xlu0 %726
    %730 = vrot.lane.b32.xlu0 %v620, 64
    %v731 = vpop.permute.xlu0 %730
    %v733 = vsel %vm131, %v727, %v731
    %v735 = vsel %vm523, %v733, 0
    %737 = vmatprep.subr.mxu0 0.0
    %738 = vmatpush1.msra.mxu0 %v508
    %739 = vmatprep.subr.mxu0 0.0
    %740 = vmatpush1.msra.mxu0 %v509
    %741 = vmatprep.subr.mxu0 0.0
    %742 = vmatpush1.msra.mxu0 %v510
    %743 = vmatprep.subr.mxu0 0.0
    %744 = vmatpush1.msra.mxu0 %v511
    %745 = vmatprep.subr.mxu0 0.0
    %746 = vmatpush1.msra.mxu0 %v512
    %747 = vmatprep.subr.mxu0 0.0
    %748 = vmatpush1.msra.mxu0 %v513
    %749 = vmatprep.subr.mxu0 0.0
    %750 = vmatpush1.msra.mxu0 %v514
    %751 = vmatprep.subr.mxu0 0.0
    %752 = vmatpush1.msra.mxu0 %v515
    %753 = vmatprep.subr.mxu0 0.0
    %754 = vmatpush1.msra.mxu0 0.0
    %755 = vmatprep.subr.mxu0 0.0
    %756 = vmatpush1.msra.mxu0 0.0
    %757 = vmatprep.subr.mxu0 0.0
    %758 = vmatpush1.msra.mxu0 0.0
    %759 = vmatprep.subr.mxu0 0.0
    %760 = vmatpush1.msra.mxu0 0.0
    %761 = vmatprep.subr.mxu0 0.0
    %762 = vmatpush1.msra.mxu0 0.0
    %763 = vmatprep.subr.mxu0 0.0
    %764 = vmatpush1.msra.mxu0 0.0
    %765 = vmatprep.subr.mxu0 0.0
    %766 = vmatpush1.msra.mxu0 0.0
    %767 = vmatprep.subr.mxu0 0.0
    %768 = vmatpush1.msra.mxu0 0.0
    %769 = vmatprep.subr.mxu0 0.0
    %770 = vmatpush1.msra.mxu0 0.0
    %771 = vmatprep.subr.mxu0 0.0
    %772 = vmatpush1.msra.mxu0 0.0
    %773 = vmatprep.subr.mxu0 0.0
    %774 = vmatpush1.msra.mxu0 0.0
    %775 = vmatprep.subr.mxu0 0.0
    %776 = vmatpush1.msra.mxu0 0.0
    %777 = vmatprep.subr.mxu0 0.0
    %778 = vmatpush1.msra.mxu0 0.0
    %779 = vmatprep.subr.mxu0 0.0
    %780 = vmatpush1.msra.mxu0 0.0
    %781 = vmatprep.subr.mxu0 0.0
    %782 = vmatpush1.msra.mxu0 0.0
    %783 = vmatprep.subr.mxu0 0.0
    %784 = vmatpush1.msra.mxu0 0.0
    %785 = vmatprep.subr.mxu0 0.0
    %786 = vmatpush1.msra.mxu0 0.0
    %787 = vmatprep.subr.mxu0 0.0
    %788 = vmatpush1.msra.mxu0 0.0
    %789 = vmatprep.subr.mxu0 0.0
    %790 = vmatpush1.msra.mxu0 0.0
    %791 = vmatprep.subr.mxu0 0.0
    %792 = vmatpush1.msra.mxu0 0.0
    %793 = vmatprep.subr.mxu0 0.0
    %794 = vmatpush1.msra.mxu0 0.0
    %795 = vmatprep.subr.mxu0 0.0
    %796 = vmatpush1.msra.mxu0 0.0
    %797 = vmatprep.subr.mxu0 0.0
    %798 = vmatpush1.msra.mxu0 0.0
    %799 = vmatprep.subr.mxu0 0.0
    %800 = vmatpush1.msra.mxu0 0.0
    %801 = vmatprep.mubr.f32.mxu0 0.0
    %802 = vmatmul.mubr.f32.gmra.mrb[0].mxu0 %v735
    %v803 = vpop.f32.mrb[0].mxu0
    %v804 = vadd.f32 %v521, %v803
    %v805 = vpop.f32.mrb[0].mxu0
    %806 = vdwg.mxu0
    %v807 = vxor.u32 %v804, 2147483648
    %v808 = vmul.f32 %v807, 1.442695
    %v809 = vpow.pop %v808
    %v810 = vadd.f32 %v809, 1.0
    %v811 = vrcp.pop %v810
    %v812 = vmul.f32 1.0, %v811
    %v813 = vtanh.pop %v804
    %v814 = vmul.f32 %v812, %v614
    %816 = vrot.lane.b32.xlu0 %v813, 64
    %v817 = vpop.permute.xlu0 %816
    %v819 = vmul.f32 %v812, %v817
    %821 = vrot.lane.b32.xlu0 %v819, 32
    %v822 = vpop.permute.xlu0 %821
    %v824 = vadd.f32 %v814, %v822
    %v825 = vtanh.pop %v824
    %827 = vrot.lane.b32.xlu0 %v825, 64
    %v828 = vpop.permute.xlu0 %827
    %v830 = vmul.f32 %v812, %v828
    %vm831 = vcmp.eq.s32.totalorder %v76, 1
    %v832 = vsel %vm831, 1, 0
    %833 = vset.pattern.permute.xlu0 0
    %834 = vperm.xlu0 %833, %v832
    %v835 = vpop.permute.xlu0 %834
    %vm836 = vcmp.eq.s32.totalorder %v835, 1
    %v837 = vsel %vm836, %v830, %v627
    %v838 = vsel %vm131, %v727, 0
    %840 = vmatprep.subr.mxu0 0.0
    %841 = vmatpush1.msra.mxu0 %v401
    %842 = vmatprep.subr.mxu0 0.0
    %843 = vmatpush1.msra.mxu0 %v402
    %844 = vmatprep.subr.mxu0 0.0
    %845 = vmatpush1.msra.mxu0 %v403
    %846 = vmatprep.subr.mxu0 0.0
    %847 = vmatpush1.msra.mxu0 %v404
    %848 = vmatprep.subr.mxu0 0.0
    %849 = vmatpush1.msra.mxu0 0.0
    %850 = vmatprep.subr.mxu0 0.0
    %851 = vmatpush1.msra.mxu0 0.0
    %852 = vmatprep.subr.mxu0 0.0
    %853 = vmatpush1.msra.mxu0 0.0
    %854 = vmatprep.subr.mxu0 0.0
    %855 = vmatpush1.msra.mxu0 0.0
    %856 = vmatprep.subr.mxu0 0.0
    %857 = vmatpush1.msra.mxu0 0.0
    %858 = vmatprep.subr.mxu0 0.0
    %859 = vmatpush1.msra.mxu0 0.0
    %860 = vmatprep.subr.mxu0 0.0
    %861 = vmatpush1.msra.mxu0 0.0
    %862 = vmatprep.subr.mxu0 0.0
    %863 = vmatpush1.msra.mxu0 0.0
    %864 = vmatprep.subr.mxu0 0.0
    %865 = vmatpush1.msra.mxu0 0.0
    %866 = vmatprep.subr.mxu0 0.0
    %867 = vmatpush1.msra.mxu0 0.0
    %868 = vmatprep.subr.mxu0 0.0
    %869 = vmatpush1.msra.mxu0 0.0
    %870 = vmatprep.subr.mxu0 0.0
    %871 = vmatpush1.msra.mxu0 0.0
    %872 = vmatprep.subr.mxu0 0.0
    %873 = vmatpush1.msra.mxu0 0.0
    %874 = vmatprep.subr.mxu0 0.0
    %875 = vmatpush1.msra.mxu0 0.0
    %876 = vmatprep.subr.mxu0 0.0
    %877 = vmatpush1.msra.mxu0 0.0
    %878 = vmatprep.subr.mxu0 0.0
    %879 = vmatpush1.msra.mxu0 0.0
    %880 = vmatprep.subr.mxu0 0.0
    %881 = vmatpush1.msra.mxu0 0.0
    %882 = vmatprep.subr.mxu0 0.0
    %883 = vmatpush1.msra.mxu0 0.0
    %884 = vmatprep.subr.mxu0 0.0
    %885 = vmatpush1.msra.mxu0 0.0
    %886 = vmatprep.subr.mxu0 0.0
    %887 = vmatpush1.msra.mxu0 0.0
    %888 = vmatprep.subr.mxu0 0.0
    %889 = vmatpush1.msra.mxu0 0.0
    %890 = vmatprep.subr.mxu0 0.0
    %891 = vmatpush1.msra.mxu0 0.0
    %892 = vmatprep.subr.mxu0 0.0
    %893 = vmatpush1.msra.mxu0 0.0
    %894 = vmatprep.subr.mxu0 0.0
    %895 = vmatpush1.msra.mxu0 0.0
    %896 = vmatprep.subr.mxu0 0.0
    %897 = vmatpush1.msra.mxu0 0.0
    %898 = vmatprep.subr.mxu0 0.0
    %899 = vmatpush1.msra.mxu0 0.0
    %900 = vmatprep.subr.mxu0 0.0
    %901 = vmatpush1.msra.mxu0 0.0
    %902 = vmatprep.subr.mxu0 0.0
    %903 = vmatpush1.msra.mxu0 0.0
    %904 = vmatprep.mubr.f32.mxu0 0.0
    %905 = vmatmul.mubr.f32.gmra.mrb[0].mxu0 %v838
    %v906 = vpop.f32.mrb[0].mxu0
    %v907 = vadd.f32 0.0, %v906
    %v908 = vpop.f32.mrb[0].mxu0
    %909 = vdwg.mxu0
    %v910 = vadd.f32 %v373, %v907
    %v911 = vxor.u32 %v910, 2147483648
    %v912 = vmul.f32 %v911, 1.442695
    %v913 = vpow.pop %v912
    %v914 = vadd.f32 %v913, 1.0
    %v915 = vrcp.pop %v914
    %v916 = vmul.f32 1.0, %v915
    %v917 = vtanh.pop %v910
    %v918 = vmul.f32 %v916, %v718
    %920 = vrot.lane.b32.xlu0 %v917, 64
    %v921 = vpop.permute.xlu0 %920
    %v923 = vmul.f32 %v916, %v921
    %925 = vrot.lane.b32.xlu0 %v923, 32
    %v926 = vpop.permute.xlu0 %925
    %v928 = vadd.f32 %v918, %v926
    %v929 = vtanh.pop %v928
    %931 = vrot.lane.b32.xlu0 %v929, 64
    %v932 = vpop.permute.xlu0 %931
    %v934 = vmul.f32 %v916, %v932
    %936 = vrot.lane.b32.xlu0 %v934, 32
    %v937 = vpop.permute.xlu0 %936
    %940 = vrot.lane.b32.xlu0 %v830, 64
    %v941 = vpop.permute.xlu0 %940
    %v943 = vsel %vm131, %v937, %v941
    %v945 = vsel %vm523, %v943, 0
    %947 = vmatprep.subr.mxu0 0.0
    %948 = vmatpush1.msra.mxu0 %v508
    %949 = vmatprep.subr.mxu0 0.0
    %950 = vmatpush1.msra.mxu0 %v509
    %951 = vmatprep.subr.mxu0 0.0
    %952 = vmatpush1.msra.mxu0 %v510
    %953 = vmatprep.subr.mxu0 0.0
    %954 = vmatpush1.msra.mxu0 %v511
    %955 = vmatprep.subr.mxu0 0.0
    %956 = vmatpush1.msra.mxu0 %v512
    %957 = vmatprep.subr.mxu0 0.0
    %958 = vmatpush1.msra.mxu0 %v513
    %959 = vmatprep.subr.mxu0 0.0
    %960 = vmatpush1.msra.mxu0 %v514
    %961 = vmatprep.subr.mxu0 0.0
    %962 = vmatpush1.msra.mxu0 %v515
    %963 = vmatprep.subr.mxu0 0.0
    %964 = vmatpush1.msra.mxu0 0.0
    %965 = vmatprep.subr.mxu0 0.0
    %966 = vmatpush1.msra.mxu0 0.0
    %967 = vmatprep.subr.mxu0 0.0
    %968 = vmatpush1.msra.mxu0 0.0
    %969 = vmatprep.subr.mxu0 0.0
    %970 = vmatpush1.msra.mxu0 0.0
    %971 = vmatprep.subr.mxu0 0.0
    %972 = vmatpush1.msra.mxu0 0.0
    %973 = vmatprep.subr.mxu0 0.0
    %974 = vmatpush1.msra.mxu0 0.0
    %975 = vmatprep.subr.mxu0 0.0
    %976 = vmatpush1.msra.mxu0 0.0
    %977 = vmatprep.subr.mxu0 0.0
    %978 = vmatpush1.msra.mxu0 0.0
    %979 = vmatprep.subr.mxu0 0.0
    %980 = vmatpush1.msra.mxu0 0.0
    %981 = vmatprep.subr.mxu0 0.0
    %982 = vmatpush1.msra.mxu0 0.0
    %983 = vmatprep.subr.mxu0 0.0
    %984 = vmatpush1.msra.mxu0 0.0
    %985 = vmatprep.subr.mxu0 0.0
    %986 = vmatpush1.msra.mxu0 0.0
    %987 = vmatprep.subr.mxu0 0.0
    %988 = vmatpush1.msra.mxu0 0.0
    %989 = vmatprep.subr.mxu0 0.0
    %990 = vmatpush1.msra.mxu0 0.0
    %991 = vmatprep.subr.mxu0 0.0
    %992 = vmatpush1.msra.mxu0 0.0
    %993 = vmatprep.subr.mxu0 0.0
    %994 = vmatpush1.msra.mxu0 0.0
    %995 = vmatprep.subr.mxu0 0.0
    %996 = vmatpush1.msra.mxu0 0.0
    %997 = vmatprep.subr.mxu0 0.0
    %998 = vmatpush1.msra.mxu0 0.0
    %999 = vmatprep.subr.mxu0 0.0
    %1000 = vmatpush1.msra.mxu0 0.0
    %1001 = vmatprep.subr.mxu0 0.0
    %1002 = vmatpush1.msra.mxu0 0.0
    %1003 = vmatprep.subr.mxu0 0.0
    %1004 = vmatpush1.msra.mxu0 0.0
    %1005 = vmatprep.subr.mxu0 0.0
    %1006 = vmatpush1.msra.mxu0 0.0
    %1007 = vmatprep.subr.mxu0 0.0
    %1008 = vmatpush1.msra.mxu0 0.0
    %1009 = vmatprep.subr.mxu0 0.0
    %1010 = vmatpush1.msra.mxu0 0.0
    %1011 = vmatprep.mubr.f32.mxu0 0.0
    %1012 = vmatmul.mubr.f32.gmra.mrb[0].mxu0 %v945
    %v1013 = vpop.f32.mrb[0].mxu0
    %v1014 = vadd.f32 %v521, %v1013
    %v1015 = vpop.f32.mrb[0].mxu0
    %1016 = vdwg.mxu0
    %v1017 = vxor.u32 %v1014, 2147483648
    %v1018 = vmul.f32 %v1017, 1.442695
    %v1019 = vpow.pop %v1018
    %v1020 = vadd.f32 %v1019, 1.0
    %v1021 = vrcp.pop %v1020
    %v1022 = vmul.f32 1.0, %v1021
    %v1023 = vtanh.pop %v1014
    %v1024 = vmul.f32 %v1022, %v824
    %1026 = vrot.lane.b32.xlu0 %v1023, 64
    %v1027 = vpop.permute.xlu0 %1026
    %v1029 = vmul.f32 %v1022, %v1027
    %1031 = vrot.lane.b32.xlu0 %v1029, 32
    %v1032 = vpop.permute.xlu0 %1031
    %v1034 = vadd.f32 %v1024, %v1032
    %v1035 = vtanh.pop %v1034
    %1037 = vrot.lane.b32.xlu0 %v1035, 64
    %v1038 = vpop.permute.xlu0 %1037
    %v1040 = vmul.f32 %v1022, %v1038
    %vm1041 = vcmp.eq.s32.totalorder %v76, 2
    %v1042 = vsel %vm1041, 1, 0
    %1043 = vset.pattern.permute.xlu0 0
    %1044 = vperm.xlu0 %1043, %v1042
    %v1045 = vpop.permute.xlu0 %1044
    %vm1046 = vcmp.eq.s32.totalorder %v1045, 1
    %v1047 = vsel %vm1046, %v1040, %v837
    %v1048 = vsel %vm131, %v937, 0
    %1050 = vmatprep.subr.mxu0 0.0
    %1051 = vmatpush1.msra.mxu0 %v401
    %1052 = vmatprep.subr.mxu0 0.0
    %1053 = vmatpush1.msra.mxu0 %v402
    %1054 = vmatprep.subr.mxu0 0.0
    %1055 = vmatpush1.msra.mxu0 %v403
    %1056 = vmatprep.subr.mxu0 0.0
    %1057 = vmatpush1.msra.mxu0 %v404
    %1058 = vmatprep.subr.mxu0 0.0
    %1059 = vmatpush1.msra.mxu0 0.0
    %1060 = vmatprep.subr.mxu0 0.0
    %1061 = vmatpush1.msra.mxu0 0.0
    %1062 = vmatprep.subr.mxu0 0.0
    %1063 = vmatpush1.msra.mxu0 0.0
    %1064 = vmatprep.subr.mxu0 0.0
    %1065 = vmatpush1.msra.mxu0 0.0
    %1066 = vmatprep.subr.mxu0 0.0
    %1067 = vmatpush1.msra.mxu0 0.0
    %1068 = vmatprep.subr.mxu0 0.0
    %1069 = vmatpush1.msra.mxu0 0.0
    %1070 = vmatprep.subr.mxu0 0.0
    %1071 = vmatpush1.msra.mxu0 0.0
    %1072 = vmatprep.subr.mxu0 0.0
    %1073 = vmatpush1.msra.mxu0 0.0
    %1074 = vmatprep.subr.mxu0 0.0
    %1075 = vmatpush1.msra.mxu0 0.0
    %1076 = vmatprep.subr.mxu0 0.0
    %1077 = vmatpush1.msra.mxu0 0.0
    %1078 = vmatprep.subr.mxu0 0.0
    %1079 = vmatpush1.msra.mxu0 0.0
    %1080 = vmatprep.subr.mxu0 0.0
    %1081 = vmatpush1.msra.mxu0 0.0
    %1082 = vmatprep.subr.mxu0 0.0
    %1083 = vmatpush1.msra.mxu0 0.0
    %1084 = vmatprep.subr.mxu0 0.0
    %1085 = vmatpush1.msra.mxu0 0.0
    %1086 = vmatprep.subr.mxu0 0.0
    %1087 = vmatpush1.msra.mxu0 0.0
    %1088 = vmatprep.subr.mxu0 0.0
    %1089 = vmatpush1.msra.mxu0 0.0
    %1090 = vmatprep.subr.mxu0 0.0
    %1091 = vmatpush1.msra.mxu0 0.0
    %1092 = vmatprep.subr.mxu0 0.0
    %1093 = vmatpush1.msra.mxu0 0.0
    %1094 = vmatprep.subr.mxu0 0.0
    %1095 = vmatpush1.msra.mxu0 0.0
    %1096 = vmatprep.subr.mxu0 0.0
    %1097 = vmatpush1.msra.mxu0 0.0
    %1098 = vmatprep.subr.mxu0 0.0
    %1099 = vmatpush1.msra.mxu0 0.0
    %1100 = vmatprep.subr.mxu0 0.0
    %1101 = vmatpush1.msra.mxu0 0.0
    %1102 = vmatprep.subr.mxu0 0.0
    %1103 = vmatpush1.msra.mxu0 0.0
    %1104 = vmatprep.subr.mxu0 0.0
    %1105 = vmatpush1.msra.mxu0 0.0
    %1106 = vmatprep.subr.mxu0 0.0
    %1107 = vmatpush1.msra.mxu0 0.0
    %1108 = vmatprep.subr.mxu0 0.0
    %1109 = vmatpush1.msra.mxu0 0.0
    %1110 = vmatprep.subr.mxu0 0.0
    %1111 = vmatpush1.msra.mxu0 0.0
    %1112 = vmatprep.subr.mxu0 0.0
    %1113 = vmatpush1.msra.mxu0 0.0
    %1114 = vmatprep.mubr.f32.mxu0 0.0
    %1115 = vmatmul.mubr.f32.gmra.mrb[0].mxu0 %v1048
    %v1116 = vpop.f32.mrb[0].mxu0
    %v1117 = vadd.f32 0.0, %v1116
    %v1118 = vpop.f32.mrb[0].mxu0
    %1119 = vdwg.mxu0
    %v1120 = vadd.f32 %v378, %v1117
    %v1121 = vxor.u32 %v1120, 2147483648
    %v1122 = vmul.f32 %v1121, 1.442695
    %v1123 = vpow.pop %v1122
    %v1124 = vadd.f32 %v1123, 1.0
    %v1125 = vrcp.pop %v1124
    %v1126 = vmul.f32 1.0, %v1125
    %v1127 = vtanh.pop %v1120
    %v1128 = vmul.f32 %v1126, %v928
    %1130 = vrot.lane.b32.xlu0 %v1127, 64
    %v1131 = vpop.permute.xlu0 %1130
    %v1133 = vmul.f32 %v1126, %v1131
    %1135 = vrot.lane.b32.xlu0 %v1133, 32
    %v1136 = vpop.permute.xlu0 %1135
    %v1138 = vadd.f32 %v1128, %v1136
    %v1139 = vtanh.pop %v1138
    %1141 = vrot.lane.b32.xlu0 %v1139, 64
    %v1142 = vpop.permute.xlu0 %1141
    %v1144 = vmul.f32 %v1126, %v1142
    %1146 = vrot.lane.b32.xlu0 %v1144, 32
    %v1147 = vpop.permute.xlu0 %1146
    %1150 = vrot.lane.b32.xlu0 %v1040, 64
    %v1151 = vpop.permute.xlu0 %1150
    %v1153 = vsel %vm131, %v1147, %v1151
    %v1155 = vsel %vm523, %v1153, 0
    %1157 = vmatprep.subr.mxu0 0.0
    %1158 = vmatpush1.msra.mxu0 %v508
    %1159 = vmatprep.subr.mxu0 0.0
    %1160 = vmatpush1.msra.mxu0 %v509
    %1161 = vmatprep.subr.mxu0 0.0
    %1162 = vmatpush1.msra.mxu0 %v510
    %1163 = vmatprep.subr.mxu0 0.0
    %1164 = vmatpush1.msra.mxu0 %v511
    %1165 = vmatprep.subr.mxu0 0.0
    %1166 = vmatpush1.msra.mxu0 %v512
    %1167 = vmatprep.subr.mxu0 0.0
    %1168 = vmatpush1.msra.mxu0 %v513
    %1169 = vmatprep.subr.mxu0 0.0
    %1170 = vmatpush1.msra.mxu0 %v514
    %1171 = vmatprep.subr.mxu0 0.0
    %1172 = vmatpush1.msra.mxu0 %v515
    %1173 = vmatprep.subr.mxu0 0.0
    %1174 = vmatpush1.msra.mxu0 0.0
    %1175 = vmatprep.subr.mxu0 0.0
    %1176 = vmatpush1.msra.mxu0 0.0
    %1177 = vmatprep.subr.mxu0 0.0
    %1178 = vmatpush1.msra.mxu0 0.0
    %1179 = vmatprep.subr.mxu0 0.0
    %1180 = vmatpush1.msra.mxu0 0.0
    %1181 = vmatprep.subr.mxu0 0.0
    %1182 = vmatpush1.msra.mxu0 0.0
    %1183 = vmatprep.subr.mxu0 0.0
    %1184 = vmatpush1.msra.mxu0 0.0
    %1185 = vmatprep.subr.mxu0 0.0
    %1186 = vmatpush1.msra.mxu0 0.0
    %1187 = vmatprep.subr.mxu0 0.0
    %1188 = vmatpush1.msra.mxu0 0.0
    %1189 = vmatprep.subr.mxu0 0.0
    %1190 = vmatpush1.msra.mxu0 0.0
    %1191 = vmatprep.subr.mxu0 0.0
    %1192 = vmatpush1.msra.mxu0 0.0
    %1193 = vmatprep.subr.mxu0 0.0
    %1194 = vmatpush1.msra.mxu0 0.0
    %1195 = vmatprep.subr.mxu0 0.0
    %1196 = vmatpush1.msra.mxu0 0.0
    %1197 = vmatprep.subr.mxu0 0.0
    %1198 = vmatpush1.msra.mxu0 0.0
    %1199 = vmatprep.subr.mxu0 0.0
    %1200 = vmatpush1.msra.mxu0 0.0
    %1201 = vmatprep.subr.mxu0 0.0
    %1202 = vmatpush1.msra.mxu0 0.0
    %1203 = vmatprep.subr.mxu0 0.0
    %1204 = vmatpush1.msra.mxu0 0.0
    %1205 = vmatprep.subr.mxu0 0.0
    %1206 = vmatpush1.msra.mxu0 0.0
    %1207 = vmatprep.subr.mxu0 0.0
    %1208 = vmatpush1.msra.mxu0 0.0
    %1209 = vmatprep.subr.mxu0 0.0
    %1210 = vmatpush1.msra.mxu0 0.0
    %1211 = vmatprep.subr.mxu0 0.0
    %1212 = vmatpush1.msra.mxu0 0.0
    %1213 = vmatprep.subr.mxu0 0.0
    %1214 = vmatpush1.msra.mxu0 0.0
    %1215 = vmatprep.subr.mxu0 0.0
    %1216 = vmatpush1.msra.mxu0 0.0
    %1217 = vmatprep.subr.mxu0 0.0
    %1218 = vmatpush1.msra.mxu0 0.0
    %1219 = vmatprep.subr.mxu0 0.0
    %1220 = vmatpush1.msra.mxu0 0.0
    %1221 = vmatprep.mubr.f32.mxu0 0.0
    %1222 = vmatmul.mubr.f32.gmra.mrb[0].mxu0 %v1155
    %v1223 = vpop.f32.mrb[0].mxu0
    %v1224 = vadd.f32 %v521, %v1223
    %v1225 = vpop.f32.mrb[0].mxu0
    %1226 = vdwg.mxu0
    %v1227 = vxor.u32 %v1224, 2147483648
    %v1228 = vmul.f32 %v1227, 1.442695
    %v1229 = vpow.pop %v1228
    %v1230 = vadd.f32 %v1229, 1.0
    %v1231 = vrcp.pop %v1230
    %v1232 = vmul.f32 1.0, %v1231
    %v1233 = vtanh.pop %v1224
    %v1234 = vmul.f32 %v1232, %v1034
    %1236 = vrot.lane.b32.xlu0 %v1233, 64
    %v1237 = vpop.permute.xlu0 %1236
    %v1239 = vmul.f32 %v1232, %v1237
    %1241 = vrot.lane.b32.xlu0 %v1239, 32
    %v1242 = vpop.permute.xlu0 %1241
    %v1244 = vadd.f32 %v1234, %v1242
    %v1245 = vtanh.pop %v1244
    %1247 = vrot.lane.b32.xlu0 %v1245, 64
    %v1248 = vpop.permute.xlu0 %1247
    %v1250 = vmul.f32 %v1232, %v1248
    %vm1251 = vcmp.eq.s32.totalorder %v76, 3
    %v1252 = vsel %vm1251, 1, 0
    %1253 = vset.pattern.permute.xlu0 0
    %1254 = vperm.xlu0 %1253, %v1252
    %v1255 = vpop.permute.xlu0 %1254
    %vm1256 = vcmp.eq.s32.totalorder %v1255, 1
    %v1257 = vsel %vm1256, %v1250, %v1047
    %v1258 = vsel %vm131, %v1147, 0
    %1260 = vmatprep.subr.mxu0 0.0
    %1261 = vmatpush1.msra.mxu0 %v401
    %1262 = vmatprep.subr.mxu0 0.0
    %1263 = vmatpush1.msra.mxu0 %v402
    %1264 = vmatprep.subr.mxu0 0.0
    %1265 = vmatpush1.msra.mxu0 %v403
    %1266 = vmatprep.subr.mxu0 0.0
    %1267 = vmatpush1.msra.mxu0 %v404
    %1268 = vmatprep.subr.mxu0 0.0
    %1269 = vmatpush1.msra.mxu0 0.0
    %1270 = vmatprep.subr.mxu0 0.0
    %1271 = vmatpush1.msra.mxu0 0.0
    %1272 = vmatprep.subr.mxu0 0.0
    %1273 = vmatpush1.msra.mxu0 0.0
    %1274 = vmatprep.subr.mxu0 0.0
    %1275 = vmatpush1.msra.mxu0 0.0
    %1276 = vmatprep.subr.mxu0 0.0
    %1277 = vmatpush1.msra.mxu0 0.0
    %1278 = vmatprep.subr.mxu0 0.0
    %1279 = vmatpush1.msra.mxu0 0.0
    %1280 = vmatprep.subr.mxu0 0.0
    %1281 = vmatpush1.msra.mxu0 0.0
    %1282 = vmatprep.subr.mxu0 0.0
    %1283 = vmatpush1.msra.mxu0 0.0
    %1284 = vmatprep.subr.mxu0 0.0
    %1285 = vmatpush1.msra.mxu0 0.0
    %1286 = vmatprep.subr.mxu0 0.0
    %1287 = vmatpush1.msra.mxu0 0.0
    %1288 = vmatprep.subr.mxu0 0.0
    %1289 = vmatpush1.msra.mxu0 0.0
    %1290 = vmatprep.subr.mxu0 0.0
    %1291 = vmatpush1.msra.mxu0 0.0
    %1292 = vmatprep.subr.mxu0 0.0
    %1293 = vmatpush1.msra.mxu0 0.0
    %1294 = vmatprep.subr.mxu0 0.0
    %1295 = vmatpush1.msra.mxu0 0.0
    %1296 = vmatprep.subr.mxu0 0.0
    %1297 = vmatpush1.msra.mxu0 0.0
    %1298 = vmatprep.subr.mxu0 0.0
    %1299 = vmatpush1.msra.mxu0 0.0
    %1300 = vmatprep.subr.mxu0 0.0
    %1301 = vmatpush1.msra.mxu0 0.0
    %1302 = vmatprep.subr.mxu0 0.0
    %1303 = vmatpush1.msra.mxu0 0.0
    %1304 = vmatprep.subr.mxu0 0.0
    %1305 = vmatpush1.msra.mxu0 0.0
    %1306 = vmatprep.subr.mxu0 0.0
    %1307 = vmatpush1.msra.mxu0 0.0
    %1308 = vmatprep.subr.mxu0 0.0
    %1309 = vmatpush1.msra.mxu0 0.0
    %1310 = vmatprep.subr.mxu0 0.0
    %1311 = vmatpush1.msra.mxu0 0.0
    %1312 = vmatprep.subr.mxu0 0.0
    %1313 = vmatpush1.msra.mxu0 0.0
    %1314 = vmatprep.subr.mxu0 0.0
    %1315 = vmatpush1.msra.mxu0 0.0
    %1316 = vmatprep.subr.mxu0 0.0
    %1317 = vmatpush1.msra.mxu0 0.0
    %1318 = vmatprep.subr.mxu0 0.0
    %1319 = vmatpush1.msra.mxu0 0.0
    %1320 = vmatprep.subr.mxu0 0.0
    %1321 = vmatpush1.msra.mxu0 0.0
    %1322 = vmatprep.subr.mxu0 0.0
    %1323 = vmatpush1.msra.mxu0 0.0
    %1324 = vmatprep.mubr.f32.mxu0 0.0
    %1325 = vmatmul.mubr.f32.gmra.mrb[0].mxu0 %v1258
    %v1326 = vpop.f32.mrb[0].mxu0
    %v1327 = vadd.f32 0.0, %v1326
    %v1328 = vpop.f32.mrb[0].mxu0
    %1329 = vdwg.mxu0
    %v1330 = vadd.f32 %v383, %v1327
    %v1331 = vxor.u32 %v1330, 2147483648
    %v1332 = vmul.f32 %v1331, 1.442695
    %v1333 = vpow.pop %v1332
    %v1334 = vadd.f32 %v1333, 1.0
    %v1335 = vrcp.pop %v1334
    %v1336 = vmul.f32 1.0, %v1335
    %v1337 = vtanh.pop %v1330
    %v1338 = vmul.f32 %v1336, %v1138
    %1340 = vrot.lane.b32.xlu0 %v1337, 64
    %v1341 = vpop.permute.xlu0 %1340
    %v1343 = vmul.f32 %v1336, %v1341
    %1345 = vrot.lane.b32.xlu0 %v1343, 32
    %v1346 = vpop.permute.xlu0 %1345
    %v1348 = vadd.f32 %v1338, %v1346
    %v1349 = vtanh.pop %v1348
    %1351 = vrot.lane.b32.xlu0 %v1349, 64
    %v1352 = vpop.permute.xlu0 %1351
    %v1354 = vmul.f32 %v1336, %v1352
    %1356 = vrot.lane.b32.xlu0 %v1354, 32
    %v1357 = vpop.permute.xlu0 %1356
    %1360 = vrot.lane.b32.xlu0 %v1250, 64
    %v1361 = vpop.permute.xlu0 %1360
    %v1363 = vsel %vm131, %v1357, %v1361
    %v1365 = vsel %vm523, %v1363, 0
    %1367 = vmatprep.subr.mxu0 0.0
    %1368 = vmatpush1.msra.mxu0 %v508
    %1369 = vmatprep.subr.mxu0 0.0
    %1370 = vmatpush1.msra.mxu0 %v509
    %1371 = vmatprep.subr.mxu0 0.0
    %1372 = vmatpush1.msra.mxu0 %v510
    %1373 = vmatprep.subr.mxu0 0.0
    %1374 = vmatpush1.msra.mxu0 %v511
    %1375 = vmatprep.subr.mxu0 0.0
    %1376 = vmatpush1.msra.mxu0 %v512
    %1377 = vmatprep.subr.mxu0 0.0
    %1378 = vmatpush1.msra.mxu0 %v513
    %1379 = vmatprep.subr.mxu0 0.0
    %1380 = vmatpush1.msra.mxu0 %v514
    %1381 = vmatprep.subr.mxu0 0.0
    %1382 = vmatpush1.msra.mxu0 %v515
    %1383 = vmatprep.subr.mxu0 0.0
    %1384 = vmatpush1.msra.mxu0 0.0
    %1385 = vmatprep.subr.mxu0 0.0
    %1386 = vmatpush1.msra.mxu0 0.0
    %1387 = vmatprep.subr.mxu0 0.0
    %1388 = vmatpush1.msra.mxu0 0.0
    %1389 = vmatprep.subr.mxu0 0.0
    %1390 = vmatpush1.msra.mxu0 0.0
    %1391 = vmatprep.subr.mxu0 0.0
    %1392 = vmatpush1.msra.mxu0 0.0
    %1393 = vmatprep.subr.mxu0 0.0
    %1394 = vmatpush1.msra.mxu0 0.0
    %1395 = vmatprep.subr.mxu0 0.0
    %1396 = vmatpush1.msra.mxu0 0.0
    %1397 = vmatprep.subr.mxu0 0.0
    %1398 = vmatpush1.msra.mxu0 0.0
    %1399 = vmatprep.subr.mxu0 0.0
    %1400 = vmatpush1.msra.mxu0 0.0
    %1401 = vmatprep.subr.mxu0 0.0
    %1402 = vmatpush1.msra.mxu0 0.0
    %1403 = vmatprep.subr.mxu0 0.0
    %1404 = vmatpush1.msra.mxu0 0.0
    %1405 = vmatprep.subr.mxu0 0.0
    %1406 = vmatpush1.msra.mxu0 0.0
    %1407 = vmatprep.subr.mxu0 0.0
    %1408 = vmatpush1.msra.mxu0 0.0
    %1409 = vmatprep.subr.mxu0 0.0
    %1410 = vmatpush1.msra.mxu0 0.0
    %1411 = vmatprep.subr.mxu0 0.0
    %1412 = vmatpush1.msra.mxu0 0.0
    %1413 = vmatprep.subr.mxu0 0.0
    %1414 = vmatpush1.msra.mxu0 0.0
    %1415 = vmatprep.subr.mxu0 0.0
    %1416 = vmatpush1.msra.mxu0 0.0
    %1417 = vmatprep.subr.mxu0 0.0
    %1418 = vmatpush1.msra.mxu0 0.0
    %1419 = vmatprep.subr.mxu0 0.0
    %1420 = vmatpush1.msra.mxu0 0.0
    %1421 = vmatprep.subr.mxu0 0.0
    %1422 = vmatpush1.msra.mxu0 0.0
    %1423 = vmatprep.subr.mxu0 0.0
    %1424 = vmatpush1.msra.mxu0 0.0
    %1425 = vmatprep.subr.mxu0 0.0
    %1426 = vmatpush1.msra.mxu0 0.0
    %1427 = vmatprep.subr.mxu0 0.0
    %1428 = vmatpush1.msra.mxu0 0.0
    %1429 = vmatprep.subr.mxu0 0.0
    %1430 = vmatpush1.msra.mxu0 0.0
    %1431 = vmatprep.mubr.f32.mxu0 0.0
    %1432 = vmatmul.mubr.f32.gmra.mrb[0].mxu0 %v1365
    %v1433 = vpop.f32.mrb[0].mxu0
    %v1434 = vadd.f32 %v521, %v1433
    %v1435 = vpop.f32.mrb[0].mxu0
    %1436 = vdwg.mxu0
    %v1437 = vxor.u32 %v1434, 2147483648
    %v1438 = vmul.f32 %v1437, 1.442695
    %v1439 = vpow.pop %v1438
    %v1440 = vadd.f32 %v1439, 1.0
    %v1441 = vrcp.pop %v1440
    %v1442 = vmul.f32 1.0, %v1441
    %v1443 = vtanh.pop %v1434
    %v1444 = vmul.f32 %v1442, %v1244
    %1446 = vrot.lane.b32.xlu0 %v1443, 64
    %v1447 = vpop.permute.xlu0 %1446
    %v1449 = vmul.f32 %v1442, %v1447
    %1451 = vrot.lane.b32.xlu0 %v1449, 32
    %v1452 = vpop.permute.xlu0 %1451
    %v1454 = vadd.f32 %v1444, %v1452
    %v1455 = vtanh.pop %v1454
    %1457 = vrot.lane.b32.xlu0 %v1455, 64
    %v1458 = vpop.permute.xlu0 %1457
    %v1460 = vmul.f32 %v1442, %v1458
    %vm1461 = vcmp.eq.s32.totalorder %v76, 4
    %v1462 = vsel %vm1461, 1, 0
    %1463 = vset.pattern.permute.xlu0 0
    %1464 = vperm.xlu0 %1463, %v1462
    %v1465 = vpop.permute.xlu0 %1464
    %vm1466 = vcmp.eq.s32.totalorder %v1465, 1
    %v1467 = vsel %vm1466, %v1460, %v1257
    %v1468 = vsel %vm131, %v1357, 0
    %1470 = vmatprep.subr.mxu0 0.0
    %1471 = vmatpush1.msra.mxu0 %v401
    %1472 = vmatprep.subr.mxu0 0.0
    %1473 = vmatpush1.msra.mxu0 %v402
    %1474 = vmatprep.subr.mxu0 0.0
    %1475 = vmatpush1.msra.mxu0 %v403
    %1476 = vmatprep.subr.mxu0 0.0
    %1477 = vmatpush1.msra.mxu0 %v404
    %1478 = vmatprep.subr.mxu0 0.0
    %1479 = vmatpush1.msra.mxu0 0.0
    %1480 = vmatprep.subr.mxu0 0.0
    %1481 = vmatpush1.msra.mxu0 0.0
    %1482 = vmatprep.subr.mxu0 0.0
    %1483 = vmatpush1.msra.mxu0 0.0
    %1484 = vmatprep.subr.mxu0 0.0
    %1485 = vmatpush1.msra.mxu0 0.0
    %1486 = vmatprep.subr.mxu0 0.0
    %1487 = vmatpush1.msra.mxu0 0.0
    %1488 = vmatprep.subr.mxu0 0.0
    %1489 = vmatpush1.msra.mxu0 0.0
    %1490 = vmatprep.subr.mxu0 0.0
    %1491 = vmatpush1.msra.mxu0 0.0
    %1492 = vmatprep.subr.mxu0 0.0
    %1493 = vmatpush1.msra.mxu0 0.0
    %1494 = vmatprep.subr.mxu0 0.0
    %1495 = vmatpush1.msra.mxu0 0.0
    %1496 = vmatprep.subr.mxu0 0.0
    %1497 = vmatpush1.msra.mxu0 0.0
    %1498 = vmatprep.subr.mxu0 0.0
    %1499 = vmatpush1.msra.mxu0 0.0
    %1500 = vmatprep.subr.mxu0 0.0
    %1501 = vmatpush1.msra.mxu0 0.0
    %1502 = vmatprep.subr.mxu0 0.0
    %1503 = vmatpush1.msra.mxu0 0.0
    %1504 = vmatprep.subr.mxu0 0.0
    %1505 = vmatpush1.msra.mxu0 0.0
    %1506 = vmatprep.subr.mxu0 0.0
    %1507 = vmatpush1.msra.mxu0 0.0
    %1508 = vmatprep.subr.mxu0 0.0
    %1509 = vmatpush1.msra.mxu0 0.0
    %1510 = vmatprep.subr.mxu0 0.0
    %1511 = vmatpush1.msra.mxu0 0.0
    %1512 = vmatprep.subr.mxu0 0.0
    %1513 = vmatpush1.msra.mxu0 0.0
    %1514 = vmatprep.subr.mxu0 0.0
    %1515 = vmatpush1.msra.mxu0 0.0
    %1516 = vmatprep.subr.mxu0 0.0
    %1517 = vmatpush1.msra.mxu0 0.0
    %1518 = vmatprep.subr.mxu0 0.0
    %1519 = vmatpush1.msra.mxu0 0.0
    %1520 = vmatprep.subr.mxu0 0.0
    %1521 = vmatpush1.msra.mxu0 0.0
    %1522 = vmatprep.subr.mxu0 0.0
    %1523 = vmatpush1.msra.mxu0 0.0
    %1524 = vmatprep.subr.mxu0 0.0
    %1525 = vmatpush1.msra.mxu0 0.0
    %1526 = vmatprep.subr.mxu0 0.0
    %1527 = vmatpush1.msra.mxu0 0.0
    %1528 = vmatprep.subr.mxu0 0.0
    %1529 = vmatpush1.msra.mxu0 0.0
    %1530 = vmatprep.subr.mxu0 0.0
    %1531 = vmatpush1.msra.mxu0 0.0
    %1532 = vmatprep.subr.mxu0 0.0
    %1533 = vmatpush1.msra.mxu0 0.0
    %1534 = vmatprep.mubr.f32.mxu0 0.0
    %1535 = vmatmul.mubr.f32.gmra.mrb[0].mxu0 %v1468
    %v1536 = vpop.f32.mrb[0].mxu0
    %v1537 = vadd.f32 0.0, %v1536
    %v1538 = vpop.f32.mrb[0].mxu0
    %1539 = vdwg.mxu0
    %v1540 = vadd.f32 %v388, %v1537
    %v1541 = vxor.u32 %v1540, 2147483648
    %v1542 = vmul.f32 %v1541, 1.442695
    %v1543 = vpow.pop %v1542
    %v1544 = vadd.f32 %v1543, 1.0
    %v1545 = vrcp.pop %v1544
    %v1546 = vmul.f32 1.0, %v1545
    %v1547 = vtanh.pop %v1540
    %v1548 = vmul.f32 %v1546, %v1348
    %1550 = vrot.lane.b32.xlu0 %v1547, 64
    %v1551 = vpop.permute.xlu0 %1550
    %v1553 = vmul.f32 %v1546, %v1551
    %1555 = vrot.lane.b32.xlu0 %v1553, 32
    %v1556 = vpop.permute.xlu0 %1555
    %v1558 = vadd.f32 %v1548, %v1556
    %v1559 = vtanh.pop %v1558
    %1561 = vrot.lane.b32.xlu0 %v1559, 64
    %v1562 = vpop.permute.xlu0 %1561
    %v1564 = vmul.f32 %v1546, %v1562
    %1566 = vrot.lane.b32.xlu0 %v1564, 32
    %v1567 = vpop.permute.xlu0 %1566
    %1570 = vrot.lane.b32.xlu0 %v1460, 64
    %v1571 = vpop.permute.xlu0 %1570
    %v1573 = vsel %vm131, %v1567, %v1571
    %v1575 = vsel %vm523, %v1573, 0
    %1577 = vmatprep.subr.mxu0 0.0
    %1578 = vmatpush1.msra.mxu0 %v508
    %1579 = vmatprep.subr.mxu0 0.0
    %1580 = vmatpush1.msra.mxu0 %v509
    %1581 = vmatprep.subr.mxu0 0.0
    %1582 = vmatpush1.msra.mxu0 %v510
    %1583 = vmatprep.subr.mxu0 0.0
    %1584 = vmatpush1.msra.mxu0 %v511
    %1585 = vmatprep.subr.mxu0 0.0
    %1586 = vmatpush1.msra.mxu0 %v512
    %1587 = vmatprep.subr.mxu0 0.0
    %1588 = vmatpush1.msra.mxu0 %v513
    %1589 = vmatprep.subr.mxu0 0.0
    %1590 = vmatpush1.msra.mxu0 %v514
    %1591 = vmatprep.subr.mxu0 0.0
    %1592 = vmatpush1.msra.mxu0 %v515
    %1593 = vmatprep.subr.mxu0 0.0
    %1594 = vmatpush1.msra.mxu0 0.0
    %1595 = vmatprep.subr.mxu0 0.0
    %1596 = vmatpush1.msra.mxu0 0.0
    %1597 = vmatprep.subr.mxu0 0.0
    %1598 = vmatpush1.msra.mxu0 0.0
    %1599 = vmatprep.subr.mxu0 0.0
    %1600 = vmatpush1.msra.mxu0 0.0
    %1601 = vmatprep.subr.mxu0 0.0
    %1602 = vmatpush1.msra.mxu0 0.0
    %1603 = vmatprep.subr.mxu0 0.0
    %1604 = vmatpush1.msra.mxu0 0.0
    %1605 = vmatprep.subr.mxu0 0.0
    %1606 = vmatpush1.msra.mxu0 0.0
    %1607 = vmatprep.subr.mxu0 0.0
    %1608 = vmatpush1.msra.mxu0 0.0
    %1609 = vmatprep.subr.mxu0 0.0
    %1610 = vmatpush1.msra.mxu0 0.0
    %1611 = vmatprep.subr.mxu0 0.0
    %1612 = vmatpush1.msra.mxu0 0.0
    %1613 = vmatprep.subr.mxu0 0.0
    %1614 = vmatpush1.msra.mxu0 0.0
    %1615 = vmatprep.subr.mxu0 0.0
    %1616 = vmatpush1.msra.mxu0 0.0
    %1617 = vmatprep.subr.mxu0 0.0
    %1618 = vmatpush1.msra.mxu0 0.0
    %1619 = vmatprep.subr.mxu0 0.0
    %1620 = vmatpush1.msra.mxu0 0.0
    %1621 = vmatprep.subr.mxu0 0.0
    %1622 = vmatpush1.msra.mxu0 0.0
    %1623 = vmatprep.subr.mxu0 0.0
    %1624 = vmatpush1.msra.mxu0 0.0
    %1625 = vmatprep.subr.mxu0 0.0
    %1626 = vmatpush1.msra.mxu0 0.0
    %1627 = vmatprep.subr.mxu0 0.0
    %1628 = vmatpush1.msra.mxu0 0.0
    %1629 = vmatprep.subr.mxu0 0.0
    %1630 = vmatpush1.msra.mxu0 0.0
    %1631 = vmatprep.subr.mxu0 0.0
    %1632 = vmatpush1.msra.mxu0 0.0
    %1633 = vmatprep.subr.mxu0 0.0
    %1634 = vmatpush1.msra.mxu0 0.0
    %1635 = vmatprep.subr.mxu0 0.0
    %1636 = vmatpush1.msra.mxu0 0.0
    %1637 = vmatprep.subr.mxu0 0.0
    %1638 = vmatpush1.msra.mxu0 0.0
    %1639 = vmatprep.subr.mxu0 0.0
    %1640 = vmatpush1.msra.mxu0 0.0
    %1641 = vmatprep.mubr.f32.mxu0 0.0
    %1642 = vmatmul.mubr.f32.gmra.mrb[0].mxu0 %v1575
    %v1643 = vpop.f32.mrb[0].mxu0
    %v1644 = vadd.f32 %v521, %v1643
    %v1645 = vpop.f32.mrb[0].mxu0
    %1646 = vdwg.mxu0
    %v1647 = vxor.u32 %v1644, 2147483648
    %v1648 = vmul.f32 %v1647, 1.442695
    %v1649 = vpow.pop %v1648
    %v1650 = vadd.f32 %v1649, 1.0
    %v1651 = vrcp.pop %v1650
    %v1652 = vmul.f32 1.0, %v1651
    %v1653 = vtanh.pop %v1644
    %v1654 = vmul.f32 %v1652, %v1454
    %1656 = vrot.lane.b32.xlu0 %v1653, 64
    %v1657 = vpop.permute.xlu0 %1656
    %v1659 = vmul.f32 %v1652, %v1657
    %1661 = vrot.lane.b32.xlu0 %v1659, 32
    %v1662 = vpop.permute.xlu0 %1661
    %v1664 = vadd.f32 %v1654, %v1662
    %v1665 = vtanh.pop %v1664
    %1667 = vrot.lane.b32.xlu0 %v1665, 64
    %v1668 = vpop.permute.xlu0 %1667
    %v1670 = vmul.f32 %v1652, %v1668
    %vm1671 = vcmp.eq.s32.totalorder %v76, 5
    %v1672 = vsel %vm1671, 1, 0
    %1673 = vset.pattern.permute.xlu0 0
    %1674 = vperm.xlu0 %1673, %v1672
    %v1675 = vpop.permute.xlu0 %1674
    %vm1676 = vcmp.eq.s32.totalorder %v1675, 1
    %v1677 = vsel %vm1676, %v1670, %v1467
    %v1678 = vsel %vm131, %v1567, 0
    %1680 = vmatprep.subr.mxu0 0.0
    %1681 = vmatpush1.msra.mxu0 %v401
    %1682 = vmatprep.subr.mxu0 0.0
    %1683 = vmatpush1.msra.mxu0 %v402
    %1684 = vmatprep.subr.mxu0 0.0
    %1685 = vmatpush1.msra.mxu0 %v403
    %1686 = vmatprep.subr.mxu0 0.0
    %1687 = vmatpush1.msra.mxu0 %v404
    %1688 = vmatprep.subr.mxu0 0.0
    %1689 = vmatpush1.msra.mxu0 0.0
    %1690 = vmatprep.subr.mxu0 0.0
    %1691 = vmatpush1.msra.mxu0 0.0
    %1692 = vmatprep.subr.mxu0 0.0
    %1693 = vmatpush1.msra.mxu0 0.0
    %1694 = vmatprep.subr.mxu0 0.0
    %1695 = vmatpush1.msra.mxu0 0.0
    %1696 = vmatprep.subr.mxu0 0.0
    %1697 = vmatpush1.msra.mxu0 0.0
    %1698 = vmatprep.subr.mxu0 0.0
    %1699 = vmatpush1.msra.mxu0 0.0
    %1700 = vmatprep.subr.mxu0 0.0
    %1701 = vmatpush1.msra.mxu0 0.0
    %1702 = vmatprep.subr.mxu0 0.0
    %1703 = vmatpush1.msra.mxu0 0.0
    %1704 = vmatprep.subr.mxu0 0.0
    %1705 = vmatpush1.msra.mxu0 0.0
    %1706 = vmatprep.subr.mxu0 0.0
    %1707 = vmatpush1.msra.mxu0 0.0
    %1708 = vmatprep.subr.mxu0 0.0
    %1709 = vmatpush1.msra.mxu0 0.0
    %1710 = vmatprep.subr.mxu0 0.0
    %1711 = vmatpush1.msra.mxu0 0.0
    %1712 = vmatprep.subr.mxu0 0.0
    %1713 = vmatpush1.msra.mxu0 0.0
    %1714 = vmatprep.subr.mxu0 0.0
    %1715 = vmatpush1.msra.mxu0 0.0
    %1716 = vmatprep.subr.mxu0 0.0
    %1717 = vmatpush1.msra.mxu0 0.0
    %1718 = vmatprep.subr.mxu0 0.0
    %1719 = vmatpush1.msra.mxu0 0.0
    %1720 = vmatprep.subr.mxu0 0.0
    %1721 = vmatpush1.msra.mxu0 0.0
    %1722 = vmatprep.subr.mxu0 0.0
    %1723 = vmatpush1.msra.mxu0 0.0
    %1724 = vmatprep.subr.mxu0 0.0
    %1725 = vmatpush1.msra.mxu0 0.0
    %1726 = vmatprep.subr.mxu0 0.0
    %1727 = vmatpush1.msra.mxu0 0.0
    %1728 = vmatprep.subr.mxu0 0.0
    %1729 = vmatpush1.msra.mxu0 0.0
    %1730 = vmatprep.subr.mxu0 0.0
    %1731 = vmatpush1.msra.mxu0 0.0
    %1732 = vmatprep.subr.mxu0 0.0
    %1733 = vmatpush1.msra.mxu0 0.0
    %1734 = vmatprep.subr.mxu0 0.0
    %1735 = vmatpush1.msra.mxu0 0.0
    %1736 = vmatprep.subr.mxu0 0.0
    %1737 = vmatpush1.msra.mxu0 0.0
    %1738 = vmatprep.subr.mxu0 0.0
    %1739 = vmatpush1.msra.mxu0 0.0
    %1740 = vmatprep.subr.mxu0 0.0
    %1741 = vmatpush1.msra.mxu0 0.0
    %1742 = vmatprep.subr.mxu0 0.0
    %1743 = vmatpush1.msra.mxu0 0.0
    %1744 = vmatprep.mubr.f32.mxu0 0.0
    %1745 = vmatmul.mubr.f32.gmra.mrb[0].mxu0 %v1678
    %v1746 = vpop.f32.mrb[0].mxu0
    %v1747 = vadd.f32 0.0, %v1746
    %v1748 = vpop.f32.mrb[0].mxu0
    %1749 = vdwg.mxu0
    %v1750 = vadd.f32 %v393, %v1747
    %v1751 = vxor.u32 %v1750, 2147483648
    %v1752 = vmul.f32 %v1751, 1.442695
    %v1753 = vpow.pop %v1752
    %v1754 = vadd.f32 %v1753, 1.0
    %v1755 = vrcp.pop %v1754
    %v1756 = vmul.f32 1.0, %v1755
    %v1757 = vtanh.pop %v1750
    %v1758 = vmul.f32 %v1756, %v1558
    %1760 = vrot.lane.b32.xlu0 %v1757, 64
    %v1761 = vpop.permute.xlu0 %1760
    %v1763 = vmul.f32 %v1756, %v1761
    %1765 = vrot.lane.b32.xlu0 %v1763, 32
    %v1766 = vpop.permute.xlu0 %1765
    %v1768 = vadd.f32 %v1758, %v1766
    %v1769 = vtanh.pop %v1768
    %1771 = vrot.lane.b32.xlu0 %v1769, 64
    %v1772 = vpop.permute.xlu0 %1771
    %v1774 = vmul.f32 %v1756, %v1772
    %1776 = vrot.lane.b32.xlu0 %v1774, 32
    %v1777 = vpop.permute.xlu0 %1776
    %1780 = vrot.lane.b32.xlu0 %v1670, 64
    %v1781 = vpop.permute.xlu0 %1780
    %v1783 = vsel %vm131, %v1777, %v1781
    %v1785 = vsel %vm523, %v1783, 0
    %1787 = vmatprep.subr.mxu0 0.0
    %1788 = vmatpush1.msra.mxu0 %v508
    %1789 = vmatprep.subr.mxu0 0.0
    %1790 = vmatpush1.msra.mxu0 %v509
    %1791 = vmatprep.subr.mxu0 0.0
    %1792 = vmatpush1.msra.mxu0 %v510
    %1793 = vmatprep.subr.mxu0 0.0
    %1794 = vmatpush1.msra.mxu0 %v511
    %1795 = vmatprep.subr.mxu0 0.0
    %1796 = vmatpush1.msra.mxu0 %v512
    %1797 = vmatprep.subr.mxu0 0.0
    %1798 = vmatpush1.msra.mxu0 %v513
    %1799 = vmatprep.subr.mxu0 0.0
    %1800 = vmatpush1.msra.mxu0 %v514
    %1801 = vmatprep.subr.mxu0 0.0
    %1802 = vmatpush1.msra.mxu0 %v515
    %1803 = vmatprep.subr.mxu0 0.0
    %1804 = vmatpush1.msra.mxu0 0.0
    %1805 = vmatprep.subr.mxu0 0.0
    %1806 = vmatpush1.msra.mxu0 0.0
    %1807 = vmatprep.subr.mxu0 0.0
    %1808 = vmatpush1.msra.mxu0 0.0
    %1809 = vmatprep.subr.mxu0 0.0
    %1810 = vmatpush1.msra.mxu0 0.0
    %1811 = vmatprep.subr.mxu0 0.0
    %1812 = vmatpush1.msra.mxu0 0.0
    %1813 = vmatprep.subr.mxu0 0.0
    %1814 = vmatpush1.msra.mxu0 0.0
    %1815 = vmatprep.subr.mxu0 0.0
    %1816 = vmatpush1.msra.mxu0 0.0
    %1817 = vmatprep.subr.mxu0 0.0
    %1818 = vmatpush1.msra.mxu0 0.0
    %1819 = vmatprep.subr.mxu0 0.0
    %1820 = vmatpush1.msra.mxu0 0.0
    %1821 = vmatprep.subr.mxu0 0.0
    %1822 = vmatpush1.msra.mxu0 0.0
    %1823 = vmatprep.subr.mxu0 0.0
    %1824 = vmatpush1.msra.mxu0 0.0
    %1825 = vmatprep.subr.mxu0 0.0
    %1826 = vmatpush1.msra.mxu0 0.0
    %1827 = vmatprep.subr.mxu0 0.0
    %1828 = vmatpush1.msra.mxu0 0.0
    %1829 = vmatprep.subr.mxu0 0.0
    %1830 = vmatpush1.msra.mxu0 0.0
    %1831 = vmatprep.subr.mxu0 0.0
    %1832 = vmatpush1.msra.mxu0 0.0
    %1833 = vmatprep.subr.mxu0 0.0
    %1834 = vmatpush1.msra.mxu0 0.0
    %1835 = vmatprep.subr.mxu0 0.0
    %1836 = vmatpush1.msra.mxu0 0.0
    %1837 = vmatprep.subr.mxu0 0.0
    %1838 = vmatpush1.msra.mxu0 0.0
    %1839 = vmatprep.subr.mxu0 0.0
    %1840 = vmatpush1.msra.mxu0 0.0
    %1841 = vmatprep.subr.mxu0 0.0
    %1842 = vmatpush1.msra.mxu0 0.0
    %1843 = vmatprep.subr.mxu0 0.0
    %1844 = vmatpush1.msra.mxu0 0.0
    %1845 = vmatprep.subr.mxu0 0.0
    %1846 = vmatpush1.msra.mxu0 0.0
    %1847 = vmatprep.subr.mxu0 0.0
    %1848 = vmatpush1.msra.mxu0 0.0
    %1849 = vmatprep.subr.mxu0 0.0
    %1850 = vmatpush1.msra.mxu0 0.0
    %1851 = vmatprep.mubr.f32.mxu0 0.0
    %1852 = vmatmul.mubr.f32.gmra.mrb[0].mxu0 %v1785
    %v1853 = vpop.f32.mrb[0].mxu0
    %v1854 = vadd.f32 %v521, %v1853
    %v1855 = vpop.f32.mrb[0].mxu0
    %1856 = vdwg.mxu0
    %v1857 = vxor.u32 %v1854, 2147483648
    %v1858 = vmul.f32 %v1857, 1.442695
    %v1859 = vpow.pop %v1858
    %v1860 = vadd.f32 %v1859, 1.0
    %v1861 = vrcp.pop %v1860
    %v1862 = vmul.f32 1.0, %v1861
    %v1863 = vtanh.pop %v1854
    %v1864 = vmul.f32 %v1862, %v1664
    %1866 = vrot.lane.b32.xlu0 %v1863, 64
    %v1867 = vpop.permute.xlu0 %1866
    %v1869 = vmul.f32 %v1862, %v1867
    %1871 = vrot.lane.b32.xlu0 %v1869, 32
    %v1872 = vpop.permute.xlu0 %1871
    %v1874 = vadd.f32 %v1864, %v1872
    %v1875 = vtanh.pop %v1874
    %1877 = vrot.lane.b32.xlu0 %v1875, 64
    %v1878 = vpop.permute.xlu0 %1877
    %v1880 = vmul.f32 %v1862, %v1878
    %vm1881 = vcmp.eq.s32.totalorder %v76, 6
    %v1882 = vsel %vm1881, 1, 0
    %1883 = vset.pattern.permute.xlu0 0
    %1884 = vperm.xlu0 %1883, %v1882
    %v1885 = vpop.permute.xlu0 %1884
    %vm1886 = vcmp.eq.s32.totalorder %v1885, 1
    %v1887 = vsel %vm1886, %v1880, %v1677
    %v1888 = vsel %vm131, %v1777, 0
    %1890 = vmatprep.subr.mxu0 0.0
    %1891 = vmatpush1.msra.mxu0 %v401
    %1892 = vmatprep.subr.mxu0 0.0
    %1893 = vmatpush1.msra.mxu0 %v402
    %1894 = vmatprep.subr.mxu0 0.0
    %1895 = vmatpush1.msra.mxu0 %v403
    %1896 = vmatprep.subr.mxu0 0.0
    %1897 = vmatpush1.msra.mxu0 %v404
    %1898 = vmatprep.subr.mxu0 0.0
    %1899 = vmatpush1.msra.mxu0 0.0
    %1900 = vmatprep.subr.mxu0 0.0
    %1901 = vmatpush1.msra.mxu0 0.0
    %1902 = vmatprep.subr.mxu0 0.0
    %1903 = vmatpush1.msra.mxu0 0.0
    %1904 = vmatprep.subr.mxu0 0.0
    %1905 = vmatpush1.msra.mxu0 0.0
    %1906 = vmatprep.subr.mxu0 0.0
    %1907 = vmatpush1.msra.mxu0 0.0
    %1908 = vmatprep.subr.mxu0 0.0
    %1909 = vmatpush1.msra.mxu0 0.0
    %1910 = vmatprep.subr.mxu0 0.0
    %1911 = vmatpush1.msra.mxu0 0.0
    %1912 = vmatprep.subr.mxu0 0.0
    %1913 = vmatpush1.msra.mxu0 0.0
    %1914 = vmatprep.subr.mxu0 0.0
    %1915 = vmatpush1.msra.mxu0 0.0
    %1916 = vmatprep.subr.mxu0 0.0
    %1917 = vmatpush1.msra.mxu0 0.0
    %1918 = vmatprep.subr.mxu0 0.0
    %1919 = vmatpush1.msra.mxu0 0.0
    %1920 = vmatprep.subr.mxu0 0.0
    %1921 = vmatpush1.msra.mxu0 0.0
    %1922 = vmatprep.subr.mxu0 0.0
    %1923 = vmatpush1.msra.mxu0 0.0
    %1924 = vmatprep.subr.mxu0 0.0
    %1925 = vmatpush1.msra.mxu0 0.0
    %1926 = vmatprep.subr.mxu0 0.0
    %1927 = vmatpush1.msra.mxu0 0.0
    %1928 = vmatprep.subr.mxu0 0.0
    %1929 = vmatpush1.msra.mxu0 0.0
    %1930 = vmatprep.subr.mxu0 0.0
    %1931 = vmatpush1.msra.mxu0 0.0
    %1932 = vmatprep.subr.mxu0 0.0
    %1933 = vmatpush1.msra.mxu0 0.0
    %1934 = vmatprep.subr.mxu0 0.0
    %1935 = vmatpush1.msra.mxu0 0.0
    %1936 = vmatprep.subr.mxu0 0.0
    %1937 = vmatpush1.msra.mxu0 0.0
    %1938 = vmatprep.subr.mxu0 0.0
    %1939 = vmatpush1.msra.mxu0 0.0
    %1940 = vmatprep.subr.mxu0 0.0
    %1941 = vmatpush1.msra.mxu0 0.0
    %1942 = vmatprep.subr.mxu0 0.0
    %1943 = vmatpush1.msra.mxu0 0.0
    %1944 = vmatprep.subr.mxu0 0.0
    %1945 = vmatpush1.msra.mxu0 0.0
    %1946 = vmatprep.subr.mxu0 0.0
    %1947 = vmatpush1.msra.mxu0 0.0
    %1948 = vmatprep.subr.mxu0 0.0
    %1949 = vmatpush1.msra.mxu0 0.0
    %1950 = vmatprep.subr.mxu0 0.0
    %1951 = vmatpush1.msra.mxu0 0.0
    %1952 = vmatprep.subr.mxu0 0.0
    %1953 = vmatpush1.msra.mxu0 0.0
    %1954 = vmatprep.mubr.f32.mxu0 0.0
    %1955 = vmatmul.mubr.f32.gmra.mrb[0].mxu0 %v1888
    %v1956 = vpop.f32.mrb[0].mxu0
    %v1957 = vadd.f32 0.0, %v1956
    %v1958 = vpop.f32.mrb[0].mxu0
    %1959 = vdwg.mxu0
    %v1960 = vadd.f32 %v398, %v1957
    %v1961 = vxor.u32 %v1960, 2147483648
    %v1962 = vmul.f32 %v1961, 1.442695
    %v1963 = vpow.pop %v1962
    %v1964 = vadd.f32 %v1963, 1.0
    %v1965 = vrcp.pop %v1964
    %v1966 = vmul.f32 1.0, %v1965
    %v1967 = vtanh.pop %v1960
    %v1968 = vmul.f32 %v1966, %v1768
    %1970 = vrot.lane.b32.xlu0 %v1967, 64
    %v1971 = vpop.permute.xlu0 %1970
    %v1973 = vmul.f32 %v1966, %v1971
    %1975 = vrot.lane.b32.xlu0 %v1973, 32
    %v1976 = vpop.permute.xlu0 %1975
    %v1978 = vadd.f32 %v1968, %v1976
    %v1979 = vtanh.pop %v1978
    %1981 = vrot.lane.b32.xlu0 %v1979, 64
    %v1982 = vpop.permute.xlu0 %1981
    %v1984 = vmul.f32 %v1966, %v1982
    %1986 = vrot.lane.b32.xlu0 %v1984, 32
    %v1987 = vpop.permute.xlu0 %1986
    %1990 = vrot.lane.b32.xlu0 %v1880, 64
    %v1991 = vpop.permute.xlu0 %1990
    %v1993 = vsel %vm131, %v1987, %v1991
    %v1995 = vsel %vm523, %v1993, 0
    %1997 = vmatprep.subr.mxu0 0.0
    %1998 = vmatpush1.msra.mxu0 %v508
    %1999 = vmatprep.subr.mxu0 0.0
    %2000 = vmatpush1.msra.mxu0 %v509
    %2001 = vmatprep.subr.mxu0 0.0
    %2002 = vmatpush1.msra.mxu0 %v510
    %2003 = vmatprep.subr.mxu0 0.0
    %2004 = vmatpush1.msra.mxu0 %v511
    %2005 = vmatprep.subr.mxu0 0.0
    %2006 = vmatpush1.msra.mxu0 %v512
    %2007 = vmatprep.subr.mxu0 0.0
    %2008 = vmatpush1.msra.mxu0 %v513
    %2009 = vmatprep.subr.mxu0 0.0
    %2010 = vmatpush1.msra.mxu0 %v514
    %2011 = vmatprep.subr.mxu0 0.0
    %2012 = vmatpush1.msra.mxu0 %v515
    %2013 = vmatprep.subr.mxu0 0.0
    %2014 = vmatpush1.msra.mxu0 0.0
    %2015 = vmatprep.subr.mxu0 0.0
    %2016 = vmatpush1.msra.mxu0 0.0
    %2017 = vmatprep.subr.mxu0 0.0
    %2018 = vmatpush1.msra.mxu0 0.0
    %2019 = vmatprep.subr.mxu0 0.0
    %2020 = vmatpush1.msra.mxu0 0.0
    %2021 = vmatprep.subr.mxu0 0.0
    %2022 = vmatpush1.msra.mxu0 0.0
    %2023 = vmatprep.subr.mxu0 0.0
    %2024 = vmatpush1.msra.mxu0 0.0
    %2025 = vmatprep.subr.mxu0 0.0
    %2026 = vmatpush1.msra.mxu0 0.0
    %2027 = vmatprep.subr.mxu0 0.0
    %2028 = vmatpush1.msra.mxu0 0.0
    %2029 = vmatprep.subr.mxu0 0.0
    %2030 = vmatpush1.msra.mxu0 0.0
    %2031 = vmatprep.subr.mxu0 0.0
    %2032 = vmatpush1.msra.mxu0 0.0
    %2033 = vmatprep.subr.mxu0 0.0
    %2034 = vmatpush1.msra.mxu0 0.0
    %2035 = vmatprep.subr.mxu0 0.0
    %2036 = vmatpush1.msra.mxu0 0.0
    %2037 = vmatprep.subr.mxu0 0.0
    %2038 = vmatpush1.msra.mxu0 0.0
    %2039 = vmatprep.subr.mxu0 0.0
    %2040 = vmatpush1.msra.mxu0 0.0
    %2041 = vmatprep.subr.mxu0 0.0
    %2042 = vmatpush1.msra.mxu0 0.0
    %2043 = vmatprep.subr.mxu0 0.0
    %2044 = vmatpush1.msra.mxu0 0.0
    %2045 = vmatprep.subr.mxu0 0.0
    %2046 = vmatpush1.msra.mxu0 0.0
    %2047 = vmatprep.subr.mxu0 0.0
    %2048 = vmatpush1.msra.mxu0 0.0
    %2049 = vmatprep.subr.mxu0 0.0
    %2050 = vmatpush1.msra.mxu0 0.0
    %2051 = vmatprep.subr.mxu0 0.0
    %2052 = vmatpush1.msra.mxu0 0.0
    %2053 = vmatprep.subr.mxu0 0.0
    %2054 = vmatpush1.msra.mxu0 0.0
    %2055 = vmatprep.subr.mxu0 0.0
    %2056 = vmatpush1.msra.mxu0 0.0
    %2057 = vmatprep.subr.mxu0 0.0
    %2058 = vmatpush1.msra.mxu0 0.0
    %2059 = vmatprep.subr.mxu0 0.0
    %2060 = vmatpush1.msra.mxu0 0.0
    %2061 = vmatprep.mubr.f32.mxu0 0.0
    %2062 = vmatmul.mubr.f32.gmra.mrb[0].mxu0 %v1995
    %v2063 = vpop.f32.mrb[0].mxu0
    %v2064 = vadd.f32 %v521, %v2063
    %v2065 = vpop.f32.mrb[0].mxu0
    %2066 = vdwg.mxu0
    %v2067 = vxor.u32 %v2064, 2147483648
    %v2068 = vmul.f32 %v2067, 1.442695
    %v2069 = vpow.pop %v2068
    %v2070 = vadd.f32 %v2069, 1.0
    %v2071 = vrcp.pop %v2070
    %v2072 = vmul.f32 1.0, %v2071
    %v2073 = vtanh.pop %v2064
    %v2074 = vmul.f32 %v2072, %v1874
    %2076 = vrot.lane.b32.xlu0 %v2073, 64
    %v2077 = vpop.permute.xlu0 %2076
    %v2079 = vmul.f32 %v2072, %v2077
    %2081 = vrot.lane.b32.xlu0 %v2079, 32
    %v2082 = vpop.permute.xlu0 %2081
    %v2084 = vadd.f32 %v2074, %v2082
    %v2085 = vtanh.pop %v2084
    %2087 = vrot.lane.b32.xlu0 %v2085, 64
    %v2088 = vpop.permute.xlu0 %2087
    %v2090 = vmul.f32 %v2072, %v2088
    %vm2091 = vcmp.eq.s32.totalorder %v76, 7
    %v2092 = vsel %vm2091, 1, 0
    %2093 = vset.pattern.permute.xlu0 0
    %2094 = vperm.xlu0 %2093, %v2092
    %v2095 = vpop.permute.xlu0 %2094
    %vm2096 = vcmp.eq.s32.totalorder %v2095, 1
    %v2097 = vsel %vm2096, %v2090, %v1887
    %v2098 = vld [vmem:[#allocation5] sm:$0xff]
    %v2099 = vld [vmem:[#allocation5 + $0x8] sm:$0xff]
    %v2100 = vld [vmem:[#allocation5 + $0x10] sm:$0xff]
    %v2101 = vld [vmem:[#allocation5 + $0x18] sm:$0xff]
    %v2102 = vld [vmem:[%s9] sm:$0x1]
    %v2104 = vlaneseq
    %v2105 = vshrl.u32 %v2104, 7
    %v2106 = vsub.s32 0, %v2105
    %v2107 = vrot.slane %v2102, %v2106
    %2110 = vrot.lane.b32.xlu0 %v2097, 32
    %v2111 = vpop.permute.xlu0 %2110
    %v2112 = vsel %vm131, %v2111, 0
    %2114 = vmatprep.subr.mxu0 0.0
    %2115 = vmatpush1.msra.mxu0 %v2098
    %2116 = vmatprep.subr.mxu0 0.0
    %2117 = vmatpush1.msra.mxu0 %v2099
    %2118 = vmatprep.subr.mxu0 0.0
    %2119 = vmatpush1.msra.mxu0 %v2100
    %2120 = vmatprep.subr.mxu0 0.0
    %2121 = vmatpush1.msra.mxu0 %v2101
    %2122 = vmatprep.subr.mxu0 0.0
    %2123 = vmatpush1.msra.mxu0 0.0
    %2124 = vmatprep.subr.mxu0 0.0
    %2125 = vmatpush1.msra.mxu0 0.0
    %2126 = vmatprep.subr.mxu0 0.0
    %2127 = vmatpush1.msra.mxu0 0.0
    %2128 = vmatprep.subr.mxu0 0.0
    %2129 = vmatpush1.msra.mxu0 0.0
    %2130 = vmatprep.subr.mxu0 0.0
    %2131 = vmatpush1.msra.mxu0 0.0
    %2132 = vmatprep.subr.mxu0 0.0
    %2133 = vmatpush1.msra.mxu0 0.0
    %2134 = vmatprep.subr.mxu0 0.0
    %2135 = vmatpush1.msra.mxu0 0.0
    %2136 = vmatprep.subr.mxu0 0.0
    %2137 = vmatpush1.msra.mxu0 0.0
    %2138 = vmatprep.subr.mxu0 0.0
    %2139 = vmatpush1.msra.mxu0 0.0
    %2140 = vmatprep.subr.mxu0 0.0
    %2141 = vmatpush1.msra.mxu0 0.0
    %2142 = vmatprep.subr.mxu0 0.0
    %2143 = vmatpush1.msra.mxu0 0.0
    %2144 = vmatprep.subr.mxu0 0.0
    %2145 = vmatpush1.msra.mxu0 0.0
    %2146 = vmatprep.subr.mxu0 0.0
    %2147 = vmatpush1.msra.mxu0 0.0
    %2148 = vmatprep.subr.mxu0 0.0
    %2149 = vmatpush1.msra.mxu0 0.0
    %2150 = vmatprep.subr.mxu0 0.0
    %2151 = vmatpush1.msra.mxu0 0.0
    %2152 = vmatprep.subr.mxu0 0.0
    %2153 = vmatpush1.msra.mxu0 0.0
    %2154 = vmatprep.subr.mxu0 0.0
    %2155 = vmatpush1.msra.mxu0 0.0
    %2156 = vmatprep.subr.mxu0 0.0
    %2157 = vmatpush1.msra.mxu0 0.0
    %2158 = vmatprep.subr.mxu0 0.0
    %2159 = vmatpush1.msra.mxu0 0.0
    %2160 = vmatprep.subr.mxu0 0.0
    %2161 = vmatpush1.msra.mxu0 0.0
    %2162 = vmatprep.subr.mxu0 0.0
    %2163 = vmatpush1.msra.mxu0 0.0
    %2164 = vmatprep.subr.mxu0 0.0
    %2165 = vmatpush1.msra.mxu0 0.0
    %2166 = vmatprep.subr.mxu0 0.0
    %2167 = vmatpush1.msra.mxu0 0.0
    %2168 = vmatprep.subr.mxu0 0.0
    %2169 = vmatpush1.msra.mxu0 0.0
    %2170 = vmatprep.subr.mxu0 0.0
    %2171 = vmatpush1.msra.mxu0 0.0
    %2172 = vmatprep.subr.mxu0 0.0
    %2173 = vmatpush1.msra.mxu0 0.0
    %2174 = vmatprep.subr.mxu0 0.0
    %2175 = vmatpush1.msra.mxu0 0.0
    %2176 = vmatprep.subr.mxu0 0.0
    %2177 = vmatpush1.msra.mxu0 0.0
    %2178 = vmatprep.mubr.f32.mxu0 0.0
    %2179 = vmatmul.mubr.f32.gmra.mrb[0].mxu0 %v2112
    %v2180 = vpop.f32.mrb[0].mxu0
    %v2181 = vadd.f32 %v2107, %v2180
    %v2182 = vpop.f32.mrb[0].mxu0
    %2183 = vdwg.mxu0
    %v2184 = vmax.f32 %v2181, 0.0
    %v2185 = vld [vmem:[%s10] sm:$0xff]
    %v2186 = vld [vmem:[%s10 + $0x8] sm:$0xff]
    %v2187 = vld [vmem:[%s10 + $0x10] sm:$0xff]
    %v2188 = vld [vmem:[%s10 + $0x18] sm:$0xff]
    %v2189 = vld [vmem:[%s10 + $0x20] sm:$0xff]
    %v2190 = vld [vmem:[%s10 + $0x28] sm:$0xff]
    %v2191 = vld [vmem:[%s10 + $0x30] sm:$0xff]
    %v2192 = vld [vmem:[%s10 + $0x38] sm:$0xff]
    %v2193 = vld [vmem:[%s11] sm:$0x1]
    %v2195 = vlaneseq
    %v2196 = vshrl.u32 %v2195, 7
    %v2197 = vsub.s32 0, %v2196
    %v2198 = vrot.slane %v2193, %v2197
    %v2201 = vsel %vm523, %v2184, 0
    %2203 = vmatprep.subr.mxu0 0.0
    %2204 = vmatpush1.msra.mxu0 %v2185
    %2205 = vmatprep.subr.mxu0 0.0
    %2206 = vmatpush1.msra.mxu0 %v2186
    %2207 = vmatprep.subr.mxu0 0.0
    %2208 = vmatpush1.msra.mxu0 %v2187
    %2209 = vmatprep.subr.mxu0 0.0
    %2210 = vmatpush1.msra.mxu0 %v2188
    %2211 = vmatprep.subr.mxu0 0.0
    %2212 = vmatpush1.msra.mxu0 %v2189
    %2213 = vmatprep.subr.mxu0 0.0
    %2214 = vmatpush1.msra.mxu0 %v2190
    %2215 = vmatprep.subr.mxu0 0.0
    %2216 = vmatpush1.msra.mxu0 %v2191
    %2217 = vmatprep.subr.mxu0 0.0
    %2218 = vmatpush1.msra.mxu0 %v2192
    %2219 = vmatprep.subr.mxu0 0.0
    %2220 = vmatpush1.msra.mxu0 0.0
    %2221 = vmatprep.subr.mxu0 0.0
    %2222 = vmatpush1.msra.mxu0 0.0
    %2223 = vmatprep.subr.mxu0 0.0
    %2224 = vmatpush1.msra.mxu0 0.0
    %2225 = vmatprep.subr.mxu0 0.0
    %2226 = vmatpush1.msra.mxu0 0.0
    %2227 = vmatprep.subr.mxu0 0.0
    %2228 = vmatpush1.msra.mxu0 0.0
    %2229 = vmatprep.subr.mxu0 0.0
    %2230 = vmatpush1.msra.mxu0 0.0
    %2231 = vmatprep.subr.mxu0 0.0
    %2232 = vmatpush1.msra.mxu0 0.0
    %2233 = vmatprep.subr.mxu0 0.0
    %2234 = vmatpush1.msra.mxu0 0.0
    %2235 = vmatprep.subr.mxu0 0.0
    %2236 = vmatpush1.msra.mxu0 0.0
    %2237 = vmatprep.subr.mxu0 0.0
    %2238 = vmatpush1.msra.mxu0 0.0
    %2239 = vmatprep.subr.mxu0 0.0
    %2240 = vmatpush1.msra.mxu0 0.0
    %2241 = vmatprep.subr.mxu0 0.0
    %2242 = vmatpush1.msra.mxu0 0.0
    %2243 = vmatprep.subr.mxu0 0.0
    %2244 = vmatpush1.msra.mxu0 0.0
    %2245 = vmatprep.subr.mxu0 0.0
    %2246 = vmatpush1.msra.mxu0 0.0
    %2247 = vmatprep.subr.mxu0 0.0
    %2248 = vmatpush1.msra.mxu0 0.0
    %2249 = vmatprep.subr.mxu0 0.0
    %2250 = vmatpush1.msra.mxu0 0.0
    %2251 = vmatprep.subr.mxu0 0.0
    %2252 = vmatpush1.msra.mxu0 0.0
    %2253 = vmatprep.subr.mxu0 0.0
    %2254 = vmatpush1.msra.mxu0 0.0
    %2255 = vmatprep.subr.mxu0 0.0
    %2256 = vmatpush1.msra.mxu0 0.0
    %2257 = vmatprep.subr.mxu0 0.0
    %2258 = vmatpush1.msra.mxu0 0.0
    %2259 = vmatprep.subr.mxu0 0.0
    %2260 = vmatpush1.msra.mxu0 0.0
    %2261 = vmatprep.subr.mxu0 0.0
    %2262 = vmatpush1.msra.mxu0 0.0
    %2263 = vmatprep.subr.mxu0 0.0
    %2264 = vmatpush1.msra.mxu0 0.0
    %2265 = vmatprep.subr.mxu0 0.0
    %2266 = vmatpush1.msra.mxu0 0.0
    %2267 = vmatprep.mubr.f32.mxu0 0.0
    %2268 = vmatmul.mubr.f32.gmra.mrb[0].mxu0 %v2201
    %v2269 = vpop.f32.mrb[0].mxu0
    %v2270 = vadd.f32 %v2198, %v2269
    %v2271 = vpop.f32.mrb[0].mxu0
    %2272 = vdwg.mxu0
    %vm2273 = vcmask 130048
    %2274 = vst.msk [vmem:[#allocation7] sm:$0xff] %vm2273, %v2270
    // Predicated region
    $region58: #{tpu_custom_call.1} parent=1 // pred_check
      _
    $region59: #{tpu_custom_call.1} parent=1 // pred_check_branch
      %2276 = sbr.rel (0) target = $region61
    $region60: #{tpu_custom_call.1} parent=1 // pred_region
      %s2278 = ssub.s32 128, 128
      %2279 = vsyncadd [#allocation4], %s2278
      %s2281 = sshll.u32 [#allocation7], 4
      %s2282 = int_to_ptr.vmem [resolvable:$true] %s2281
      %2284 = dma.vmem_to_hbm [thread:$0]  %s2282, 128, %s12, [#allocation4]
    $region61: #{tpu_custom_call.1} parent=1 // pred_fallthru
      _
    // Predicated region
    $region62: #{tpu_custom_call.1} parent=1 // pred_check
      _
    $region63: #{tpu_custom_call.1} parent=1 // pred_check_branch
      %2286 = sbr.rel (0) target = $region65
    $region64: #{tpu_custom_call.1} parent=1 // pred_region
      %2287 = dma.done [#allocation4], 128
    $region65: #{tpu_custom_call.1} parent=1 // pred_fallthru
      _
    %2288 = vsyncpa [#allocation3], 1
    %2289 = vsyncpa [#allocation6], 1
    %2290 = vsyncpa [#allocation4], 1

</llo_original>
